<compile_context>
chip_gen: v5e
topology: v5e:2x2
jax: 0.10.0
libtpu: 0.0.40
codegen_flags: <defaults>
</compile_context>

<pallas_src>
import jax
import jax.numpy as jnp
from jax.experimental import pallas as pl
from jax.experimental.pallas import tpu as pltpu

HIDDEN_TRUE = 1000   # hidden size in the PyTorch module
HIDDEN_PAD = 1024    # padded to 8*128 lane-dense tiles


def _round_up(x, m):
    return (x + m - 1) // m * m


# --------------------------------------------------------------------------
# Pallas kernel
#   grid = (row_groups, 5 mid layers, row tiles per group)
#          ("parallel",  "arbitrary",  "arbitrary")
#   l == 0    : fc1 (eval-mode BN pre-folded) -> h scratch (bf16)
#   every l   : one mid layer fc2..fc6 (bf16 weights, f32 accum) -> h scratch
#   l == last : fc7 as a VPU multiply + cross-lane reduce -> out
# --------------------------------------------------------------------------
def fcc_kernel(x_ref, w1_ref, b1_ref, wmid_ref, bmid_ref, w7_ref, b7_ref,
               out_ref, h_ref):
    l = pl.program_id(1)      # mid-layer index (fc2..fc6)
    r = pl.program_id(2)      # row tile within this group

    @pl.when(l == 0)
    def _():
        # fc1 with eval-mode BatchNorm folded into (w1, b1) on the host.
        a = jnp.dot(x_ref[...], w1_ref[...],
                    preferred_element_type=jnp.float32) + b1_ref[...]
        h_ref[r] = jnp.maximum(a, 0.0).astype(jnp.bfloat16)

    # TODO(synk): Dropout is eval-mode identity and BatchNorm uses running
    # statistics (eval mode); PyTorch training-mode behaviour not reproduced.

    # One mid layer (fc2..fc6) per step of grid axis 1.  bf16 weights and
    # activations, f32 MXU accumulation, bias + ReLU in f32, single bf16 cast
    # when writing the resident h scratch.
    h = jnp.maximum(
        jnp.dot(h_ref[r], wmid_ref[...], preferred_element_type=jnp.float32)
        + bmid_ref[...],
        0.0)
    h_ref[r] = h.astype(jnp.bfloat16)

    @pl.when(l == pl.num_programs(1) - 1)
    def _():
        # fc7 (1024 -> 1): VPU multiply + cross-lane reduce instead of an
        # N=1 MXU matmul (avoids 127 padded MXU columns); uses the f32 h of
        # the last mid layer for a slightly more accurate epilogue.
        out_ref[...] = (jnp.sum(h * w7_ref[...], axis=-1, keepdims=True)
                        + b7_ref[...])


def _default_row_groups():
    """v7x has 2 TensorCores/chip (use both); v5e/v6e have 1.  Best-effort
    device-kind sniff; falls back to 1 (always correct, single-core-safe)."""
    try:
        kind = jax.devices()[0].device_kind.lower()
    except Exception:
        return 1
    return 2 if "7" in kind else 1


def fcc_forward(x, params, *, row_tile=512, num_row_groups=None):
    """x: [S, F] preprocessed features (see make_features); returns [S] f32."""
    S, F = x.shape
    H = HIDDEN_PAD
    n_mid = params["wmid"].shape[0]          # 5 (fc2..fc6)

    if num_row_groups is None:
        num_row_groups = _default_row_groups()

    # --- tiling --------------------------------------------------------------
    S_pad = _round_up(max(S, 8), 8)
    tm = min(_round_up(row_tile, 8), S_pad)
    n_rows = pl.cdiv(S_pad, tm)
    groups = max(1, min(int(num_row_groups), n_rows))
    n_rows = _round_up(n_rows, groups)
    S_pad = n_rows * tm
    tpg = n_rows // groups                   # row tiles per (parallel) group

    x = x.astype(jnp.bfloat16)
    if S_pad != S:
        x = jnp.pad(x, ((0, S_pad - S), (0, 0)))

    out = pl.pallas_call(
        fcc_kernel,
        out_shape=jax.ShapeDtypeStruct((S_pad, 1), jnp.float32),
        grid_spec=pltpu.PrefetchScalarGridSpec(
            num_scalar_prefetch=0,
            # Layer axis is OUTSIDE the row-tile axis: the wmid block index
            # changes only when l changes, so fc2..fc6 weights are DMA'd once
            # per layer per group and amortized across all row tiles of the
            # group.  The leading group axis is "parallel" for v7x's 2 TCs.
            grid=(groups, n_mid, tpg),
            in_specs=[
                pl.BlockSpec((tm, F), lambda g, l, r: (g * tpg + r, 0)),   # x (bf16)
                pl.BlockSpec((F, H), lambda g, l, r: (0, 0)),              # w1 (bf16, BN folded)
                pl.BlockSpec((1, H), lambda g, l, r: (0, 0)),              # b1 (f32)
                pl.BlockSpec((None, H, H), lambda g, l, r: (l, 0, 0)),     # wmid[l] (bf16)
                pl.BlockSpec((None, 1, H), lambda g, l, r: (l, 0, 0)),     # bmid[l] (f32)
                pl.BlockSpec((1, H), lambda g, l, r: (0, 0)),              # w7 (f32 row vector)
                pl.BlockSpec((1, 1), lambda g, l, r: (0, 0)),              # b7 (f32)
            ],
            out_specs=pl.BlockSpec((tm, 1), lambda g, l, r: (g * tpg + r, 0)),
            # Hidden activations for all row tiles of this group, resident in
            # VMEM across the sequential layer axis; bf16 halves the footprint.
            scratch_shapes=[pltpu.VMEM((tpg, tm, H), jnp.bfloat16)],
        ),
        compiler_params=pltpu.CompilerParams(
            dimension_semantics=("parallel", "arbitrary", "arbitrary"),
            # Worst realistic usage (tm=512, F~1128, tpg<=8): ~20 MiB, so a
            # 32 MiB scoped limit leaves margin and stays well under the v7x
            # 64 MiB physical VMEM (do not raise toward 64+ MiB on v7x).
            vmem_limit_bytes=32 * 1024 * 1024,
        ),
    )(x, params["w1"], params["b1"], params["wmid"], params["bmid"],
      params["w7"], params["b7"])
    return out[:S, 0]


# --------------------------------------------------------------------------
# Plain-JAX glue: symmetric KL between multivariate normals, feature prep,
# parameter packing.
# --------------------------------------------------------------------------
def mvn_kl(mu_p, cov_p, mu_q, cov_q):
    """KL( N(mu_p,cov_p) || N(mu_q,cov_q) ), batched over leading dims."""
    D = mu_p.shape[-1]
    tr_term = jnp.trace(jnp.linalg.solve(cov_q, cov_p), axis1=-2, axis2=-1)
    dmu = mu_q - mu_p
    maha = jnp.sum(dmu * jnp.linalg.solve(cov_q, dmu[..., None])[..., 0], axis=-1)
    _, logdet_q = jnp.linalg.slogdet(cov_q)
    _, logdet_p = jnp.linalg.slogdet(cov_p)
    return 0.5 * (tr_term + maha - D + logdet_q - logdet_p)


def make_features(kl, mask):
    """x = (log(kl + 1e-5) + 1) * mask - 1, computed host-side (fuses with the
    KL epilogue) and shipped to the kernel as a single bf16 stream.

    NOTE: kl is clamped at 0 before the log -- f32 solves/slogdet can make the
    symmetric KL very slightly negative, which would otherwise NaN the log.
    (Intentional deviation from a literal log(kl + 1e-5).)
    """
    X = jnp.maximum(kl, 0.0) + 1e-5
    feats = jnp.log(X)
    return ((feats + 1.0) * mask - 1.0).astype(jnp.bfloat16)


def pack_params(gamma, beta, rmean, rvar, w1, b1, wmid, bmid, w7, b7):
    """Fold eval-mode BN into fc1, pad HIDDEN 1000->1024, cast weights to bf16.

    w1: (F, 1000), b1: (1000,), wmid/bmid: lists of 5 ((1000,1000), (1000,)),
    w7: (1000, 1), b7: (1,).  All f32 (weights pre-transposed so the kernel
    computes x @ W + b).
    """
    H_t = w1.shape[1]
    pad_h = HIDDEN_PAD - H_t

    # BN(x) = x*scale + shift (eval), folded: x @ (scale[:,None]*w1) + (shift@w1 + b1)
    scale = gamma * jax.lax.rsqrt(rvar + 1e-5)
    shift = beta - rmean * scale
    w1f = w1 * scale[:, None]
    b1f = b1 + shift @ w1

    pad_cols = lambda w: jnp.pad(w, ((0, 0), (0, pad_h)))
    pad_both = lambda w: jnp.pad(w, ((0, pad_h), (0, pad_h)))
    pad_vec = lambda b: jnp.pad(b, (0, pad_h))

    return dict(
        w1=pad_cols(w1f).astype(jnp.bfloat16),                                  # (F, 1024)
        b1=pad_vec(b1f)[None, :].astype(jnp.float32),                           # (1, 1024)
        wmid=jnp.stack([pad_both(w) for w in wmid]).astype(jnp.bfloat16),       # (5, 1024, 1024)
        bmid=jnp.stack([pad_vec(b)[None, :] for b in bmid]).astype(jnp.float32),  # (5, 1, 1024)
        w7=pad_vec(w7[:, 0])[None, :].astype(jnp.float32),                      # (1, 1024)
        b7=b7.reshape(1, 1).astype(jnp.float32),                                # (1, 1)
    )


def init_params(key, num_features):
    keys = jax.random.split(key, 14)

    def linear(kw, kb, fan_in, fan_out):
        bound = 1.0 / float(fan_in) ** 0.5  # PyTorch nn.Linear default init
        w = jax.random.uniform(kw, (fan_in, fan_out), jnp.float32, -bound, bound)
        b = jax.random.uniform(kb, (fan_out,), jnp.float32, -bound, bound)
        return w, b

    w1, b1 = linear(keys[0], keys[1], num_features, HIDDEN_TRUE)
    wmid, bmid = [], []
    for i in range(5):  # fc2..fc6
        w, b = linear(keys[2 + 2 * i], keys[3 + 2 * i], HIDDEN_TRUE, HIDDEN_TRUE)
        wmid.append(w)
        bmid.append(b)
    w7, b7 = linear(keys[12], keys[13], HIDDEN_TRUE, 1)

    # BatchNorm1d defaults: weight=1, bias=0, running_mean=0, running_var=1
    gamma = jnp.ones((num_features,), jnp.float32)
    beta = jnp.zeros((num_features,), jnp.float32)
    rmean = jnp.zeros((num_features,), jnp.float32)
    rvar = jnp.ones((num_features,), jnp.float32)

    return pack_params(gamma, beta, rmean, rvar, w1, b1, wmid, bmid, w7, b7)


if __name__ == "__main__":
    # Small shapes: 4 speakers, 128 "phone-pair" features, mfcc dim 4.
    S, F, D = 4, 128, 4
    key = jax.random.PRNGKey(0)
    k_pm, k_qm, k_pa, k_qa, k_mask = jax.random.split(key, 5)

    p_means = jax.random.normal(k_pm, (S, F, D), jnp.float32)
    q_means = jax.random.normal(k_qm, (S, F, D), jnp.float32)

    eye = jnp.eye(D, dtype=jnp.float32)
    A_p = jax.random.normal(k_pa, (S, F, D, D), jnp.float32) * 0.3
    A_q = jax.random.normal(k_qa, (S, F, D, D), jnp.float32) * 0.3
    p_covariances = A_p @ jnp.swapaxes(A_p, -1, -2) + eye
    q_covariances = A_q @ jnp.swapaxes(A_q, -1, -2) + eye

    num_phones_mask = (jax.random.uniform(k_mask, (S, F)) > 0.2).astype(jnp.float32)

    # Symmetric KL features + log/mask prep (plain JAX glue; fuses with the
    # solves/slogdet epilogue and feeds the kernel one bf16 [S, F] stream).
    kl_loss = 0.5 * (mvn_kl(p_means, p_covariances, q_means, q_covariances) +
                     mvn_kl(q_means, q_covariances, p_means, p_covariances))
    x = make_features(kl_loss.astype(jnp.float32), num_phones_mask)

    params = init_params(jax.random.PRNGKey(42), F)

    y = fcc_forward(x, params)
    y = jax.block_until_ready(y)

    assert y.shape == (S,), y.shape
    assert bool(jnp.all(jnp.isfinite(y))), "non-finite output"
    print("KERNEL_OK")
</pallas_src>

<mosaic_0001>
module attributes {stable_mosaic.version = 11 : i64} {
  func.func @fcc_kernel(%arg0: i32, %arg1: i32, %arg2: i32, %arg3: memref<8x128xbf16, #tpu.memory_space<vmem>>, %arg4: memref<128x1024xbf16, #tpu.memory_space<vmem>>, %arg5: memref<1x1024xf32, #tpu.memory_space<vmem>>, %arg6: memref<1x1024x1024xbf16, #tpu.memory_space<vmem>>, %arg7: memref<1x1x1024xf32, #tpu.memory_space<vmem>>, %arg8: memref<1x1024xf32, #tpu.memory_space<vmem>>, %arg9: memref<1x1xf32, #tpu.memory_space<vmem>>, %arg10: memref<8x1xf32, #tpu.memory_space<vmem>>, %arg11: memref<1x8x1024xbf16, #tpu.memory_space<vmem>>) attributes {dimension_semantics = [#tpu.dimension_semantics<parallel>, #tpu.dimension_semantics<arbitrary>, #tpu.dimension_semantics<arbitrary>], iteration_bounds = array<i64: 1, 5, 1>, scalar_prefetch = 0 : i64, scratch_operands = 1 : i64, tpu.core_type = #tpu.core_type<tc>, window_params = [{transform_indices = @transform_0, window_bounds = array<i64: 8, 128>}, {pipeline_mode = #tpu.pipeline_mode<synchronous>, transform_indices = @transform_1, window_bounds = array<i64: 128, 1024>}, {pipeline_mode = #tpu.pipeline_mode<synchronous>, transform_indices = @transform_2, window_bounds = array<i64: 1, 1024>}, {transform_indices = @transform_3, window_bounds = array<i64: 1, 1024, 1024>}, {transform_indices = @transform_4, window_bounds = array<i64: 1, 1, 1024>}, {pipeline_mode = #tpu.pipeline_mode<synchronous>, transform_indices = @transform_5, window_bounds = array<i64: 1, 1024>}, {pipeline_mode = #tpu.pipeline_mode<synchronous>, transform_indices = @transform_6, window_bounds = array<i64: 1, 1>}, {transform_indices = @transform_7, window_bounds = array<i64: 8, 1>}]} {
    %c0_i32 = arith.constant 0 : i32
    %0 = arith.cmpi eq, %arg1, %c0_i32 : i32
    %1 = arith.extui %0 : i1 to i32
    %c0_i32_0 = arith.constant 0 : i32
    %2 = arith.cmpi ne, %1, %c0_i32_0 : i32
    scf.if %2 {
      %c0_12 = arith.constant 0 : index
      %c0_13 = arith.constant 0 : index
      %23 = vector.load %arg3[%c0_12, %c0_13] : memref<8x128xbf16, #tpu.memory_space<vmem>>, vector<8x128xbf16>
      %c0_14 = arith.constant 0 : index
      %c0_15 = arith.constant 0 : index
      %24 = vector.load %arg4[%c0_14, %c0_15] : memref<128x1024xbf16, #tpu.memory_space<vmem>>, vector<128x1024xbf16>
      %cst_16 = arith.constant dense<0.000000e+00> : vector<8x1024xf32>
      %25 = tpu.matmul %23, %24, %cst_16 {dimension_numbers = #tpu.dot_dimension_numbers<[1], [0], [0], [1], [0, 0, 1, 1], [], []>} : vector<8x128xbf16>, vector<128x1024xbf16>, vector<8x1024xf32> -> vector<8x1024xf32>
      %c0_17 = arith.constant 0 : index
      %c0_18 = arith.constant 0 : index
      %26 = vector.load %arg5[%c0_17, %c0_18] : memref<1x1024xf32, #tpu.memory_space<vmem>>, vector<1x1024xf32>
      %27 = vector.broadcast %26 : vector<1x1024xf32> to vector<8x1024xf32>
      %28 = arith.addf %25, %27 : vector<8x1024xf32>
      %cst_19 = arith.constant 0.000000e+00 : f32
      %29 = vector.broadcast %cst_19 : f32 to vector<8x1024xf32>
      %30 = arith.maximumf %28, %29 : vector<8x1024xf32>
      %31 = arith.truncf %30 : vector<8x1024xf32> to vector<8x1024xbf16>
      %32 = arith.index_cast %arg2 : i32 to index
      %c0_20 = arith.constant 0 : index
      %c0_21 = arith.constant 0 : index
      %33 = vector.load %arg11[%32, %c0_20, %c0_21] : memref<1x8x1024xbf16, #tpu.memory_space<vmem>>, vector<1x8x1024xbf16>
      %34 = vector.shape_cast %33 : vector<1x8x1024xbf16> to vector<8x1024xbf16>
      %35 = vector.shape_cast %31 : vector<8x1024xbf16> to vector<1x8x1024xbf16>
      tpu.vector_store %arg11[%32, %c0_20, %c0_21], %35 {strides = array<i32>} : memref<1x8x1024xbf16, #tpu.memory_space<vmem>>, vector<1x8x1024xbf16>,
    } else {
    }
    %3 = arith.index_cast %arg2 : i32 to index
    %c0 = arith.constant 0 : index
    %c0_1 = arith.constant 0 : index
    %4 = vector.load %arg11[%3, %c0, %c0_1] : memref<1x8x1024xbf16, #tpu.memory_space<vmem>>, vector<1x8x1024xbf16>
    %5 = vector.shape_cast %4 : vector<1x8x1024xbf16> to vector<8x1024xbf16>
    %c0_2 = arith.constant 0 : index
    %c0_3 = arith.constant 0 : index
    %c0_4 = arith.constant 0 : index
    %6 = vector.load %arg6[%c0_2, %c0_3, %c0_4] : memref<1x1024x1024xbf16, #tpu.memory_space<vmem>>, vector<1x1024x1024xbf16>
    %7 = vector.shape_cast %6 : vector<1x1024x1024xbf16> to vector<1024x1024xbf16>
    %cst = arith.constant dense<0.000000e+00> : vector<8x1024xf32>
    %8 = tpu.matmul %5, %7, %cst {dimension_numbers = #tpu.dot_dimension_numbers<[1], [0], [0], [1], [0, 0, 1, 1], [], []>} : vector<8x1024xbf16>, vector<1024x1024xbf16>, vector<8x1024xf32> -> vector<8x1024xf32>
    %c0_5 = arith.constant 0 : index
    %c0_6 = arith.constant 0 : index
    %c0_7 = arith.constant 0 : index
    %9 = vector.load %arg7[%c0_5, %c0_6, %c0_7] : memref<1x1x1024xf32, #tpu.memory_space<vmem>>, vector<1x1x1024xf32>
    %10 = vector.shape_cast %9 : vector<1x1x1024xf32> to vector<1x1024xf32>
    %11 = vector.broadcast %10 : vector<1x1024xf32> to vector<8x1024xf32>
    %12 = arith.addf %8, %11 : vector<8x1024xf32>
    %cst_8 = arith.constant 0.000000e+00 : f32
    %13 = vector.broadcast %cst_8 : f32 to vector<8x1024xf32>
    %14 = arith.maximumf %12, %13 : vector<8x1024xf32>
    %15 = arith.truncf %14 : vector<8x1024xf32> to vector<8x1024xbf16>
    %16 = arith.index_cast %arg2 : i32 to index
    %c0_9 = arith.constant 0 : index
    %c0_10 = arith.constant 0 : index
    %17 = vector.load %arg11[%16, %c0_9, %c0_10] : memref<1x8x1024xbf16, #tpu.memory_space<vmem>>, vector<1x8x1024xbf16>
    %18 = vector.shape_cast %17 : vector<1x8x1024xbf16> to vector<8x1024xbf16>
    %19 = vector.shape_cast %15 : vector<8x1024xbf16> to vector<1x8x1024xbf16>
    tpu.vector_store %arg11[%16, %c0_9, %c0_10], %19 {strides = array<i32>} : memref<1x8x1024xbf16, #tpu.memory_space<vmem>>, vector<1x8x1024xbf16>,
    %c4_i32 = arith.constant 4 : i32
    %20 = arith.cmpi eq, %arg1, %c4_i32 : i32
    %21 = arith.extui %20 : i1 to i32
    %c0_i32_11 = arith.constant 0 : i32
    %22 = arith.cmpi ne, %21, %c0_i32_11 : i32
    scf.if %22 {
      %c0_12 = arith.constant 0 : index
      %c0_13 = arith.constant 0 : index
      %23 = vector.load %arg8[%c0_12, %c0_13] : memref<1x1024xf32, #tpu.memory_space<vmem>>, vector<1x1024xf32>
      %24 = vector.broadcast %23 : vector<1x1024xf32> to vector<8x1024xf32>
      %25 = arith.mulf %14, %24 : vector<8x1024xf32>
      %cst_14 = arith.constant dense<0.000000e+00> : vector<8xf32>
      %26 = vector.multi_reduction <add>, %25, %cst_14 [1] : vector<8x1024xf32> to vector<8xf32>
      %27 = vector.shape_cast %26 : vector<8xf32> to vector<8x1xf32>
      %c0_15 = arith.constant 0 : index
      %c0_16 = arith.constant 0 : index
      %28 = vector.load %arg9[%c0_15, %c0_16] : memref<1x1xf32, #tpu.memory_space<vmem>>, vector<1x1xf32>
      %29 = vector.broadcast %28 : vector<1x1xf32> to vector<8x1xf32>
      %30 = arith.addf %27, %29 : vector<8x1xf32>
      %c0_17 = arith.constant 0 : index
      %c0_18 = arith.constant 0 : index
      %31 = vector.load %arg10[%c0_17, %c0_18] : memref<8x1xf32, #tpu.memory_space<vmem>>, vector<8x1xf32>
      tpu.vector_store %arg10[%c0_17, %c0_18], %30 {strides = array<i32>} : memref<8x1xf32, #tpu.memory_space<vmem>>, vector<8x1xf32>,
    } else {
    }
    return
  }
  func.func @transform_0(%arg0: i32, %arg1: i32, %arg2: i32) -> (i32, i32) {
    %c1_i32 = arith.constant 1 : i32
    %0 = arith.muli %arg0, %c1_i32 : i32
    %1 = arith.addi %0, %arg2 : i32
    %c0_i32 = arith.constant 0 : i32
    %c0_i32_0 = arith.constant 0 : i32
    return %1, %c0_i32 : i32, i32
  }
  func.func @transform_1(%arg0: i32, %arg1: i32, %arg2: i32) -> (i32, i32) {
    %c0_i32 = arith.constant 0 : i32
    %c0_i32_0 = arith.constant 0 : i32
    %c0_i32_1 = arith.constant 0 : i32
    return %c0_i32, %c0_i32_0 : i32, i32
  }
  func.func @transform_2(%arg0: i32, %arg1: i32, %arg2: i32) -> (i32, i32) {
    %c0_i32 = arith.constant 0 : i32
    %c0_i32_0 = arith.constant 0 : i32
    %c0_i32_1 = arith.constant 0 : i32
    return %c0_i32, %c0_i32_0 : i32, i32
  }
  func.func @transform_3(%arg0: i32, %arg1: i32, %arg2: i32) -> (i32, i32, i32) {
    %c0_i32 = arith.constant 0 : i32
    %c0_i32_0 = arith.constant 0 : i32
    %c0_i32_1 = arith.constant 0 : i32
    return %arg1, %c0_i32, %c0_i32_0 : i32, i32, i32
  }
  func.func @transform_4(%arg0: i32, %arg1: i32, %arg2: i32) -> (i32, i32, i32) {
    %c0_i32 = arith.constant 0 : i32
    %c0_i32_0 = arith.constant 0 : i32
    %c0_i32_1 = arith.constant 0 : i32
    return %arg1, %c0_i32, %c0_i32_0 : i32, i32, i32
  }
  func.func @transform_5(%arg0: i32, %arg1: i32, %arg2: i32) -> (i32, i32) {
    %c0_i32 = arith.constant 0 : i32
    %c0_i32_0 = arith.constant 0 : i32
    %c0_i32_1 = arith.constant 0 : i32
    return %c0_i32, %c0_i32_0 : i32, i32
  }
  func.func @transform_6(%arg0: i32, %arg1: i32, %arg2: i32) -> (i32, i32) {
    %c0_i32 = arith.constant 0 : i32
    %c0_i32_0 = arith.constant 0 : i32
    %c0_i32_1 = arith.constant 0 : i32
    return %c0_i32, %c0_i32_0 : i32, i32
  }
  func.func @transform_7(%arg0: i32, %arg1: i32, %arg2: i32) -> (i32, i32) {
    %c1_i32 = arith.constant 1 : i32
    %0 = arith.muli %arg0, %c1_i32 : i32
    %1 = arith.addi %0, %arg2 : i32
    %c0_i32 = arith.constant 0 : i32
    %c0_i32_0 = arith.constant 0 : i32
    return %1, %c0_i32 : i32, i32
  }
}

</mosaic_0001>

<llo_original>
// kernel: tpu_custom_call.1
$region0: #{tpu_custom_call.1}
  #allocation0 [shape = 'u32[]', space=smem, size = 0x4, offset = 0x4, fixed_abs, tag = 'smem constant byte address 0x4 - core index']
  #allocation1 [shape = 'u32[72,128]{1,0:T(1,128)}', space=vmem, size = 0x9000, scoped, tag = 'internal scratch']
  #allocation2 [shape = 'bf16[1,8,1024]{2,1,0:T(8,128)(2,1)}', space=vmem, size = 0x4000, scoped, tag = 'scratch operand']
  #allocation3 [shape = 'f32[1,1]{1,0:T(1,128)S(1)}', space=vmem, size = 0x200, scoped, tag = 'scoped memory for tpu_custom_call.1']
  %s0 = inlined_call_operand.hbm [shape: bf16[8,128], index: 0, kind: input, shape index: {}]
  %s1 = inlined_call_operand.hbm [shape: bf16[128,1024], index: 1, kind: input, shape index: {}]
  %s2 = inlined_call_operand.hbm [shape: f32[1,1024], index: 2, kind: input, shape index: {}]
  %s3 = inlined_call_operand.hbm [shape: bf16[5,1024,1024], index: 3, kind: input, shape index: {}]
  %s4 = inlined_call_operand.hbm [shape: f32[5,1,1024], index: 4, kind: input, shape index: {}]
  %s5 = inlined_call_operand.hbm [shape: f32[1,1024], index: 5, kind: input, shape index: {}]
  %s6 = inlined_call_operand.<no memory space> [shape: f32[1,1], index: 6, kind: input, shape index: {}]
  %s7 = inlined_call_operand.vmem [shape: f32[8,1], index: 7, kind: output, shape index: {}]
  %s8 = sld [smem:[#allocation0]]
  $region93: #{tpu_custom_call.1} parent=0
    _
  %s10 = ssub.s32 1, %s8
  %s11 = scalar_select 0, %s10, %s8
  %v12 = vstv %s6
  %13 = vst [vmem:[#allocation3] sm:$0x1] %v12
  $region1: #{tpu_custom_call.1} parent=0
    #allocation4 [shape = 'u8[2048]{0}', space=vmem, size = 0x800, scoped, tag = 'input window, operand 0, single buffered']
    #allocation5 [shape = 's32[2]{0}', space=sflag, size = 0x8, scoped, tag = 'scoped memory for tpu_custom_call.1']
    #allocation6 [shape = 'u8[262144]{0}', space=vmem, size = 0x40000, scoped, tag = 'input window, operand 1, single buffered']
    #allocation7 [shape = 's32[1]{0}', space=sflag, size = 0x4, scoped, tag = 'scoped memory for tpu_custom_call.1']
    #allocation8 [shape = 'u8[4096]{0}', space=vmem, size = 0x1000, scoped, tag = 'input window, operand 2, single buffered']
    #allocation9 [shape = 'u8[4194304]{0}', space=vmem, size = 0x400000, scoped, tag = 'input window, operand 3']
    #allocation10 [shape = 's32[2]{0}', space=sflag, size = 0x8, scoped, tag = 'scoped memory for tpu_custom_call.1']
    #allocation11 [shape = 'u8[8192]{0}', space=vmem, size = 0x2000, scoped, tag = 'input window, operand 4']
    #allocation12 [shape = 'u8[4096]{0}', space=vmem, size = 0x1000, scoped, tag = 'input window, operand 5, single buffered']
    #allocation13 [shape = 's32[1]{0}', space=sflag, size = 0x4, scoped, tag = 'scoped memory for tpu_custom_call.1']
    %14 = vsyncpa [#allocation5], 0
    %15 = vsyncpa [#allocation7], 0
    %16 = vsyncpa [#allocation10], 0
    %s17 = scalar_lea.sflag [#allocation10], 1
    %18 = vsyncpa %s17, 0
    %19 = vsyncpa [#allocation13], 0
    loop: start=0, step=1, limit=7
    $region2: #{tpu_custom_call.1} parent=1 // loop_pre_header
      _
    $region3: #{tpu_custom_call.1} parent=1 // loop_header
      %s21 = sphi 0, %s25
      %p22 = scmp.ge.s32.totalorder %s21, 7
      %s28 = sphi 0, %s47
      %s29 = sphi 0, %s43
      %s30 = sphi 0, %s39
      %s31 = sphi 0, %s28
      %s32 = sphi 0, %s29
      %s33 = sphi 0, %s30
      %s34 = sphi 0, %s31
      %s35 = sphi 0, %s32
      %s36 = sphi 0, %s33
      %s52 = sphi 0, %s54
      %s55 = sphi 0, %s52
      %s56 = sphi 0, %s55
      %s72 = sphi 0, %s56
      %s76 = sphi 0, %s76
      %s78 = sphi 0, %s76
      %s79 = sphi 0, %s78
      %s93 = sphi 0, %s79
      %s97 = sphi 0, %s97
      %s99 = sphi 0, %s97
      %s100 = sphi 0, %s99
      %s114 = sphi 0, %s100
      %s120 = sphi 0, %s122
      %s123 = sphi 0, %s120
      %s124 = sphi 0, %s123
      %s140 = sphi 0, %s124
      %s146 = sphi 0, %s148
      %s149 = sphi 0, %s146
      %s150 = sphi 0, %s149
      %s166 = sphi 0, %s150
      %s170 = sphi 0, %s170
      %s172 = sphi 0, %s170
      %s173 = sphi 0, %s172
      %s187 = sphi 0, %s173
      %s191 = sphi 0, %s191
      %s193 = sphi 0, %s191
      %s194 = sphi 0, %s193
      %s208 = sphi 0, %s194
      %s216 = sphi 0, %s218
      %s219 = sphi 0, %s216
      %s220 = sphi 0, %s219
      %s236 = sphi 0, %s220
    $region4: #{tpu_custom_call.1} parent=1 // loop_header_branch
      %24 = sbr.rel (%p22) target = $region8
    $region5: #{tpu_custom_call.1} parent=1 // loop_body
      %s26 = ssub.s32 %s21, 1
      %s27 = ssub.s32 %s21, 2
      %s37 = sadd.s32 1, %s30
      %p38 = scmp.ge.s32.totalorder %s37, 1
      %s39 = scalar_select %p38, 0, %s37
      %s40 = sadd.s32 1, %s29
      %s41 = scalar_select %p38, %s40, %s29
      %p42 = scmp.ge.s32.totalorder %s41, 5
      %s43 = scalar_select %p42, 0, %s41
      %s44 = sadd.s32 1, %s28
      %s45 = scalar_select %p42, %s44, %s28
      %p46 = scmp.ge.s32.totalorder %s45, 1
      %s47 = scalar_select %p46, 0, %s45
      %s48 = sadd.s32 %s28, %s30
      %s49 = sadd.s32 %s47, %s39
      %s50 = ssub.s32 %s48, %s49
      %p51 = scmp.eq.s32.totalorder %s50, 0
      %s53 = sadd.s32 %s52, 1
      %s54 = scalar_select %p51, %s52, %s53
      %p57 = pneg %p51
      %p58 = scmp.eq.s32.totalorder %s21, 4
      %p59 = por %p57, %p58
      %p60 = scmp.ne.s32.totalorder %s52, %s55
      %p61 = scmp.eq.s32.totalorder %s21, 0
      %p62 = por %p60, %p61
      %p63 = scmp.ne.s32.totalorder %s52, %s55
      %p64 = scmp.eq.s32.totalorder %s26, 4
      %p65 = por %p63, %p64
      %p66 = scmp.ne.s32.totalorder %s55, %s56
      %p67 = scmp.eq.s32.totalorder %s26, 0
      %p68 = por %p66, %p67
      %p69 = scmp.ne.s32.totalorder %s55, %s56
      %p70 = scmp.eq.s32.totalorder %s27, 4
      %p71 = por %p69, %p70
      %p73 = scmp.ne.s32.totalorder %s56, %s72
      %p74 = scmp.eq.s32.totalorder %s27, 0
      %p75 = por %p73, %p74
      %s77 = sadd.s32 %s76, 1
      %p80 = scmp.eq.s32.totalorder %s21, 4
      %p81 = scmp.ne.s32.totalorder %s76, %s78
      %p82 = scmp.eq.s32.totalorder %s21, 0
      %p83 = por %p81, %p82
      %p84 = scmp.ne.s32.totalorder %s76, %s78
      %p85 = scmp.eq.s32.totalorder %s26, 4
      %p86 = por %p84, %p85
      %p87 = scmp.ne.s32.totalorder %s78, %s79
      %p88 = scmp.eq.s32.totalorder %s26, 0
      %p89 = por %p87, %p88
      %p90 = scmp.ne.s32.totalorder %s78, %s79
      %p91 = scmp.eq.s32.totalorder %s27, 4
      %p92 = por %p90, %p91
      %p94 = scmp.ne.s32.totalorder %s79, %s93
      %p95 = scmp.eq.s32.totalorder %s27, 0
      %p96 = por %p94, %p95
      %s98 = sadd.s32 %s97, 1
      %p101 = scmp.eq.s32.totalorder %s21, 4
      %p102 = scmp.ne.s32.totalorder %s97, %s99
      %p103 = scmp.eq.s32.totalorder %s21, 0
      %p104 = por %p102, %p103
      %p105 = scmp.ne.s32.totalorder %s97, %s99
      %p106 = scmp.eq.s32.totalorder %s26, 4
      %p107 = por %p105, %p106
      %p108 = scmp.ne.s32.totalorder %s99, %s100
      %p109 = scmp.eq.s32.totalorder %s26, 0
      %p110 = por %p108, %p109
      %p111 = scmp.ne.s32.totalorder %s99, %s100
      %p112 = scmp.eq.s32.totalorder %s27, 4
      %p113 = por %p111, %p112
      %p115 = scmp.ne.s32.totalorder %s100, %s114
      %p116 = scmp.eq.s32.totalorder %s27, 0
      %p117 = por %p115, %p116
      %s118 = ssub.s32 %s29, %s43
      %p119 = scmp.eq.s32.totalorder %s118, 0
      %s121 = sadd.s32 %s120, 1
      %s122 = scalar_select %p119, %s120, %s121
      %p125 = pneg %p119
      %p126 = scmp.eq.s32.totalorder %s21, 4
      %p127 = por %p125, %p126
      %p128 = scmp.ne.s32.totalorder %s120, %s123
      %p129 = scmp.eq.s32.totalorder %s21, 0
      %p130 = por %p128, %p129
      %p131 = scmp.ne.s32.totalorder %s120, %s123
      %p132 = scmp.eq.s32.totalorder %s26, 4
      %p133 = por %p131, %p132
      %p134 = scmp.ne.s32.totalorder %s123, %s124
      %p135 = scmp.eq.s32.totalorder %s26, 0
      %p136 = por %p134, %p135
      %p137 = scmp.ne.s32.totalorder %s123, %s124
      %p138 = scmp.eq.s32.totalorder %s27, 4
      %p139 = por %p137, %p138
      %p141 = scmp.ne.s32.totalorder %s124, %s140
      %p142 = scmp.eq.s32.totalorder %s27, 0
      %p143 = por %p141, %p142
      %s144 = ssub.s32 %s29, %s43
      %p145 = scmp.eq.s32.totalorder %s144, 0
      %s147 = sadd.s32 %s146, 1
      %s148 = scalar_select %p145, %s146, %s147
      %p151 = pneg %p145
      %p152 = scmp.eq.s32.totalorder %s21, 4
      %p153 = por %p151, %p152
      %p154 = scmp.ne.s32.totalorder %s146, %s149
      %p155 = scmp.eq.s32.totalorder %s21, 0
      %p156 = por %p154, %p155
      %p157 = scmp.ne.s32.totalorder %s146, %s149
      %p158 = scmp.eq.s32.totalorder %s26, 4
      %p159 = por %p157, %p158
      %p160 = scmp.ne.s32.totalorder %s149, %s150
      %p161 = scmp.eq.s32.totalorder %s26, 0
      %p162 = por %p160, %p161
      %p163 = scmp.ne.s32.totalorder %s149, %s150
      %p164 = scmp.eq.s32.totalorder %s27, 4
      %p165 = por %p163, %p164
      %p167 = scmp.ne.s32.totalorder %s150, %s166
      %p168 = scmp.eq.s32.totalorder %s27, 0
      %p169 = por %p167, %p168
      %s171 = sadd.s32 %s170, 1
      %p174 = scmp.eq.s32.totalorder %s21, 4
      %p175 = scmp.ne.s32.totalorder %s170, %s172
      %p176 = scmp.eq.s32.totalorder %s21, 0
      %p177 = por %p175, %p176
      %p178 = scmp.ne.s32.totalorder %s170, %s172
      %p179 = scmp.eq.s32.totalorder %s26, 4
      %p180 = por %p178, %p179
      %p181 = scmp.ne.s32.totalorder %s172, %s173
      %p182 = scmp.eq.s32.totalorder %s26, 0
      %p183 = por %p181, %p182
      %p184 = scmp.ne.s32.totalorder %s172, %s173
      %p185 = scmp.eq.s32.totalorder %s27, 4
      %p186 = por %p184, %p185
      %p188 = scmp.ne.s32.totalorder %s173, %s187
      %p189 = scmp.eq.s32.totalorder %s27, 0
      %p190 = por %p188, %p189
      %s192 = sadd.s32 %s191, 1
      %p195 = scmp.eq.s32.totalorder %s21, 4
      %p196 = scmp.ne.s32.totalorder %s191, %s193
      %p197 = scmp.eq.s32.totalorder %s21, 0
      %p198 = por %p196, %p197
      %p199 = scmp.ne.s32.totalorder %s191, %s193
      %p200 = scmp.eq.s32.totalorder %s26, 4
      %p201 = por %p199, %p200
      %p202 = scmp.ne.s32.totalorder %s193, %s194
      %p203 = scmp.eq.s32.totalorder %s26, 0
      %p204 = por %p202, %p203
      %p205 = scmp.ne.s32.totalorder %s193, %s194
      %p206 = scmp.eq.s32.totalorder %s27, 4
      %p207 = por %p205, %p206
      %p209 = scmp.ne.s32.totalorder %s194, %s208
      %p210 = scmp.eq.s32.totalorder %s27, 0
      %p211 = por %p209, %p210
      %s212 = sadd.s32 %s28, %s30
      %s213 = sadd.s32 %s47, %s39
      %s214 = ssub.s32 %s212, %s213
      %p215 = scmp.eq.s32.totalorder %s214, 0
      %s217 = sadd.s32 %s216, 1
      %s218 = scalar_select %p215, %s216, %s217
      %p221 = pneg %p215
      %p222 = scmp.eq.s32.totalorder %s21, 4
      %p223 = por %p221, %p222
      %p224 = scmp.ne.s32.totalorder %s216, %s219
      %p225 = scmp.eq.s32.totalorder %s21, 0
      %p226 = por %p224, %p225
      %p227 = scmp.ne.s32.totalorder %s216, %s219
      %p228 = scmp.eq.s32.totalorder %s26, 4
      %p229 = por %p227, %p228
      %p230 = scmp.ne.s32.totalorder %s219, %s220
      %p231 = scmp.eq.s32.totalorder %s26, 0
      %p232 = por %p230, %p231
      %p233 = scmp.ne.s32.totalorder %s219, %s220
      %p234 = scmp.eq.s32.totalorder %s27, 4
      %p235 = por %p233, %p234
      %p237 = scmp.ne.s32.totalorder %s220, %s236
      %p238 = scmp.eq.s32.totalorder %s27, 0
      %p239 = por %p237, %p238
      %p240 = scmp.le.s32.totalorder 1, %s21
      %p241 = scmp.lt.s32.totalorder %s21, 6
      %p242 = pnand %p240, %p241
      %p243 = pneg %p242
      // Predicated region
      $region9: #{tpu_custom_call.1} parent=5 // pred_check
        _
      $region10: #{tpu_custom_call.1} parent=5 // pred_check_branch
        %245 = sbr.rel (%p242) target = $region12
      $region11: #{tpu_custom_call.1} parent=5 // pred_region
        %s246 = ssub.s32 %s21, 1
        // Predicated region
        $region13: #{tpu_custom_call.1} parent=11 // pred_check
          %p247 = pneg %p68
        $region14: #{tpu_custom_call.1} parent=11 // pred_check_branch
          %249 = sbr.rel (%p247) target = $region16
        $region15: #{tpu_custom_call.1} parent=11 // pred_region
          %s250 = sadd.s32 %s31, %s33
          %252 = vsyncadd [#allocation5], 0
          %s253 = smul.addr %s250, 4
          %s254 = scalar_lea.hbm %s0, %s253
          %s256 = sshll.u32 %s254, 4
          %s257 = int_to_ptr.hbm [resolvable:$true] %s256
          %s258 = sshll.u32 [#allocation4], 4
          %s259 = int_to_ptr.vmem [resolvable:$true] %s258
          %261 = dma.hbm_to_vmem [thread:$0]  %s257, 64, %s259, [#allocation5]
        $region16: #{tpu_custom_call.1} parent=11 // pred_fallthru
          _
        // Predicated region
        $region17: #{tpu_custom_call.1} parent=11 // pred_check
          %p262 = pneg %p89
        $region18: #{tpu_custom_call.1} parent=11 // pred_check_branch
          %264 = sbr.rel (%p262) target = $region20
        $region19: #{tpu_custom_call.1} parent=11 // pred_region
          %266 = vsyncadd [#allocation7], 0
          %s267 = sshll.u32 %s1, 4
          %s268 = int_to_ptr.hbm [resolvable:$true] %s267
          %s269 = sshll.u32 [#allocation6], 4
          %s270 = int_to_ptr.vmem [resolvable:$true] %s269
          %275 = dma.hbm_to_vmem [thread:$0]  %s268, 8192, %s270, [#allocation7], 512, 512, 32
        $region20: #{tpu_custom_call.1} parent=11 // pred_fallthru
          _
        // Predicated region
        $region21: #{tpu_custom_call.1} parent=11 // pred_check
          %p276 = pneg %p110
        $region22: #{tpu_custom_call.1} parent=11 // pred_check_branch
          %278 = sbr.rel (%p276) target = $region24
        $region23: #{tpu_custom_call.1} parent=11 // pred_region
          %280 = vsyncadd [#allocation7], 0
          %s282 = sshll.u32 %s2, 4
          %s283 = int_to_ptr.hbm [resolvable:$true] %s282
          %s284 = sshll.u32 [#allocation8], 4
          %s285 = int_to_ptr.vmem [resolvable:$true] %s284
          %287 = dma.hbm_to_vmem [thread:$0]  %s283, 128, %s285, [#allocation7]
        $region24: #{tpu_custom_call.1} parent=11 // pred_fallthru
          _
        // Predicated region
        $region25: #{tpu_custom_call.1} parent=11 // pred_check
          %p288 = pneg %p183
        $region26: #{tpu_custom_call.1} parent=11 // pred_check_branch
          %290 = sbr.rel (%p288) target = $region28
        $region27: #{tpu_custom_call.1} parent=11 // pred_region
          %292 = vsyncadd [#allocation13], 0
          %s294 = sshll.u32 %s5, 4
          %s295 = int_to_ptr.hbm [resolvable:$true] %s294
          %s296 = sshll.u32 [#allocation12], 4
          %s297 = int_to_ptr.vmem [resolvable:$true] %s296
          %299 = dma.hbm_to_vmem [thread:$0]  %s295, 128, %s297, [#allocation13]
        $region28: #{tpu_custom_call.1} parent=11 // pred_fallthru
          _
        // Predicated region
        $region29: #{tpu_custom_call.1} parent=11 // pred_check
          %p300 = pneg %p204
        $region30: #{tpu_custom_call.1} parent=11 // pred_check_branch
          %302 = sbr.rel (%p300) target = $region32
        $region31: #{tpu_custom_call.1} parent=11 // pred_region
          _
        $region32: #{tpu_custom_call.1} parent=11 // pred_fallthru
          _
      $region12: #{tpu_custom_call.1} parent=5 // pred_fallthru
        _
      %p303 = scmp.lt.s32.totalorder %s21, 5
      // Predicated region
      $region33: #{tpu_custom_call.1} parent=5 // pred_check
        %p304 = pneg %p303
      $region34: #{tpu_custom_call.1} parent=5 // pred_check_branch
        %306 = sbr.rel (%p304) target = $region36
      $region35: #{tpu_custom_call.1} parent=5 // pred_region
        // Predicated region
        $region37: #{tpu_custom_call.1} parent=35 // pred_check
          %p307 = pneg %p130
        $region38: #{tpu_custom_call.1} parent=35 // pred_check_branch
          %309 = sbr.rel (%p307) target = $region40
        $region39: #{tpu_custom_call.1} parent=35 // pred_region
          %s310 = sand.u32 %s21, 1
          %s311 = scalar_lea.sflag [#allocation10], %s310
          %s312 = sand.u32 %s120, 1
          %s313 = smul.addr %s312, 4096
          %s314 = scalar_lea.vmem [#allocation9], %s313
          %316 = vsyncadd %s311, 0
          %s317 = smul.addr %s29, 1024
          %s318 = smul.addr %s317, 4
          %s319 = scalar_lea.hbm %s3, %s318
          %s320 = sshll.u32 %s319, 4
          %s321 = int_to_ptr.hbm [resolvable:$true] %s320
          %s322 = sshll.u32 %s314, 4
          %s323 = int_to_ptr.vmem [resolvable:$true] %s322
          %328 = dma.hbm_to_vmem [thread:$0]  %s321, 65536, %s323, %s311, 512, 512, 32
        $region40: #{tpu_custom_call.1} parent=35 // pred_fallthru
          _
        // Predicated region
        $region41: #{tpu_custom_call.1} parent=35 // pred_check
          %p329 = pneg %p156
        $region42: #{tpu_custom_call.1} parent=35 // pred_check_branch
          %331 = sbr.rel (%p329) target = $region44
        $region43: #{tpu_custom_call.1} parent=35 // pred_region
          %s332 = sand.u32 %s21, 1
          %s333 = scalar_lea.sflag [#allocation10], %s332
          %s334 = sand.u32 %s146, 1
          %s335 = smul.addr %s334, 8
          %s336 = scalar_lea.vmem [#allocation11], %s335
          %338 = vsyncadd %s333, 0
          %s339 = smul.addr %s29, 8
          %s340 = scalar_lea.hbm %s4, %s339
          %s342 = sshll.u32 %s340, 4
          %s343 = int_to_ptr.hbm [resolvable:$true] %s342
          %s344 = sshll.u32 %s336, 4
          %s345 = int_to_ptr.vmem [resolvable:$true] %s344
          %347 = dma.hbm_to_vmem [thread:$0]  %s343, 128, %s345, %s333
        $region44: #{tpu_custom_call.1} parent=35 // pred_fallthru
          _
      $region36: #{tpu_custom_call.1} parent=5 // pred_fallthru
        _
      %p348 = scmp.le.s32.totalorder 1, %s21
      %p349 = scmp.lt.s32.totalorder %s21, 6
      %p350 = pnand %p348, %p349
      %p351 = pneg %p350
      // Predicated region
      $region45: #{tpu_custom_call.1} parent=5 // pred_check
        _
      $region46: #{tpu_custom_call.1} parent=5 // pred_check_branch
        %353 = sbr.rel (%p350) target = $region48
      $region47: #{tpu_custom_call.1} parent=5 // pred_region
        %s354 = ssub.s32 %s21, 1
        // Predicated region
        $region49: #{tpu_custom_call.1} parent=47 // pred_check
          %p355 = pneg %p68
        $region50: #{tpu_custom_call.1} parent=47 // pred_check_branch
          %357 = sbr.rel (%p355) target = $region52
        $region51: #{tpu_custom_call.1} parent=47 // pred_region
          %359 = dma.done [#allocation5], 64
        $region52: #{tpu_custom_call.1} parent=47 // pred_fallthru
          _
        // Predicated region
        $region53: #{tpu_custom_call.1} parent=47 // pred_check
          %p360 = pneg %p89
        $region54: #{tpu_custom_call.1} parent=47 // pred_check_branch
          %362 = sbr.rel (%p360) target = $region56
        $region55: #{tpu_custom_call.1} parent=47 // pred_region
          %364 = dma.done [#allocation7], 8192
        $region56: #{tpu_custom_call.1} parent=47 // pred_fallthru
          _
        // Predicated region
        $region57: #{tpu_custom_call.1} parent=47 // pred_check
          %p365 = pneg %p110
        $region58: #{tpu_custom_call.1} parent=47 // pred_check_branch
          %367 = sbr.rel (%p365) target = $region60
        $region59: #{tpu_custom_call.1} parent=47 // pred_region
          %369 = dma.done [#allocation7], 128
        $region60: #{tpu_custom_call.1} parent=47 // pred_fallthru
          _
        %s370 = sand.u32 %s26, 1
        %s371 = scalar_lea.sflag [#allocation10], %s370
        %s372 = sand.u32 %s123, 1
        %s373 = smul.addr %s372, 4096
        %s374 = scalar_lea.vmem [#allocation9], %s373
        // Predicated region
        $region61: #{tpu_custom_call.1} parent=47 // pred_check
          %p375 = pneg %p136
        $region62: #{tpu_custom_call.1} parent=47 // pred_check_branch
          %377 = sbr.rel (%p375) target = $region64
        $region63: #{tpu_custom_call.1} parent=47 // pred_region
          %379 = dma.done %s371, 65536
        $region64: #{tpu_custom_call.1} parent=47 // pred_fallthru
          _
        %s380 = sand.u32 %s26, 1
        %s381 = scalar_lea.sflag [#allocation10], %s380
        %s382 = sand.u32 %s149, 1
        %s383 = smul.addr %s382, 8
        %s384 = scalar_lea.vmem [#allocation11], %s383
        // Predicated region
        $region65: #{tpu_custom_call.1} parent=47 // pred_check
          %p385 = pneg %p162
        $region66: #{tpu_custom_call.1} parent=47 // pred_check_branch
          %387 = sbr.rel (%p385) target = $region68
        $region67: #{tpu_custom_call.1} parent=47 // pred_region
          %389 = dma.done %s381, 128
        $region68: #{tpu_custom_call.1} parent=47 // pred_fallthru
          _
        // Predicated region
        $region69: #{tpu_custom_call.1} parent=47 // pred_check
          %p390 = pneg %p183
        $region70: #{tpu_custom_call.1} parent=47 // pred_check_branch
          %392 = sbr.rel (%p390) target = $region72
        $region71: #{tpu_custom_call.1} parent=47 // pred_region
          %394 = dma.done [#allocation13], 128
        $region72: #{tpu_custom_call.1} parent=47 // pred_fallthru
          _
        %p395 = pneg %p68
        %p396 = pneg %p65
        %p397 = pneg %p89
        %p398 = pneg %p86
        %p399 = pneg %p110
        %p400 = pneg %p107
        %s401 = sand.u32 %s26, 1
        %s402 = scalar_lea.sflag [#allocation10], %s401
        %s403 = sand.u32 %s123, 1
        %s404 = smul.addr %s403, 4096
        %s405 = scalar_lea.vmem [#allocation9], %s404
        %p406 = pneg %p136
        %p407 = pneg %p133
        %s408 = sand.u32 %s26, 1
        %s409 = scalar_lea.sflag [#allocation10], %s408
        %s410 = sand.u32 %s149, 1
        %s411 = smul.addr %s410, 8
        %s412 = scalar_lea.vmem [#allocation11], %s411
        %p413 = pneg %p162
        %p414 = pneg %p159
        %p415 = pneg %p183
        %p416 = pneg %p180
        %p417 = pneg %p204
        %p418 = pneg %p201
        %p419 = pneg %p232
        %p420 = pneg %p229
        %s421 = sadd.s32 %s31, %s33
        %p422 = scmp.lt.s32.totalorder %s421, 0
        %s423 = scalar_select %p422, %s421, 0
        %s424 = smul.addr %s423, 8
        %s425 = scalar_lea.vmem %s7, %s424
        %s426 = sadd.s32 %s31, %s33
        %s427 = sadd.s32 %s31, %s33
        %p428 = scmp.lt.s32.totalorder %s427, 0
        %s429 = scalar_select %p428, %s427, 0
        %s430 = smul.addr %s429, 8
        %s431 = scalar_lea.vmem %s7, %s430
        %s432 = sadd.s32 %s31, %s33
        %p433 = scmp.eq.s32.totalorder %s32, 0
        // Predicated region
        $region73: #{tpu_custom_call.1} parent=47 // pred_check
          %p434 = pneg %p433
        $region74: #{tpu_custom_call.1} parent=47 // pred_check_branch
          %436 = sbr.rel (%p434) target = $region76
        $region75: #{tpu_custom_call.1} parent=47 // pred_region
          %v437 = vld [vmem:[#allocation4] sm:$0xf]
          %v438 = vld [vmem:[#allocation6] sm:$0xff]
          %v439 = vld [vmem:[#allocation6 + $0x8] sm:$0xff]
          %v440 = vld [vmem:[#allocation6 + $0x10] sm:$0xff]
          %v441 = vld [vmem:[#allocation6 + $0x18] sm:$0xff]
          %v442 = vld [vmem:[#allocation6 + $0x20] sm:$0xff]
          %v443 = vld [vmem:[#allocation6 + $0x28] sm:$0xff]
          %v444 = vld [vmem:[#allocation6 + $0x30] sm:$0xff]
          %v445 = vld [vmem:[#allocation6 + $0x38] sm:$0xff]
          %v446 = vld [vmem:[#allocation6 + $0x40] sm:$0xff]
          %v447 = vld [vmem:[#allocation6 + $0x48] sm:$0xff]
          %v448 = vld [vmem:[#allocation6 + $0x50] sm:$0xff]
          %v449 = vld [vmem:[#allocation6 + $0x58] sm:$0xff]
          %v450 = vld [vmem:[#allocation6 + $0x60] sm:$0xff]
          %v451 = vld [vmem:[#allocation6 + $0x68] sm:$0xff]
          %v452 = vld [vmem:[#allocation6 + $0x70] sm:$0xff]
          %v453 = vld [vmem:[#allocation6 + $0x78] sm:$0xff]
          %v454 = vld [vmem:[#allocation6 + $0x80] sm:$0xff]
          %v455 = vld [vmem:[#allocation6 + $0x88] sm:$0xff]
          %v456 = vld [vmem:[#allocation6 + $0x90] sm:$0xff]
          %v457 = vld [vmem:[#allocation6 + $0x98] sm:$0xff]
          %v458 = vld [vmem:[#allocation6 + $0xa0] sm:$0xff]
          %v459 = vld [vmem:[#allocation6 + $0xa8] sm:$0xff]
          %v460 = vld [vmem:[#allocation6 + $0xb0] sm:$0xff]
          %v461 = vld [vmem:[#allocation6 + $0xb8] sm:$0xff]
          %v462 = vld [vmem:[#allocation6 + $0xc0] sm:$0xff]
          %v463 = vld [vmem:[#allocation6 + $0xc8] sm:$0xff]
          %v464 = vld [vmem:[#allocation6 + $0xd0] sm:$0xff]
          %v465 = vld [vmem:[#allocation6 + $0xd8] sm:$0xff]
          %v466 = vld [vmem:[#allocation6 + $0xe0] sm:$0xff]
          %v467 = vld [vmem:[#allocation6 + $0xe8] sm:$0xff]
          %v468 = vld [vmem:[#allocation6 + $0xf0] sm:$0xff]
          %v469 = vld [vmem:[#allocation6 + $0xf8] sm:$0xff]
          %v470 = vld [vmem:[#allocation6 + $0x100] sm:$0xff]
          %v471 = vld [vmem:[#allocation6 + $0x108] sm:$0xff]
          %v472 = vld [vmem:[#allocation6 + $0x110] sm:$0xff]
          %v473 = vld [vmem:[#allocation6 + $0x118] sm:$0xff]
          %v474 = vld [vmem:[#allocation6 + $0x120] sm:$0xff]
          %v475 = vld [vmem:[#allocation6 + $0x128] sm:$0xff]
          %v476 = vld [vmem:[#allocation6 + $0x130] sm:$0xff]
          %v477 = vld [vmem:[#allocation6 + $0x138] sm:$0xff]
          %v478 = vld [vmem:[#allocation6 + $0x140] sm:$0xff]
          %v479 = vld [vmem:[#allocation6 + $0x148] sm:$0xff]
          %v480 = vld [vmem:[#allocation6 + $0x150] sm:$0xff]
          %v481 = vld [vmem:[#allocation6 + $0x158] sm:$0xff]
          %v482 = vld [vmem:[#allocation6 + $0x160] sm:$0xff]
          %v483 = vld [vmem:[#allocation6 + $0x168] sm:$0xff]
          %v484 = vld [vmem:[#allocation6 + $0x170] sm:$0xff]
          %v485 = vld [vmem:[#allocation6 + $0x178] sm:$0xff]
          %v486 = vld [vmem:[#allocation6 + $0x180] sm:$0xff]
          %v487 = vld [vmem:[#allocation6 + $0x188] sm:$0xff]
          %v488 = vld [vmem:[#allocation6 + $0x190] sm:$0xff]
          %v489 = vld [vmem:[#allocation6 + $0x198] sm:$0xff]
          %v490 = vld [vmem:[#allocation6 + $0x1a0] sm:$0xff]
          %v491 = vld [vmem:[#allocation6 + $0x1a8] sm:$0xff]
          %v492 = vld [vmem:[#allocation6 + $0x1b0] sm:$0xff]
          %v493 = vld [vmem:[#allocation6 + $0x1b8] sm:$0xff]
          %v494 = vld [vmem:[#allocation6 + $0x1c0] sm:$0xff]
          %v495 = vld [vmem:[#allocation6 + $0x1c8] sm:$0xff]
          %v496 = vld [vmem:[#allocation6 + $0x1d0] sm:$0xff]
          %v497 = vld [vmem:[#allocation6 + $0x1d8] sm:$0xff]
          %v498 = vld [vmem:[#allocation6 + $0x1e0] sm:$0xff]
          %v499 = vld [vmem:[#allocation6 + $0x1e8] sm:$0xff]
          %v500 = vld [vmem:[#allocation6 + $0x1f0] sm:$0xff]
          %v501 = vld [vmem:[#allocation6 + $0x1f8] sm:$0xff]
          %v502 = vld [vmem:[#allocation8] sm:$0xff]
          %v504 = vperm.slane %v502, 0
          %v505 = vperm.slane %v502, 1
          %v506 = vperm.slane %v502, 2
          %v507 = vperm.slane %v502, 3
          %v508 = vperm.slane %v502, 4
          %v509 = vperm.slane %v502, 5
          %v510 = vperm.slane %v502, 6
          %v511 = vperm.slane %v502, 7
          %v584 = vunpack.c.l.b16 %v438
          %v585 = vunpack.c.h.b16 %v438
          %v586 = vunpack.c.l.b16 %v439
          %v587 = vunpack.c.h.b16 %v439
          %v588 = vunpack.c.l.b16 %v440
          %v589 = vunpack.c.h.b16 %v440
          %v590 = vunpack.c.l.b16 %v441
          %v591 = vunpack.c.h.b16 %v441
          %v592 = vunpack.c.l.b16 %v442
          %v593 = vunpack.c.h.b16 %v442
          %v594 = vunpack.c.l.b16 %v443
          %v595 = vunpack.c.h.b16 %v443
          %v596 = vunpack.c.l.b16 %v444
          %v597 = vunpack.c.h.b16 %v444
          %v598 = vunpack.c.l.b16 %v445
          %v599 = vunpack.c.h.b16 %v445
          %v600 = vunpack.c.l.b16 %v446
          %v601 = vunpack.c.h.b16 %v446
          %v602 = vunpack.c.l.b16 %v447
          %v603 = vunpack.c.h.b16 %v447
          %v604 = vunpack.c.l.b16 %v448
          %v605 = vunpack.c.h.b16 %v448
          %v606 = vunpack.c.l.b16 %v449
          %v607 = vunpack.c.h.b16 %v449
          %v608 = vunpack.c.l.b16 %v450
          %v609 = vunpack.c.h.b16 %v450
          %v610 = vunpack.c.l.b16 %v451
          %v611 = vunpack.c.h.b16 %v451
          %v612 = vunpack.c.l.b16 %v452
          %v613 = vunpack.c.h.b16 %v452
          %v614 = vunpack.c.l.b16 %v453
          %v615 = vunpack.c.h.b16 %v453
          %v616 = vunpack.c.l.b16 %v454
          %v617 = vunpack.c.h.b16 %v454
          %v618 = vunpack.c.l.b16 %v455
          %v619 = vunpack.c.h.b16 %v455
          %v620 = vunpack.c.l.b16 %v456
          %v621 = vunpack.c.h.b16 %v456
          %v622 = vunpack.c.l.b16 %v457
          %v623 = vunpack.c.h.b16 %v457
          %v624 = vunpack.c.l.b16 %v458
          %v625 = vunpack.c.h.b16 %v458
          %v626 = vunpack.c.l.b16 %v459
          %v627 = vunpack.c.h.b16 %v459
          %v628 = vunpack.c.l.b16 %v460
          %v629 = vunpack.c.h.b16 %v460
          %v630 = vunpack.c.l.b16 %v461
          %v631 = vunpack.c.h.b16 %v461
          %v632 = vunpack.c.l.b16 %v462
          %v633 = vunpack.c.h.b16 %v462
          %v634 = vunpack.c.l.b16 %v463
          %v635 = vunpack.c.h.b16 %v463
          %v636 = vunpack.c.l.b16 %v464
          %v637 = vunpack.c.h.b16 %v464
          %v638 = vunpack.c.l.b16 %v465
          %v639 = vunpack.c.h.b16 %v465
          %v640 = vunpack.c.l.b16 %v466
          %v641 = vunpack.c.h.b16 %v466
          %v642 = vunpack.c.l.b16 %v467
          %v643 = vunpack.c.h.b16 %v467
          %v644 = vunpack.c.l.b16 %v468
          %v645 = vunpack.c.h.b16 %v468
          %v646 = vunpack.c.l.b16 %v469
          %v647 = vunpack.c.h.b16 %v469
          %v648 = vunpack.c.l.b16 %v470
          %v649 = vunpack.c.h.b16 %v470
          %v650 = vunpack.c.l.b16 %v471
          %v651 = vunpack.c.h.b16 %v471
          %v652 = vunpack.c.l.b16 %v472
          %v653 = vunpack.c.h.b16 %v472
          %v654 = vunpack.c.l.b16 %v473
          %v655 = vunpack.c.h.b16 %v473
          %v656 = vunpack.c.l.b16 %v474
          %v657 = vunpack.c.h.b16 %v474
          %v658 = vunpack.c.l.b16 %v475
          %v659 = vunpack.c.h.b16 %v475
          %v660 = vunpack.c.l.b16 %v476
          %v661 = vunpack.c.h.b16 %v476
          %v662 = vunpack.c.l.b16 %v477
          %v663 = vunpack.c.h.b16 %v477
          %v664 = vunpack.c.l.b16 %v478
          %v665 = vunpack.c.h.b16 %v478
          %v666 = vunpack.c.l.b16 %v479
          %v667 = vunpack.c.h.b16 %v479
          %v668 = vunpack.c.l.b16 %v480
          %v669 = vunpack.c.h.b16 %v480
          %v670 = vunpack.c.l.b16 %v481
          %v671 = vunpack.c.h.b16 %v481
          %v672 = vunpack.c.l.b16 %v482
          %v673 = vunpack.c.h.b16 %v482
          %v674 = vunpack.c.l.b16 %v483
          %v675 = vunpack.c.h.b16 %v483
          %v676 = vunpack.c.l.b16 %v484
          %v677 = vunpack.c.h.b16 %v484
          %v678 = vunpack.c.l.b16 %v485
          %v679 = vunpack.c.h.b16 %v485
          %v680 = vunpack.c.l.b16 %v486
          %v681 = vunpack.c.h.b16 %v486
          %v682 = vunpack.c.l.b16 %v487
          %v683 = vunpack.c.h.b16 %v487
          %v684 = vunpack.c.l.b16 %v488
          %v685 = vunpack.c.h.b16 %v488
          %v686 = vunpack.c.l.b16 %v489
          %v687 = vunpack.c.h.b16 %v489
          %v688 = vunpack.c.l.b16 %v490
          %v689 = vunpack.c.h.b16 %v490
          %v690 = vunpack.c.l.b16 %v491
          %v691 = vunpack.c.h.b16 %v491
          %v692 = vunpack.c.l.b16 %v492
          %v693 = vunpack.c.h.b16 %v492
          %v694 = vunpack.c.l.b16 %v493
          %v695 = vunpack.c.h.b16 %v493
          %v696 = vunpack.c.l.b16 %v494
          %v697 = vunpack.c.h.b16 %v494
          %v698 = vunpack.c.l.b16 %v495
          %v699 = vunpack.c.h.b16 %v495
          %v700 = vunpack.c.l.b16 %v496
          %v701 = vunpack.c.h.b16 %v496
          %v702 = vunpack.c.l.b16 %v497
          %v703 = vunpack.c.h.b16 %v497
          %v704 = vunpack.c.l.b16 %v498
          %v705 = vunpack.c.h.b16 %v498
          %v706 = vunpack.c.l.b16 %v499
          %v707 = vunpack.c.h.b16 %v499
          %v708 = vunpack.c.l.b16 %v500
          %v709 = vunpack.c.h.b16 %v500
          %v710 = vunpack.c.l.b16 %v501
          %v711 = vunpack.c.h.b16 %v501
          %v712 = vpack.c.b16 %v592, %v584
          %v713 = vpack.c.b16 %v593, %v585
          %v714 = vpack.c.b16 %v594, %v586
          %v715 = vpack.c.b16 %v595, %v587
          %v716 = vpack.c.b16 %v596, %v588
          %v717 = vpack.c.b16 %v597, %v589
          %v718 = vpack.c.b16 %v598, %v590
          %v719 = vpack.c.b16 %v599, %v591
          %v720 = vpack.c.b16 %v608, %v600
          %v721 = vpack.c.b16 %v609, %v601
          %v722 = vpack.c.b16 %v610, %v602
          %v723 = vpack.c.b16 %v611, %v603
          %v724 = vpack.c.b16 %v612, %v604
          %v725 = vpack.c.b16 %v613, %v605
          %v726 = vpack.c.b16 %v614, %v606
          %v727 = vpack.c.b16 %v615, %v607
          %v728 = vpack.c.b16 %v624, %v616
          %v729 = vpack.c.b16 %v625, %v617
          %v730 = vpack.c.b16 %v626, %v618
          %v731 = vpack.c.b16 %v627, %v619
          %v732 = vpack.c.b16 %v628, %v620
          %v733 = vpack.c.b16 %v629, %v621
          %v734 = vpack.c.b16 %v630, %v622
          %v735 = vpack.c.b16 %v631, %v623
          %v736 = vpack.c.b16 %v640, %v632
          %v737 = vpack.c.b16 %v641, %v633
          %v738 = vpack.c.b16 %v642, %v634
          %v739 = vpack.c.b16 %v643, %v635
          %v740 = vpack.c.b16 %v644, %v636
          %v741 = vpack.c.b16 %v645, %v637
          %v742 = vpack.c.b16 %v646, %v638
          %v743 = vpack.c.b16 %v647, %v639
          %v744 = vpack.c.b16 %v656, %v648
          %v745 = vpack.c.b16 %v657, %v649
          %v746 = vpack.c.b16 %v658, %v650
          %v747 = vpack.c.b16 %v659, %v651
          %v748 = vpack.c.b16 %v660, %v652
          %v749 = vpack.c.b16 %v661, %v653
          %v750 = vpack.c.b16 %v662, %v654
          %v751 = vpack.c.b16 %v663, %v655
          %v752 = vpack.c.b16 %v672, %v664
          %v753 = vpack.c.b16 %v673, %v665
          %v754 = vpack.c.b16 %v674, %v666
          %v755 = vpack.c.b16 %v675, %v667
          %v756 = vpack.c.b16 %v676, %v668
          %v757 = vpack.c.b16 %v677, %v669
          %v758 = vpack.c.b16 %v678, %v670
          %v759 = vpack.c.b16 %v679, %v671
          %v760 = vpack.c.b16 %v688, %v680
          %v761 = vpack.c.b16 %v689, %v681
          %v762 = vpack.c.b16 %v690, %v682
          %v763 = vpack.c.b16 %v691, %v683
          %v764 = vpack.c.b16 %v692, %v684
          %v765 = vpack.c.b16 %v693, %v685
          %v766 = vpack.c.b16 %v694, %v686
          %v767 = vpack.c.b16 %v695, %v687
          %v768 = vpack.c.b16 %v704, %v696
          %v769 = vpack.c.b16 %v705, %v697
          %v770 = vpack.c.b16 %v706, %v698
          %v771 = vpack.c.b16 %v707, %v699
          %v772 = vpack.c.b16 %v708, %v700
          %v773 = vpack.c.b16 %v709, %v701
          %v774 = vpack.c.b16 %v710, %v702
          %v775 = vpack.c.b16 %v711, %v703
          %840 = vmatpush.bf16.msra.mxu0 %v768
          %841 = vmatpush.bf16.msra.mxu0 %v760
          %842 = vmatpush.bf16.msra.mxu0 %v752
          %843 = vmatpush.bf16.msra.mxu0 %v744
          %844 = vmatpush.bf16.msra.mxu0 %v736
          %845 = vmatpush.bf16.msra.mxu0 %v728
          %846 = vmatpush.bf16.msra.mxu0 %v720
          %847 = vmatpush.bf16.msra.mxu0 %v712
          %848 = vmatmul.bf16.gmra.mxu0 %v437
          %v849 = vpop.f32.mrf.mxu0
          %v850 = vadd.f32 %v504, %v849
          %v851 = vpop.f32.mrf.mxu0
          %852 = vdwg.mxu0
          %853 = vmatpush.bf16.msra.mxu0 %v769
          %854 = vmatpush.bf16.msra.mxu0 %v761
          %855 = vmatpush.bf16.msra.mxu0 %v753
          %856 = vmatpush.bf16.msra.mxu0 %v745
          %857 = vmatpush.bf16.msra.mxu0 %v737
          %858 = vmatpush.bf16.msra.mxu0 %v729
          %859 = vmatpush.bf16.msra.mxu0 %v721
          %860 = vmatpush.bf16.msra.mxu0 %v713
          %861 = vmatmul.bf16.gmra.mxu0 %v437
          %v862 = vpop.f32.mrf.mxu0
          %v863 = vadd.f32 %v505, %v862
          %v864 = vpop.f32.mrf.mxu0
          %865 = vdwg.mxu0
          %866 = vmatpush.bf16.msra.mxu0 %v770
          %867 = vmatpush.bf16.msra.mxu0 %v762
          %868 = vmatpush.bf16.msra.mxu0 %v754
          %869 = vmatpush.bf16.msra.mxu0 %v746
          %870 = vmatpush.bf16.msra.mxu0 %v738
          %871 = vmatpush.bf16.msra.mxu0 %v730
          %872 = vmatpush.bf16.msra.mxu0 %v722
          %873 = vmatpush.bf16.msra.mxu0 %v714
          %874 = vmatmul.bf16.gmra.mxu0 %v437
          %v875 = vpop.f32.mrf.mxu0
          %v876 = vadd.f32 %v506, %v875
          %v877 = vpop.f32.mrf.mxu0
          %878 = vdwg.mxu0
          %879 = vmatpush.bf16.msra.mxu0 %v771
          %880 = vmatpush.bf16.msra.mxu0 %v763
          %881 = vmatpush.bf16.msra.mxu0 %v755
          %882 = vmatpush.bf16.msra.mxu0 %v747
          %883 = vmatpush.bf16.msra.mxu0 %v739
          %884 = vmatpush.bf16.msra.mxu0 %v731
          %885 = vmatpush.bf16.msra.mxu0 %v723
          %886 = vmatpush.bf16.msra.mxu0 %v715
          %887 = vmatmul.bf16.gmra.mxu0 %v437
          %v888 = vpop.f32.mrf.mxu0
          %v889 = vadd.f32 %v507, %v888
          %v890 = vpop.f32.mrf.mxu0
          %891 = vdwg.mxu0
          %892 = vmatpush.bf16.msra.mxu0 %v772
          %893 = vmatpush.bf16.msra.mxu0 %v764
          %894 = vmatpush.bf16.msra.mxu0 %v756
          %895 = vmatpush.bf16.msra.mxu0 %v748
          %896 = vmatpush.bf16.msra.mxu0 %v740
          %897 = vmatpush.bf16.msra.mxu0 %v732
          %898 = vmatpush.bf16.msra.mxu0 %v724
          %899 = vmatpush.bf16.msra.mxu0 %v716
          %900 = vmatmul.bf16.gmra.mxu0 %v437
          %v901 = vpop.f32.mrf.mxu0
          %v902 = vadd.f32 %v508, %v901
          %v903 = vpop.f32.mrf.mxu0
          %904 = vdwg.mxu0
          %905 = vmatpush.bf16.msra.mxu0 %v773
          %906 = vmatpush.bf16.msra.mxu0 %v765
          %907 = vmatpush.bf16.msra.mxu0 %v757
          %908 = vmatpush.bf16.msra.mxu0 %v749
          %909 = vmatpush.bf16.msra.mxu0 %v741
          %910 = vmatpush.bf16.msra.mxu0 %v733
          %911 = vmatpush.bf16.msra.mxu0 %v725
          %912 = vmatpush.bf16.msra.mxu0 %v717
          %913 = vmatmul.bf16.gmra.mxu0 %v437
          %v914 = vpop.f32.mrf.mxu0
          %v915 = vadd.f32 %v509, %v914
          %v916 = vpop.f32.mrf.mxu0
          %917 = vdwg.mxu0
          %918 = vmatpush.bf16.msra.mxu0 %v774
          %919 = vmatpush.bf16.msra.mxu0 %v766
          %920 = vmatpush.bf16.msra.mxu0 %v758
          %921 = vmatpush.bf16.msra.mxu0 %v750
          %922 = vmatpush.bf16.msra.mxu0 %v742
          %923 = vmatpush.bf16.msra.mxu0 %v734
          %924 = vmatpush.bf16.msra.mxu0 %v726
          %925 = vmatpush.bf16.msra.mxu0 %v718
          %926 = vmatmul.bf16.gmra.mxu0 %v437
          %v927 = vpop.f32.mrf.mxu0
          %v928 = vadd.f32 %v510, %v927
          %v929 = vpop.f32.mrf.mxu0
          %930 = vdwg.mxu0
          %931 = vmatpush.bf16.msra.mxu0 %v775
          %932 = vmatpush.bf16.msra.mxu0 %v767
          %933 = vmatpush.bf16.msra.mxu0 %v759
          %934 = vmatpush.bf16.msra.mxu0 %v751
          %935 = vmatpush.bf16.msra.mxu0 %v743
          %936 = vmatpush.bf16.msra.mxu0 %v735
          %937 = vmatpush.bf16.msra.mxu0 %v727
          %938 = vmatpush.bf16.msra.mxu0 %v719
          %939 = vmatmul.bf16.gmra.mxu0 %v437
          %v940 = vpop.f32.mrf.mxu0
          %v941 = vadd.f32 %v511, %v940
          %v942 = vpop.f32.mrf.mxu0
          %943 = vdwg.mxu0
          %v944 = vmax.f32 %v850, 0.0
          %v945 = vmax.f32 %v863, 0.0
          %v946 = vmax.f32 %v876, 0.0
          %v947 = vmax.f32 %v889, 0.0
          %v948 = vmax.f32 %v902, 0.0
          %v949 = vmax.f32 %v915, 0.0
          %v950 = vmax.f32 %v928, 0.0
          %v951 = vmax.f32 %v941, 0.0
          %v952 = vpack.c.bf16 %v945, %v944
          %v953 = vpack.c.bf16 %v947, %v946
          %v954 = vpack.c.bf16 %v949, %v948
          %v955 = vpack.c.bf16 %v951, %v950
          %s956 = smul.u32 %s33, 8
          %s957 = smul.addr %s956, 4
          %s958 = scalar_lea.vmem [#allocation2], %s957
          %959 = vst [vmem:[%s958] sm:$0xff] %v952
          %960 = vst [vmem:[%s958 + $0x8] sm:$0xff] %v953
          %961 = vst [vmem:[%s958 + $0x10] sm:$0xff] %v954
          %962 = vst [vmem:[%s958 + $0x18] sm:$0xff] %v955
        $region76: #{tpu_custom_call.1} parent=47 // pred_fallthru
          _
        %s963 = smul.u32 %s33, 8
        %s964 = smul.addr %s963, 4
        %s965 = scalar_lea.vmem [#allocation2], %s964
        %v966 = vld [vmem:[%s965] sm:$0xff]
        %v967 = vld [vmem:[%s965 + $0x8] sm:$0xff]
        %v968 = vld [vmem:[%s965 + $0x10] sm:$0xff]
        %v969 = vld [vmem:[%s965 + $0x18] sm:$0xff]
        %v970 = vld [vmem:[%s374] sm:$0xff]
        %v971 = vld [vmem:[%s374 + $0x8] sm:$0xff]
        %v972 = vld [vmem:[%s374 + $0x10] sm:$0xff]
        %v973 = vld [vmem:[%s374 + $0x18] sm:$0xff]
        %v974 = vld [vmem:[%s374 + $0x20] sm:$0xff]
        %v975 = vld [vmem:[%s374 + $0x28] sm:$0xff]
        %v976 = vld [vmem:[%s374 + $0x30] sm:$0xff]
        %v977 = vld [vmem:[%s374 + $0x38] sm:$0xff]
        %v978 = vld [vmem:[%s374 + $0x40] sm:$0xff]
        %v979 = vld [vmem:[%s374 + $0x48] sm:$0xff]
        %v980 = vld [vmem:[%s374 + $0x50] sm:$0xff]
        %v981 = vld [vmem:[%s374 + $0x58] sm:$0xff]
        %v982 = vld [vmem:[%s374 + $0x60] sm:$0xff]
        %v983 = vld [vmem:[%s374 + $0x68] sm:$0xff]
        %v984 = vld [vmem:[%s374 + $0x70] sm:$0xff]
        %v985 = vld [vmem:[%s374 + $0x78] sm:$0xff]
        %v986 = vld [vmem:[%s374 + $0x80] sm:$0xff]
        %v987 = vld [vmem:[%s374 + $0x88] sm:$0xff]
        %v988 = vld [vmem:[%s374 + $0x90] sm:$0xff]
        %v989 = vld [vmem:[%s374 + $0x98] sm:$0xff]
        %v990 = vld [vmem:[%s374 + $0xa0] sm:$0xff]
        %v991 = vld [vmem:[%s374 + $0xa8] sm:$0xff]
        %v992 = vld [vmem:[%s374 + $0xb0] sm:$0xff]
        %v993 = vld [vmem:[%s374 + $0xb8] sm:$0xff]
        %v994 = vld [vmem:[%s374 + $0xc0] sm:$0xff]
        %v995 = vld [vmem:[%s374 + $0xc8] sm:$0xff]
        %v996 = vld [vmem:[%s374 + $0xd0] sm:$0xff]
        %v997 = vld [vmem:[%s374 + $0xd8] sm:$0xff]
        %v998 = vld [vmem:[%s374 + $0xe0] sm:$0xff]
        %v999 = vld [vmem:[%s374 + $0xe8] sm:$0xff]
        %v1000 = vld [vmem:[%s374 + $0xf0] sm:$0xff]
        %v1001 = vld [vmem:[%s374 + $0xf8] sm:$0xff]
        %v1002 = vld [vmem:[%s374 + $0x100] sm:$0xff]
        %v1003 = vld [vmem:[%s374 + $0x108] sm:$0xff]
        %v1004 = vld [vmem:[%s374 + $0x110] sm:$0xff]
        %v1005 = vld [vmem:[%s374 + $0x118] sm:$0xff]
        %v1006 = vld [vmem:[%s374 + $0x120] sm:$0xff]
        %v1007 = vld [vmem:[%s374 + $0x128] sm:$0xff]
        %v1008 = vld [vmem:[%s374 + $0x130] sm:$0xff]
        %v1009 = vld [vmem:[%s374 + $0x138] sm:$0xff]
        %v1010 = vld [vmem:[%s374 + $0x140] sm:$0xff]
        %v1011 = vld [vmem:[%s374 + $0x148] sm:$0xff]
        %v1012 = vld [vmem:[%s374 + $0x150] sm:$0xff]
        %v1013 = vld [vmem:[%s374 + $0x158] sm:$0xff]
        %v1014 = vld [vmem:[%s374 + $0x160] sm:$0xff]
        %v1015 = vld [vmem:[%s374 + $0x168] sm:$0xff]
        %v1016 = vld [vmem:[%s374 + $0x170] sm:$0xff]
        %v1017 = vld [vmem:[%s374 + $0x178] sm:$0xff]
        %v1018 = vld [vmem:[%s374 + $0x180] sm:$0xff]
        %v1019 = vld [vmem:[%s374 + $0x188] sm:$0xff]
        %v1020 = vld [vmem:[%s374 + $0x190] sm:$0xff]
        %v1021 = vld [vmem:[%s374 + $0x198] sm:$0xff]
        %v1022 = vld [vmem:[%s374 + $0x1a0] sm:$0xff]
        %v1023 = vld [vmem:[%s374 + $0x1a8] sm:$0xff]
        %v1024 = vld [vmem:[%s374 + $0x1b0] sm:$0xff]
        %v1025 = vld [vmem:[%s374 + $0x1b8] sm:$0xff]
        %v1026 = vld [vmem:[%s374 + $0x1c0] sm:$0xff]
        %v1027 = vld [vmem:[%s374 + $0x1c8] sm:$0xff]
        %v1028 = vld [vmem:[%s374 + $0x1d0] sm:$0xff]
        %v1029 = vld [vmem:[%s374 + $0x1d8] sm:$0xff]
        %v1030 = vld [vmem:[%s374 + $0x1e0] sm:$0xff]
        %v1031 = vld [vmem:[%s374 + $0x1e8] sm:$0xff]
        %v1032 = vld [vmem:[%s374 + $0x1f0] sm:$0xff]
        %v1033 = vld [vmem:[%s374 + $0x1f8] sm:$0xff]
        %v1034 = vld [vmem:[%s374 + $0x200] sm:$0xff]
        %v1035 = vld [vmem:[%s374 + $0x208] sm:$0xff]
        %v1036 = vld [vmem:[%s374 + $0x210] sm:$0xff]
        %v1037 = vld [vmem:[%s374 + $0x218] sm:$0xff]
        %v1038 = vld [vmem:[%s374 + $0x220] sm:$0xff]
        %v1039 = vld [vmem:[%s374 + $0x228] sm:$0xff]
        %v1040 = vld [vmem:[%s374 + $0x230] sm:$0xff]
        %v1041 = vld [vmem:[%s374 + $0x238] sm:$0xff]
        %v1042 = vld [vmem:[%s374 + $0x240] sm:$0xff]
        %v1043 = vld [vmem:[%s374 + $0x248] sm:$0xff]
        %v1044 = vld [vmem:[%s374 + $0x250] sm:$0xff]
        %v1045 = vld [vmem:[%s374 + $0x258] sm:$0xff]
        %v1046 = vld [vmem:[%s374 + $0x260] sm:$0xff]
        %v1047 = vld [vmem:[%s374 + $0x268] sm:$0xff]
        %v1048 = vld [vmem:[%s374 + $0x270] sm:$0xff]
        %v1049 = vld [vmem:[%s374 + $0x278] sm:$0xff]
        %v1050 = vld [vmem:[%s374 + $0x280] sm:$0xff]
        %v1051 = vld [vmem:[%s374 + $0x288] sm:$0xff]
        %v1052 = vld [vmem:[%s374 + $0x290] sm:$0xff]
        %v1053 = vld [vmem:[%s374 + $0x298] sm:$0xff]
        %v1054 = vld [vmem:[%s374 + $0x2a0] sm:$0xff]
        %v1055 = vld [vmem:[%s374 + $0x2a8] sm:$0xff]
        %v1056 = vld [vmem:[%s374 + $0x2b0] sm:$0xff]
        %v1057 = vld [vmem:[%s374 + $0x2b8] sm:$0xff]
        %v1058 = vld [vmem:[%s374 + $0x2c0] sm:$0xff]
        %v1059 = vld [vmem:[%s374 + $0x2c8] sm:$0xff]
        %v1060 = vld [vmem:[%s374 + $0x2d0] sm:$0xff]
        %v1061 = vld [vmem:[%s374 + $0x2d8] sm:$0xff]
        %v1062 = vld [vmem:[%s374 + $0x2e0] sm:$0xff]
        %v1063 = vld [vmem:[%s374 + $0x2e8] sm:$0xff]
        %v1064 = vld [vmem:[%s374 + $0x2f0] sm:$0xff]
        %v1065 = vld [vmem:[%s374 + $0x2f8] sm:$0xff]
        %v1066 = vld [vmem:[%s374 + $0x300] sm:$0xff]
        %v1067 = vld [vmem:[%s374 + $0x308] sm:$0xff]
        %v1068 = vld [vmem:[%s374 + $0x310] sm:$0xff]
        %v1069 = vld [vmem:[%s374 + $0x318] sm:$0xff]
        %v1070 = vld [vmem:[%s374 + $0x320] sm:$0xff]
        %v1071 = vld [vmem:[%s374 + $0x328] sm:$0xff]
        %v1072 = vld [vmem:[%s374 + $0x330] sm:$0xff]
        %v1073 = vld [vmem:[%s374 + $0x338] sm:$0xff]
        %v1074 = vld [vmem:[%s374 + $0x340] sm:$0xff]
        %v1075 = vld [vmem:[%s374 + $0x348] sm:$0xff]
        %v1076 = vld [vmem:[%s374 + $0x350] sm:$0xff]
        %v1077 = vld [vmem:[%s374 + $0x358] sm:$0xff]
        %v1078 = vld [vmem:[%s374 + $0x360] sm:$0xff]
        %v1079 = vld [vmem:[%s374 + $0x368] sm:$0xff]
        %v1080 = vld [vmem:[%s374 + $0x370] sm:$0xff]
        %v1081 = vld [vmem:[%s374 + $0x378] sm:$0xff]
        %v1082 = vld [vmem:[%s374 + $0x380] sm:$0xff]
        %v1083 = vld [vmem:[%s374 + $0x388] sm:$0xff]
        %v1084 = vld [vmem:[%s374 + $0x390] sm:$0xff]
        %v1085 = vld [vmem:[%s374 + $0x398] sm:$0xff]
        %v1086 = vld [vmem:[%s374 + $0x3a0] sm:$0xff]
        %v1087 = vld [vmem:[%s374 + $0x3a8] sm:$0xff]
        %v1088 = vld [vmem:[%s374 + $0x3b0] sm:$0xff]
        %v1089 = vld [vmem:[%s374 + $0x3b8] sm:$0xff]
        %v1090 = vld [vmem:[%s374 + $0x3c0] sm:$0xff]
        %v1091 = vld [vmem:[%s374 + $0x3c8] sm:$0xff]
        %v1092 = vld [vmem:[%s374 + $0x3d0] sm:$0xff]
        %v1093 = vld [vmem:[%s374 + $0x3d8] sm:$0xff]
        %v1094 = vld [vmem:[%s374 + $0x3e0] sm:$0xff]
        %v1095 = vld [vmem:[%s374 + $0x3e8] sm:$0xff]
        %v1096 = vld [vmem:[%s374 + $0x3f0] sm:$0xff]
        %v1097 = vld [vmem:[%s374 + $0x3f8] sm:$0xff]
        %v1098 = vld [vmem:[%s374 + $0x400] sm:$0xff]
        %v1099 = vld [vmem:[%s374 + $0x408] sm:$0xff]
        %v1100 = vld [vmem:[%s374 + $0x410] sm:$0xff]
        %v1101 = vld [vmem:[%s374 + $0x418] sm:$0xff]
        %v1102 = vld [vmem:[%s374 + $0x420] sm:$0xff]
        %v1103 = vld [vmem:[%s374 + $0x428] sm:$0xff]
        %v1104 = vld [vmem:[%s374 + $0x430] sm:$0xff]
        %v1105 = vld [vmem:[%s374 + $0x438] sm:$0xff]
        %v1106 = vld [vmem:[%s374 + $0x440] sm:$0xff]
        %v1107 = vld [vmem:[%s374 + $0x448] sm:$0xff]
        %v1108 = vld [vmem:[%s374 + $0x450] sm:$0xff]
        %v1109 = vld [vmem:[%s374 + $0x458] sm:$0xff]
        %v1110 = vld [vmem:[%s374 + $0x460] sm:$0xff]
        %v1111 = vld [vmem:[%s374 + $0x468] sm:$0xff]
        %v1112 = vld [vmem:[%s374 + $0x470] sm:$0xff]
        %v1113 = vld [vmem:[%s374 + $0x478] sm:$0xff]
        %v1114 = vld [vmem:[%s374 + $0x480] sm:$0xff]
        %v1115 = vld [vmem:[%s374 + $0x488] sm:$0xff]
        %v1116 = vld [vmem:[%s374 + $0x490] sm:$0xff]
        %v1117 = vld [vmem:[%s374 + $0x498] sm:$0xff]
        %v1118 = vld [vmem:[%s374 + $0x4a0] sm:$0xff]
        %v1119 = vld [vmem:[%s374 + $0x4a8] sm:$0xff]
        %v1120 = vld [vmem:[%s374 + $0x4b0] sm:$0xff]
        %v1121 = vld [vmem:[%s374 + $0x4b8] sm:$0xff]
        %v1122 = vld [vmem:[%s374 + $0x4c0] sm:$0xff]
        %v1123 = vld [vmem:[%s374 + $0x4c8] sm:$0xff]
        %v1124 = vld [vmem:[%s374 + $0x4d0] sm:$0xff]
        %v1125 = vld [vmem:[%s374 + $0x4d8] sm:$0xff]
        %v1126 = vld [vmem:[%s374 + $0x4e0] sm:$0xff]
        %v1127 = vld [vmem:[%s374 + $0x4e8] sm:$0xff]
        %v1128 = vld [vmem:[%s374 + $0x4f0] sm:$0xff]
        %v1129 = vld [vmem:[%s374 + $0x4f8] sm:$0xff]
        %v1130 = vld [vmem:[%s374 + $0x500] sm:$0xff]
        %v1131 = vld [vmem:[%s374 + $0x508] sm:$0xff]
        %v1132 = vld [vmem:[%s374 + $0x510] sm:$0xff]
        %v1133 = vld [vmem:[%s374 + $0x518] sm:$0xff]
        %v1134 = vld [vmem:[%s374 + $0x520] sm:$0xff]
        %v1135 = vld [vmem:[%s374 + $0x528] sm:$0xff]
        %v1136 = vld [vmem:[%s374 + $0x530] sm:$0xff]
        %v1137 = vld [vmem:[%s374 + $0x538] sm:$0xff]
        %v1138 = vld [vmem:[%s374 + $0x540] sm:$0xff]
        %v1139 = vld [vmem:[%s374 + $0x548] sm:$0xff]
        %v1140 = vld [vmem:[%s374 + $0x550] sm:$0xff]
        %v1141 = vld [vmem:[%s374 + $0x558] sm:$0xff]
        %v1142 = vld [vmem:[%s374 + $0x560] sm:$0xff]
        %v1143 = vld [vmem:[%s374 + $0x568] sm:$0xff]
        %v1144 = vld [vmem:[%s374 + $0x570] sm:$0xff]
        %v1145 = vld [vmem:[%s374 + $0x578] sm:$0xff]
        %v1146 = vld [vmem:[%s374 + $0x580] sm:$0xff]
        %v1147 = vld [vmem:[%s374 + $0x588] sm:$0xff]
        %v1148 = vld [vmem:[%s374 + $0x590] sm:$0xff]
        %v1149 = vld [vmem:[%s374 + $0x598] sm:$0xff]
        %v1150 = vld [vmem:[%s374 + $0x5a0] sm:$0xff]
        %v1151 = vld [vmem:[%s374 + $0x5a8] sm:$0xff]
        %v1152 = vld [vmem:[%s374 + $0x5b0] sm:$0xff]
        %v1153 = vld [vmem:[%s374 + $0x5b8] sm:$0xff]
        %v1154 = vld [vmem:[%s374 + $0x5c0] sm:$0xff]
        %v1155 = vld [vmem:[%s374 + $0x5c8] sm:$0xff]
        %v1156 = vld [vmem:[%s374 + $0x5d0] sm:$0xff]
        %v1157 = vld [vmem:[%s374 + $0x5d8] sm:$0xff]
        %v1158 = vld [vmem:[%s374 + $0x5e0] sm:$0xff]
        %v1159 = vld [vmem:[%s374 + $0x5e8] sm:$0xff]
        %v1160 = vld [vmem:[%s374 + $0x5f0] sm:$0xff]
        %v1161 = vld [vmem:[%s374 + $0x5f8] sm:$0xff]
        %v1162 = vld [vmem:[%s374 + $0x600] sm:$0xff]
        %v1163 = vld [vmem:[%s374 + $0x608] sm:$0xff]
        %v1164 = vld [vmem:[%s374 + $0x610] sm:$0xff]
        %v1165 = vld [vmem:[%s374 + $0x618] sm:$0xff]
        %v1166 = vld [vmem:[%s374 + $0x620] sm:$0xff]
        %v1167 = vld [vmem:[%s374 + $0x628] sm:$0xff]
        %v1168 = vld [vmem:[%s374 + $0x630] sm:$0xff]
        %v1169 = vld [vmem:[%s374 + $0x638] sm:$0xff]
        %v1170 = vld [vmem:[%s374 + $0x640] sm:$0xff]
        %v1171 = vld [vmem:[%s374 + $0x648] sm:$0xff]
        %v1172 = vld [vmem:[%s374 + $0x650] sm:$0xff]
        %v1173 = vld [vmem:[%s374 + $0x658] sm:$0xff]
        %v1174 = vld [vmem:[%s374 + $0x660] sm:$0xff]
        %v1175 = vld [vmem:[%s374 + $0x668] sm:$0xff]
        %v1176 = vld [vmem:[%s374 + $0x670] sm:$0xff]
        %v1177 = vld [vmem:[%s374 + $0x678] sm:$0xff]
        %v1178 = vld [vmem:[%s374 + $0x680] sm:$0xff]
        %v1179 = vld [vmem:[%s374 + $0x688] sm:$0xff]
        %v1180 = vld [vmem:[%s374 + $0x690] sm:$0xff]
        %v1181 = vld [vmem:[%s374 + $0x698] sm:$0xff]
        %v1182 = vld [vmem:[%s374 + $0x6a0] sm:$0xff]
        %v1183 = vld [vmem:[%s374 + $0x6a8] sm:$0xff]
        %v1184 = vld [vmem:[%s374 + $0x6b0] sm:$0xff]
        %v1185 = vld [vmem:[%s374 + $0x6b8] sm:$0xff]
        %v1186 = vld [vmem:[%s374 + $0x6c0] sm:$0xff]
        %v1187 = vld [vmem:[%s374 + $0x6c8] sm:$0xff]
        %v1188 = vld [vmem:[%s374 + $0x6d0] sm:$0xff]
        %v1189 = vld [vmem:[%s374 + $0x6d8] sm:$0xff]
        %v1190 = vld [vmem:[%s374 + $0x6e0] sm:$0xff]
        %v1191 = vld [vmem:[%s374 + $0x6e8] sm:$0xff]
        %v1192 = vld [vmem:[%s374 + $0x6f0] sm:$0xff]
        %v1193 = vld [vmem:[%s374 + $0x6f8] sm:$0xff]
        %v1194 = vld [vmem:[%s374 + $0x700] sm:$0xff]
        %v1195 = vld [vmem:[%s374 + $0x708] sm:$0xff]
        %v1196 = vld [vmem:[%s374 + $0x710] sm:$0xff]
        %v1197 = vld [vmem:[%s374 + $0x718] sm:$0xff]
        %v1198 = vld [vmem:[%s374 + $0x720] sm:$0xff]
        %v1199 = vld [vmem:[%s374 + $0x728] sm:$0xff]
        %v1200 = vld [vmem:[%s374 + $0x730] sm:$0xff]
        %v1201 = vld [vmem:[%s374 + $0x738] sm:$0xff]
        %v1202 = vld [vmem:[%s374 + $0x740] sm:$0xff]
        %v1203 = vld [vmem:[%s374 + $0x748] sm:$0xff]
        %v1204 = vld [vmem:[%s374 + $0x750] sm:$0xff]
        %v1205 = vld [vmem:[%s374 + $0x758] sm:$0xff]
        %v1206 = vld [vmem:[%s374 + $0x760] sm:$0xff]
        %v1207 = vld [vmem:[%s374 + $0x768] sm:$0xff]
        %v1208 = vld [vmem:[%s374 + $0x770] sm:$0xff]
        %v1209 = vld [vmem:[%s374 + $0x778] sm:$0xff]
        %v1210 = vld [vmem:[%s374 + $0x780] sm:$0xff]
        %v1211 = vld [vmem:[%s374 + $0x788] sm:$0xff]
        %v1212 = vld [vmem:[%s374 + $0x790] sm:$0xff]
        %v1213 = vld [vmem:[%s374 + $0x798] sm:$0xff]
        %v1214 = vld [vmem:[%s374 + $0x7a0] sm:$0xff]
        %v1215 = vld [vmem:[%s374 + $0x7a8] sm:$0xff]
        %v1216 = vld [vmem:[%s374 + $0x7b0] sm:$0xff]
        %v1217 = vld [vmem:[%s374 + $0x7b8] sm:$0xff]
        %v1218 = vld [vmem:[%s374 + $0x7c0] sm:$0xff]
        %v1219 = vld [vmem:[%s374 + $0x7c8] sm:$0xff]
        %v1220 = vld [vmem:[%s374 + $0x7d0] sm:$0xff]
        %v1221 = vld [vmem:[%s374 + $0x7d8] sm:$0xff]
        %v1222 = vld [vmem:[%s374 + $0x7e0] sm:$0xff]
        %v1223 = vld [vmem:[%s374 + $0x7e8] sm:$0xff]
        %v1224 = vld [vmem:[%s374 + $0x7f0] sm:$0xff]
        %v1225 = vld [vmem:[%s374 + $0x7f8] sm:$0xff]
        %v1226 = vld [vmem:[%s374 + $0x800] sm:$0xff]
        %v1227 = vld [vmem:[%s374 + $0x808] sm:$0xff]
        %v1228 = vld [vmem:[%s374 + $0x810] sm:$0xff]
        %v1229 = vld [vmem:[%s374 + $0x818] sm:$0xff]
        %v1230 = vld [vmem:[%s374 + $0x820] sm:$0xff]
        %v1231 = vld [vmem:[%s374 + $0x828] sm:$0xff]
        %v1232 = vld [vmem:[%s374 + $0x830] sm:$0xff]
        %v1233 = vld [vmem:[%s374 + $0x838] sm:$0xff]
        %v1234 = vld [vmem:[%s374 + $0x840] sm:$0xff]
        %v1235 = vld [vmem:[%s374 + $0x848] sm:$0xff]
        %v1236 = vld [vmem:[%s374 + $0x850] sm:$0xff]
        %v1237 = vld [vmem:[%s374 + $0x858] sm:$0xff]
        %v1238 = vld [vmem:[%s374 + $0x860] sm:$0xff]
        %v1239 = vld [vmem:[%s374 + $0x868] sm:$0xff]
        %v1240 = vld [vmem:[%s374 + $0x870] sm:$0xff]
        %v1241 = vld [vmem:[%s374 + $0x878] sm:$0xff]
        %v1242 = vld [vmem:[%s374 + $0x880] sm:$0xff]
        %v1243 = vld [vmem:[%s374 + $0x888] sm:$0xff]
        %v1244 = vld [vmem:[%s374 + $0x890] sm:$0xff]
        %v1245 = vld [vmem:[%s374 + $0x898] sm:$0xff]
        %v1246 = vld [vmem:[%s374 + $0x8a0] sm:$0xff]
        %v1247 = vld [vmem:[%s374 + $0x8a8] sm:$0xff]
        %v1248 = vld [vmem:[%s374 + $0x8b0] sm:$0xff]
        %v1249 = vld [vmem:[%s374 + $0x8b8] sm:$0xff]
        %v1250 = vld [vmem:[%s374 + $0x8c0] sm:$0xff]
        %v1251 = vld [vmem:[%s374 + $0x8c8] sm:$0xff]
        %v1252 = vld [vmem:[%s374 + $0x8d0] sm:$0xff]
        %v1253 = vld [vmem:[%s374 + $0x8d8] sm:$0xff]
        %v1254 = vld [vmem:[%s374 + $0x8e0] sm:$0xff]
        %v1255 = vld [vmem:[%s374 + $0x8e8] sm:$0xff]
        %v1256 = vld [vmem:[%s374 + $0x8f0] sm:$0xff]
        %v1257 = vld [vmem:[%s374 + $0x8f8] sm:$0xff]
        %v1258 = vld [vmem:[%s374 + $0x900] sm:$0xff]
        %v1259 = vld [vmem:[%s374 + $0x908] sm:$0xff]
        %v1260 = vld [vmem:[%s374 + $0x910] sm:$0xff]
        %v1261 = vld [vmem:[%s374 + $0x918] sm:$0xff]
        %v1262 = vld [vmem:[%s374 + $0x920] sm:$0xff]
        %v1263 = vld [vmem:[%s374 + $0x928] sm:$0xff]
        %v1264 = vld [vmem:[%s374 + $0x930] sm:$0xff]
        %v1265 = vld [vmem:[%s374 + $0x938] sm:$0xff]
        %v1266 = vld [vmem:[%s374 + $0x940] sm:$0xff]
        %v1267 = vld [vmem:[%s374 + $0x948] sm:$0xff]
        %v1268 = vld [vmem:[%s374 + $0x950] sm:$0xff]
        %v1269 = vld [vmem:[%s374 + $0x958] sm:$0xff]
        %v1270 = vld [vmem:[%s374 + $0x960] sm:$0xff]
        %v1271 = vld [vmem:[%s374 + $0x968] sm:$0xff]
        %v1272 = vld [vmem:[%s374 + $0x970] sm:$0xff]
        %v1273 = vld [vmem:[%s374 + $0x978] sm:$0xff]
        %v1274 = vld [vmem:[%s374 + $0x980] sm:$0xff]
        %v1275 = vld [vmem:[%s374 + $0x988] sm:$0xff]
        %v1276 = vld [vmem:[%s374 + $0x990] sm:$0xff]
        %v1277 = vld [vmem:[%s374 + $0x998] sm:$0xff]
        %v1278 = vld [vmem:[%s374 + $0x9a0] sm:$0xff]
        %v1279 = vld [vmem:[%s374 + $0x9a8] sm:$0xff]
        %v1280 = vld [vmem:[%s374 + $0x9b0] sm:$0xff]
        %v1281 = vld [vmem:[%s374 + $0x9b8] sm:$0xff]
        %v1282 = vld [vmem:[%s374 + $0x9c0] sm:$0xff]
        %v1283 = vld [vmem:[%s374 + $0x9c8] sm:$0xff]
        %v1284 = vld [vmem:[%s374 + $0x9d0] sm:$0xff]
        %v1285 = vld [vmem:[%s374 + $0x9d8] sm:$0xff]
        %v1286 = vld [vmem:[%s374 + $0x9e0] sm:$0xff]
        %v1287 = vld [vmem:[%s374 + $0x9e8] sm:$0xff]
        %v1288 = vld [vmem:[%s374 + $0x9f0] sm:$0xff]
        %v1289 = vld [vmem:[%s374 + $0x9f8] sm:$0xff]
        %v1290 = vld [vmem:[%s374 + $0xa00] sm:$0xff]
        %v1291 = vld [vmem:[%s374 + $0xa08] sm:$0xff]
        %v1292 = vld [vmem:[%s374 + $0xa10] sm:$0xff]
        %v1293 = vld [vmem:[%s374 + $0xa18] sm:$0xff]
        %v1294 = vld [vmem:[%s374 + $0xa20] sm:$0xff]
        %v1295 = vld [vmem:[%s374 + $0xa28] sm:$0xff]
        %v1296 = vld [vmem:[%s374 + $0xa30] sm:$0xff]
        %v1297 = vld [vmem:[%s374 + $0xa38] sm:$0xff]
        %v1298 = vld [vmem:[%s374 + $0xa40] sm:$0xff]
        %v1299 = vld [vmem:[%s374 + $0xa48] sm:$0xff]
        %v1300 = vld [vmem:[%s374 + $0xa50] sm:$0xff]
        %v1301 = vld [vmem:[%s374 + $0xa58] sm:$0xff]
        %v1302 = vld [vmem:[%s374 + $0xa60] sm:$0xff]
        %v1303 = vld [vmem:[%s374 + $0xa68] sm:$0xff]
        %v1304 = vld [vmem:[%s374 + $0xa70] sm:$0xff]
        %v1305 = vld [vmem:[%s374 + $0xa78] sm:$0xff]
        %v1306 = vld [vmem:[%s374 + $0xa80] sm:$0xff]
        %v1307 = vld [vmem:[%s374 + $0xa88] sm:$0xff]
        %v1308 = vld [vmem:[%s374 + $0xa90] sm:$0xff]
        %v1309 = vld [vmem:[%s374 + $0xa98] sm:$0xff]
        %v1310 = vld [vmem:[%s374 + $0xaa0] sm:$0xff]
        %v1311 = vld [vmem:[%s374 + $0xaa8] sm:$0xff]
        %v1312 = vld [vmem:[%s374 + $0xab0] sm:$0xff]
        %v1313 = vld [vmem:[%s374 + $0xab8] sm:$0xff]
        %v1314 = vld [vmem:[%s374 + $0xac0] sm:$0xff]
        %v1315 = vld [vmem:[%s374 + $0xac8] sm:$0xff]
        %v1316 = vld [vmem:[%s374 + $0xad0] sm:$0xff]
        %v1317 = vld [vmem:[%s374 + $0xad8] sm:$0xff]
        %v1318 = vld [vmem:[%s374 + $0xae0] sm:$0xff]
        %v1319 = vld [vmem:[%s374 + $0xae8] sm:$0xff]
        %v1320 = vld [vmem:[%s374 + $0xaf0] sm:$0xff]
        %v1321 = vld [vmem:[%s374 + $0xaf8] sm:$0xff]
        %v1322 = vld [vmem:[%s374 + $0xb00] sm:$0xff]
        %v1323 = vld [vmem:[%s374 + $0xb08] sm:$0xff]
        %v1324 = vld [vmem:[%s374 + $0xb10] sm:$0xff]
        %v1325 = vld [vmem:[%s374 + $0xb18] sm:$0xff]
        %v1326 = vld [vmem:[%s374 + $0xb20] sm:$0xff]
        %v1327 = vld [vmem:[%s374 + $0xb28] sm:$0xff]
        %v1328 = vld [vmem:[%s374 + $0xb30] sm:$0xff]
        %v1329 = vld [vmem:[%s374 + $0xb38] sm:$0xff]
        %v1330 = vld [vmem:[%s374 + $0xb40] sm:$0xff]
        %v1331 = vld [vmem:[%s374 + $0xb48] sm:$0xff]
        %v1332 = vld [vmem:[%s374 + $0xb50] sm:$0xff]
        %v1333 = vld [vmem:[%s374 + $0xb58] sm:$0xff]
        %v1334 = vld [vmem:[%s374 + $0xb60] sm:$0xff]
        %v1335 = vld [vmem:[%s374 + $0xb68] sm:$0xff]
        %v1336 = vld [vmem:[%s374 + $0xb70] sm:$0xff]
        %v1337 = vld [vmem:[%s374 + $0xb78] sm:$0xff]
        %v1338 = vld [vmem:[%s374 + $0xb80] sm:$0xff]
        %v1339 = vld [vmem:[%s374 + $0xb88] sm:$0xff]
        %v1340 = vld [vmem:[%s374 + $0xb90] sm:$0xff]
        %v1341 = vld [vmem:[%s374 + $0xb98] sm:$0xff]
        %v1342 = vld [vmem:[%s374 + $0xba0] sm:$0xff]
        %v1343 = vld [vmem:[%s374 + $0xba8] sm:$0xff]
        %v1344 = vld [vmem:[%s374 + $0xbb0] sm:$0xff]
        %v1345 = vld [vmem:[%s374 + $0xbb8] sm:$0xff]
        %v1346 = vld [vmem:[%s374 + $0xbc0] sm:$0xff]
        %v1347 = vld [vmem:[%s374 + $0xbc8] sm:$0xff]
        %v1348 = vld [vmem:[%s374 + $0xbd0] sm:$0xff]
        %v1349 = vld [vmem:[%s374 + $0xbd8] sm:$0xff]
        %v1350 = vld [vmem:[%s374 + $0xbe0] sm:$0xff]
        %v1351 = vld [vmem:[%s374 + $0xbe8] sm:$0xff]
        %v1352 = vld [vmem:[%s374 + $0xbf0] sm:$0xff]
        %v1353 = vld [vmem:[%s374 + $0xbf8] sm:$0xff]
        %v1354 = vld [vmem:[%s374 + $0xc00] sm:$0xff]
        %v1355 = vld [vmem:[%s374 + $0xc08] sm:$0xff]
        %v1356 = vld [vmem:[%s374 + $0xc10] sm:$0xff]
        %v1357 = vld [vmem:[%s374 + $0xc18] sm:$0xff]
        %v1358 = vld [vmem:[%s374 + $0xc20] sm:$0xff]
        %v1359 = vld [vmem:[%s374 + $0xc28] sm:$0xff]
        %v1360 = vld [vmem:[%s374 + $0xc30] sm:$0xff]
        %v1361 = vld [vmem:[%s374 + $0xc38] sm:$0xff]
        %v1362 = vld [vmem:[%s374 + $0xc40] sm:$0xff]
        %v1363 = vld [vmem:[%s374 + $0xc48] sm:$0xff]
        %v1364 = vld [vmem:[%s374 + $0xc50] sm:$0xff]
        %v1365 = vld [vmem:[%s374 + $0xc58] sm:$0xff]
        %v1366 = vld [vmem:[%s374 + $0xc60] sm:$0xff]
        %v1367 = vld [vmem:[%s374 + $0xc68] sm:$0xff]
        %v1368 = vld [vmem:[%s374 + $0xc70] sm:$0xff]
        %v1369 = vld [vmem:[%s374 + $0xc78] sm:$0xff]
        %v1370 = vld [vmem:[%s374 + $0xc80] sm:$0xff]
        %v1371 = vld [vmem:[%s374 + $0xc88] sm:$0xff]
        %v1372 = vld [vmem:[%s374 + $0xc90] sm:$0xff]
        %v1373 = vld [vmem:[%s374 + $0xc98] sm:$0xff]
        %v1374 = vld [vmem:[%s374 + $0xca0] sm:$0xff]
        %v1375 = vld [vmem:[%s374 + $0xca8] sm:$0xff]
        %v1376 = vld [vmem:[%s374 + $0xcb0] sm:$0xff]
        %v1377 = vld [vmem:[%s374 + $0xcb8] sm:$0xff]
        %v1378 = vld [vmem:[%s374 + $0xcc0] sm:$0xff]
        %v1379 = vld [vmem:[%s374 + $0xcc8] sm:$0xff]
        %v1380 = vld [vmem:[%s374 + $0xcd0] sm:$0xff]
        %v1381 = vld [vmem:[%s374 + $0xcd8] sm:$0xff]
        %v1382 = vld [vmem:[%s374 + $0xce0] sm:$0xff]
        %v1383 = vld [vmem:[%s374 + $0xce8] sm:$0xff]
        %v1384 = vld [vmem:[%s374 + $0xcf0] sm:$0xff]
        %v1385 = vld [vmem:[%s374 + $0xcf8] sm:$0xff]
        %v1386 = vld [vmem:[%s374 + $0xd00] sm:$0xff]
        %v1387 = vld [vmem:[%s374 + $0xd08] sm:$0xff]
        %v1388 = vld [vmem:[%s374 + $0xd10] sm:$0xff]
        %v1389 = vld [vmem:[%s374 + $0xd18] sm:$0xff]
        %v1390 = vld [vmem:[%s374 + $0xd20] sm:$0xff]
        %v1391 = vld [vmem:[%s374 + $0xd28] sm:$0xff]
        %v1392 = vld [vmem:[%s374 + $0xd30] sm:$0xff]
        %v1393 = vld [vmem:[%s374 + $0xd38] sm:$0xff]
        %v1394 = vld [vmem:[%s374 + $0xd40] sm:$0xff]
        %v1395 = vld [vmem:[%s374 + $0xd48] sm:$0xff]
        %v1396 = vld [vmem:[%s374 + $0xd50] sm:$0xff]
        %v1397 = vld [vmem:[%s374 + $0xd58] sm:$0xff]
        %v1398 = vld [vmem:[%s374 + $0xd60] sm:$0xff]
        %v1399 = vld [vmem:[%s374 + $0xd68] sm:$0xff]
        %v1400 = vld [vmem:[%s374 + $0xd70] sm:$0xff]
        %v1401 = vld [vmem:[%s374 + $0xd78] sm:$0xff]
        %v1402 = vld [vmem:[%s374 + $0xd80] sm:$0xff]
        %v1403 = vld [vmem:[%s374 + $0xd88] sm:$0xff]
        %v1404 = vld [vmem:[%s374 + $0xd90] sm:$0xff]
        %v1405 = vld [vmem:[%s374 + $0xd98] sm:$0xff]
        %v1406 = vld [vmem:[%s374 + $0xda0] sm:$0xff]
        %v1407 = vld [vmem:[%s374 + $0xda8] sm:$0xff]
        %v1408 = vld [vmem:[%s374 + $0xdb0] sm:$0xff]
        %v1409 = vld [vmem:[%s374 + $0xdb8] sm:$0xff]
        %v1410 = vld [vmem:[%s374 + $0xdc0] sm:$0xff]
        %v1411 = vld [vmem:[%s374 + $0xdc8] sm:$0xff]
        %v1412 = vld [vmem:[%s374 + $0xdd0] sm:$0xff]
        %v1413 = vld [vmem:[%s374 + $0xdd8] sm:$0xff]
        %v1414 = vld [vmem:[%s374 + $0xde0] sm:$0xff]
        %v1415 = vld [vmem:[%s374 + $0xde8] sm:$0xff]
        %v1416 = vld [vmem:[%s374 + $0xdf0] sm:$0xff]
        %v1417 = vld [vmem:[%s374 + $0xdf8] sm:$0xff]
        %v1418 = vld [vmem:[%s374 + $0xe00] sm:$0xff]
        %v1419 = vld [vmem:[%s374 + $0xe08] sm:$0xff]
        %v1420 = vld [vmem:[%s374 + $0xe10] sm:$0xff]
        %v1421 = vld [vmem:[%s374 + $0xe18] sm:$0xff]
        %v1422 = vld [vmem:[%s374 + $0xe20] sm:$0xff]
        %v1423 = vld [vmem:[%s374 + $0xe28] sm:$0xff]
        %v1424 = vld [vmem:[%s374 + $0xe30] sm:$0xff]
        %v1425 = vld [vmem:[%s374 + $0xe38] sm:$0xff]
        %v1426 = vld [vmem:[%s374 + $0xe40] sm:$0xff]
        %v1427 = vld [vmem:[%s374 + $0xe48] sm:$0xff]
        %v1428 = vld [vmem:[%s374 + $0xe50] sm:$0xff]
        %v1429 = vld [vmem:[%s374 + $0xe58] sm:$0xff]
        %v1430 = vld [vmem:[%s374 + $0xe60] sm:$0xff]
        %v1431 = vld [vmem:[%s374 + $0xe68] sm:$0xff]
        %v1432 = vld [vmem:[%s374 + $0xe70] sm:$0xff]
        %v1433 = vld [vmem:[%s374 + $0xe78] sm:$0xff]
        %v1434 = vld [vmem:[%s374 + $0xe80] sm:$0xff]
        %v1435 = vld [vmem:[%s374 + $0xe88] sm:$0xff]
        %v1436 = vld [vmem:[%s374 + $0xe90] sm:$0xff]
        %v1437 = vld [vmem:[%s374 + $0xe98] sm:$0xff]
        %v1438 = vld [vmem:[%s374 + $0xea0] sm:$0xff]
        %v1439 = vld [vmem:[%s374 + $0xea8] sm:$0xff]
        %v1440 = vld [vmem:[%s374 + $0xeb0] sm:$0xff]
        %v1441 = vld [vmem:[%s374 + $0xeb8] sm:$0xff]
        %v1442 = vld [vmem:[%s374 + $0xec0] sm:$0xff]
        %v1443 = vld [vmem:[%s374 + $0xec8] sm:$0xff]
        %v1444 = vld [vmem:[%s374 + $0xed0] sm:$0xff]
        %v1445 = vld [vmem:[%s374 + $0xed8] sm:$0xff]
        %v1446 = vld [vmem:[%s374 + $0xee0] sm:$0xff]
        %v1447 = vld [vmem:[%s374 + $0xee8] sm:$0xff]
        %v1448 = vld [vmem:[%s374 + $0xef0] sm:$0xff]
        %v1449 = vld [vmem:[%s374 + $0xef8] sm:$0xff]
        %v1450 = vld [vmem:[%s374 + $0xf00] sm:$0xff]
        %v1451 = vld [vmem:[%s374 + $0xf08] sm:$0xff]
        %v1452 = vld [vmem:[%s374 + $0xf10] sm:$0xff]
        %v1453 = vld [vmem:[%s374 + $0xf18] sm:$0xff]
        %v1454 = vld [vmem:[%s374 + $0xf20] sm:$0xff]
        %v1455 = vld [vmem:[%s374 + $0xf28] sm:$0xff]
        %v1456 = vld [vmem:[%s374 + $0xf30] sm:$0xff]
        %v1457 = vld [vmem:[%s374 + $0xf38] sm:$0xff]
        %v1458 = vld [vmem:[%s374 + $0xf40] sm:$0xff]
        %v1459 = vld [vmem:[%s374 + $0xf48] sm:$0xff]
        %v1460 = vld [vmem:[%s374 + $0xf50] sm:$0xff]
        %v1461 = vld [vmem:[%s374 + $0xf58] sm:$0xff]
        %v1462 = vld [vmem:[%s374 + $0xf60] sm:$0xff]
        %v1463 = vld [vmem:[%s374 + $0xf68] sm:$0xff]
        %v1464 = vld [vmem:[%s374 + $0xf70] sm:$0xff]
        %v1465 = vld [vmem:[%s374 + $0xf78] sm:$0xff]
        %v1466 = vld [vmem:[%s374 + $0xf80] sm:$0xff]
        %v1467 = vld [vmem:[%s374 + $0xf88] sm:$0xff]
        %v1468 = vld [vmem:[%s374 + $0xf90] sm:$0xff]
        %v1469 = vld [vmem:[%s374 + $0xf98] sm:$0xff]
        %v1470 = vld [vmem:[%s374 + $0xfa0] sm:$0xff]
        %v1471 = vld [vmem:[%s374 + $0xfa8] sm:$0xff]
        %v1472 = vld [vmem:[%s374 + $0xfb0] sm:$0xff]
        %v1473 = vld [vmem:[%s374 + $0xfb8] sm:$0xff]
        %v1474 = vld [vmem:[%s374 + $0xfc0] sm:$0xff]
        %v1475 = vld [vmem:[%s374 + $0xfc8] sm:$0xff]
        %v1476 = vld [vmem:[%s374 + $0xfd0] sm:$0xff]
        %v1477 = vld [vmem:[%s374 + $0xfd8] sm:$0xff]
        %v1478 = vld [vmem:[%s374 + $0xfe0] sm:$0xff]
        %v1479 = vld [vmem:[%s374 + $0xfe8] sm:$0xff]
        %v1480 = vld [vmem:[%s374 + $0xff0] sm:$0xff]
        %v1481 = vld [vmem:[%s374 + $0xff8] sm:$0xff]
        %v1482 = vld [vmem:[%s384] sm:$0xff]
        %v1484 = vperm.slane %v1482, 0
        %v1485 = vperm.slane %v1482, 1
        %v1486 = vperm.slane %v1482, 2
        %v1487 = vperm.slane %v1482, 3
        %v1488 = vperm.slane %v1482, 4
        %v1489 = vperm.slane %v1482, 5
        %v1490 = vperm.slane %v1482, 6
        %v1491 = vperm.slane %v1482, 7
        %v1504 = vunpack.c.l.b16 %v966
        %v1505 = vunpack.c.h.b16 %v966
        %v1506 = vunpack.c.l.b16 %v967
        %v1507 = vunpack.c.h.b16 %v967
        %v1508 = vunpack.c.l.b16 %v968
        %v1509 = vunpack.c.h.b16 %v968
        %v1510 = vunpack.c.l.b16 %v969
        %v1511 = vunpack.c.h.b16 %v969
        %v1512 = vpack.c.b16 %v1504, %v1504
        %v1513 = vpack.c.b16 %v1505, %v1505
        %v1514 = vpack.c.b16 %v1506, %v1506
        %v1515 = vpack.c.b16 %v1507, %v1507
        %v1516 = vpack.c.b16 %v1508, %v1508
        %v1517 = vpack.c.b16 %v1509, %v1509
        %v1518 = vpack.c.b16 %v1510, %v1510
        %v1519 = vpack.c.b16 %v1511, %v1511
        %v2040 = vunpack.c.l.b16 %v970
        %v2041 = vunpack.c.h.b16 %v970
        %v2042 = vunpack.c.l.b16 %v971
        %v2043 = vunpack.c.h.b16 %v971
        %v2044 = vunpack.c.l.b16 %v972
        %v2045 = vunpack.c.h.b16 %v972
        %v2046 = vunpack.c.l.b16 %v973
        %v2047 = vunpack.c.h.b16 %v973
        %v2048 = vunpack.c.l.b16 %v974
        %v2049 = vunpack.c.h.b16 %v974
        %v2050 = vunpack.c.l.b16 %v975
        %v2051 = vunpack.c.h.b16 %v975
        %v2052 = vunpack.c.l.b16 %v976
        %v2053 = vunpack.c.h.b16 %v976
        %v2054 = vunpack.c.l.b16 %v977
        %v2055 = vunpack.c.h.b16 %v977
        %v2056 = vunpack.c.l.b16 %v978
        %v2057 = vunpack.c.h.b16 %v978
        %v2058 = vunpack.c.l.b16 %v979
        %v2059 = vunpack.c.h.b16 %v979
        %v2060 = vunpack.c.l.b16 %v980
        %v2061 = vunpack.c.h.b16 %v980
        %v2062 = vunpack.c.l.b16 %v981
        %v2063 = vunpack.c.h.b16 %v981
        %v2064 = vunpack.c.l.b16 %v982
        %v2065 = vunpack.c.h.b16 %v982
        %v2066 = vunpack.c.l.b16 %v983
        %v2067 = vunpack.c.h.b16 %v983
        %v2068 = vunpack.c.l.b16 %v984
        %v2069 = vunpack.c.h.b16 %v984
        %v2070 = vunpack.c.l.b16 %v985
        %v2071 = vunpack.c.h.b16 %v985
        %v2072 = vunpack.c.l.b16 %v986
        %v2073 = vunpack.c.h.b16 %v986
        %v2074 = vunpack.c.l.b16 %v987
        %v2075 = vunpack.c.h.b16 %v987
        %v2076 = vunpack.c.l.b16 %v988
        %v2077 = vunpack.c.h.b16 %v988
        %v2078 = vunpack.c.l.b16 %v989
        %v2079 = vunpack.c.h.b16 %v989
        %v2080 = vunpack.c.l.b16 %v990
        %v2081 = vunpack.c.h.b16 %v990
        %v2082 = vunpack.c.l.b16 %v991
        %v2083 = vunpack.c.h.b16 %v991
        %v2084 = vunpack.c.l.b16 %v992
        %v2085 = vunpack.c.h.b16 %v992
        %v2086 = vunpack.c.l.b16 %v993
        %v2087 = vunpack.c.h.b16 %v993
        %v2088 = vunpack.c.l.b16 %v994
        %v2089 = vunpack.c.h.b16 %v994
        %v2090 = vunpack.c.l.b16 %v995
        %v2091 = vunpack.c.h.b16 %v995
        %v2092 = vunpack.c.l.b16 %v996
        %v2093 = vunpack.c.h.b16 %v996
        %v2094 = vunpack.c.l.b16 %v997
        %v2095 = vunpack.c.h.b16 %v997
        %v2096 = vunpack.c.l.b16 %v998
        %v2097 = vunpack.c.h.b16 %v998
        %v2098 = vunpack.c.l.b16 %v999
        %v2099 = vunpack.c.h.b16 %v999
        %v2100 = vunpack.c.l.b16 %v1000
        %v2101 = vunpack.c.h.b16 %v1000
        %v2102 = vunpack.c.l.b16 %v1001
        %v2103 = vunpack.c.h.b16 %v1001
        %v2104 = vunpack.c.l.b16 %v1002
        %v2105 = vunpack.c.h.b16 %v1002
        %v2106 = vunpack.c.l.b16 %v1003
        %v2107 = vunpack.c.h.b16 %v1003
        %v2108 = vunpack.c.l.b16 %v1004
        %v2109 = vunpack.c.h.b16 %v1004
        %v2110 = vunpack.c.l.b16 %v1005
        %v2111 = vunpack.c.h.b16 %v1005
        %v2112 = vunpack.c.l.b16 %v1006
        %v2113 = vunpack.c.h.b16 %v1006
        %v2114 = vunpack.c.l.b16 %v1007
        %v2115 = vunpack.c.h.b16 %v1007
        %v2116 = vunpack.c.l.b16 %v1008
        %v2117 = vunpack.c.h.b16 %v1008
        %v2118 = vunpack.c.l.b16 %v1009
        %v2119 = vunpack.c.h.b16 %v1009
        %v2120 = vunpack.c.l.b16 %v1010
        %v2121 = vunpack.c.h.b16 %v1010
        %v2122 = vunpack.c.l.b16 %v1011
        %v2123 = vunpack.c.h.b16 %v1011
        %v2124 = vunpack.c.l.b16 %v1012
        %v2125 = vunpack.c.h.b16 %v1012
        %v2126 = vunpack.c.l.b16 %v1013
        %v2127 = vunpack.c.h.b16 %v1013
        %v2128 = vunpack.c.l.b16 %v1014
        %v2129 = vunpack.c.h.b16 %v1014
        %v2130 = vunpack.c.l.b16 %v1015
        %v2131 = vunpack.c.h.b16 %v1015
        %v2132 = vunpack.c.l.b16 %v1016
        %v2133 = vunpack.c.h.b16 %v1016
        %v2134 = vunpack.c.l.b16 %v1017
        %v2135 = vunpack.c.h.b16 %v1017
        %v2136 = vunpack.c.l.b16 %v1018
        %v2137 = vunpack.c.h.b16 %v1018
        %v2138 = vunpack.c.l.b16 %v1019
        %v2139 = vunpack.c.h.b16 %v1019
        %v2140 = vunpack.c.l.b16 %v1020
        %v2141 = vunpack.c.h.b16 %v1020
        %v2142 = vunpack.c.l.b16 %v1021
        %v2143 = vunpack.c.h.b16 %v1021
        %v2144 = vunpack.c.l.b16 %v1022
        %v2145 = vunpack.c.h.b16 %v1022
        %v2146 = vunpack.c.l.b16 %v1023
        %v2147 = vunpack.c.h.b16 %v1023
        %v2148 = vunpack.c.l.b16 %v1024
        %v2149 = vunpack.c.h.b16 %v1024
        %v2150 = vunpack.c.l.b16 %v1025
        %v2151 = vunpack.c.h.b16 %v1025
        %v2152 = vunpack.c.l.b16 %v1026
        %v2153 = vunpack.c.h.b16 %v1026
        %v2154 = vunpack.c.l.b16 %v1027
        %v2155 = vunpack.c.h.b16 %v1027
        %v2156 = vunpack.c.l.b16 %v1028
        %v2157 = vunpack.c.h.b16 %v1028
        %v2158 = vunpack.c.l.b16 %v1029
        %v2159 = vunpack.c.h.b16 %v1029
        %v2160 = vunpack.c.l.b16 %v1030
        %v2161 = vunpack.c.h.b16 %v1030
        %v2162 = vunpack.c.l.b16 %v1031
        %v2163 = vunpack.c.h.b16 %v1031
        %v2164 = vunpack.c.l.b16 %v1032
        %v2165 = vunpack.c.h.b16 %v1032
        %v2166 = vunpack.c.l.b16 %v1033
        %v2167 = vunpack.c.h.b16 %v1033
        %v2168 = vunpack.c.l.b16 %v1034
        %v2169 = vunpack.c.h.b16 %v1034
        %v2170 = vunpack.c.l.b16 %v1035
        %v2171 = vunpack.c.h.b16 %v1035
        %v2172 = vunpack.c.l.b16 %v1036
        %v2173 = vunpack.c.h.b16 %v1036
        %v2174 = vunpack.c.l.b16 %v1037
        %v2175 = vunpack.c.h.b16 %v1037
        %v2176 = vunpack.c.l.b16 %v1038
        %v2177 = vunpack.c.h.b16 %v1038
        %v2178 = vunpack.c.l.b16 %v1039
        %v2179 = vunpack.c.h.b16 %v1039
        %v2180 = vunpack.c.l.b16 %v1040
        %v2181 = vunpack.c.h.b16 %v1040
        %v2182 = vunpack.c.l.b16 %v1041
        %v2183 = vunpack.c.h.b16 %v1041
        %v2184 = vunpack.c.l.b16 %v1042
        %v2185 = vunpack.c.h.b16 %v1042
        %v2186 = vunpack.c.l.b16 %v1043
        %v2187 = vunpack.c.h.b16 %v1043
        %v2188 = vunpack.c.l.b16 %v1044
        %v2189 = vunpack.c.h.b16 %v1044
        %v2190 = vunpack.c.l.b16 %v1045
        %v2191 = vunpack.c.h.b16 %v1045
        %v2192 = vunpack.c.l.b16 %v1046
        %v2193 = vunpack.c.h.b16 %v1046
        %v2194 = vunpack.c.l.b16 %v1047
        %v2195 = vunpack.c.h.b16 %v1047
        %v2196 = vunpack.c.l.b16 %v1048
        %v2197 = vunpack.c.h.b16 %v1048
        %v2198 = vunpack.c.l.b16 %v1049
        %v2199 = vunpack.c.h.b16 %v1049
        %v2200 = vunpack.c.l.b16 %v1050
        %v2201 = vunpack.c.h.b16 %v1050
        %v2202 = vunpack.c.l.b16 %v1051
        %v2203 = vunpack.c.h.b16 %v1051
        %v2204 = vunpack.c.l.b16 %v1052
        %v2205 = vunpack.c.h.b16 %v1052
        %v2206 = vunpack.c.l.b16 %v1053
        %v2207 = vunpack.c.h.b16 %v1053
        %v2208 = vunpack.c.l.b16 %v1054
        %v2209 = vunpack.c.h.b16 %v1054
        %v2210 = vunpack.c.l.b16 %v1055
        %v2211 = vunpack.c.h.b16 %v1055
        %v2212 = vunpack.c.l.b16 %v1056
        %v2213 = vunpack.c.h.b16 %v1056
        %v2214 = vunpack.c.l.b16 %v1057
        %v2215 = vunpack.c.h.b16 %v1057
        %v2216 = vunpack.c.l.b16 %v1058
        %v2217 = vunpack.c.h.b16 %v1058
        %v2218 = vunpack.c.l.b16 %v1059
        %v2219 = vunpack.c.h.b16 %v1059
        %v2220 = vunpack.c.l.b16 %v1060
        %v2221 = vunpack.c.h.b16 %v1060
        %v2222 = vunpack.c.l.b16 %v1061
        %v2223 = vunpack.c.h.b16 %v1061
        %v2224 = vunpack.c.l.b16 %v1062
        %v2225 = vunpack.c.h.b16 %v1062
        %v2226 = vunpack.c.l.b16 %v1063
        %v2227 = vunpack.c.h.b16 %v1063
        %v2228 = vunpack.c.l.b16 %v1064
        %v2229 = vunpack.c.h.b16 %v1064
        %v2230 = vunpack.c.l.b16 %v1065
        %v2231 = vunpack.c.h.b16 %v1065
        %v2232 = vunpack.c.l.b16 %v1066
        %v2233 = vunpack.c.h.b16 %v1066
        %v2234 = vunpack.c.l.b16 %v1067
        %v2235 = vunpack.c.h.b16 %v1067
        %v2236 = vunpack.c.l.b16 %v1068
        %v2237 = vunpack.c.h.b16 %v1068
        %v2238 = vunpack.c.l.b16 %v1069
        %v2239 = vunpack.c.h.b16 %v1069
        %v2240 = vunpack.c.l.b16 %v1070
        %v2241 = vunpack.c.h.b16 %v1070
        %v2242 = vunpack.c.l.b16 %v1071
        %v2243 = vunpack.c.h.b16 %v1071
        %v2244 = vunpack.c.l.b16 %v1072
        %v2245 = vunpack.c.h.b16 %v1072
        %v2246 = vunpack.c.l.b16 %v1073
        %v2247 = vunpack.c.h.b16 %v1073
        %v2248 = vunpack.c.l.b16 %v1074
        %v2249 = vunpack.c.h.b16 %v1074
        %v2250 = vunpack.c.l.b16 %v1075
        %v2251 = vunpack.c.h.b16 %v1075
        %v2252 = vunpack.c.l.b16 %v1076
        %v2253 = vunpack.c.h.b16 %v1076
        %v2254 = vunpack.c.l.b16 %v1077
        %v2255 = vunpack.c.h.b16 %v1077
        %v2256 = vunpack.c.l.b16 %v1078
        %v2257 = vunpack.c.h.b16 %v1078
        %v2258 = vunpack.c.l.b16 %v1079
        %v2259 = vunpack.c.h.b16 %v1079
        %v2260 = vunpack.c.l.b16 %v1080
        %v2261 = vunpack.c.h.b16 %v1080
        %v2262 = vunpack.c.l.b16 %v1081
        %v2263 = vunpack.c.h.b16 %v1081
        %v2264 = vunpack.c.l.b16 %v1082
        %v2265 = vunpack.c.h.b16 %v1082
        %v2266 = vunpack.c.l.b16 %v1083
        %v2267 = vunpack.c.h.b16 %v1083
        %v2268 = vunpack.c.l.b16 %v1084
        %v2269 = vunpack.c.h.b16 %v1084
        %v2270 = vunpack.c.l.b16 %v1085
        %v2271 = vunpack.c.h.b16 %v1085
        %v2272 = vunpack.c.l.b16 %v1086
        %v2273 = vunpack.c.h.b16 %v1086
        %v2274 = vunpack.c.l.b16 %v1087
        %v2275 = vunpack.c.h.b16 %v1087
        %v2276 = vunpack.c.l.b16 %v1088
        %v2277 = vunpack.c.h.b16 %v1088
        %v2278 = vunpack.c.l.b16 %v1089
        %v2279 = vunpack.c.h.b16 %v1089
        %v2280 = vunpack.c.l.b16 %v1090
        %v2281 = vunpack.c.h.b16 %v1090
        %v2282 = vunpack.c.l.b16 %v1091
        %v2283 = vunpack.c.h.b16 %v1091
        %v2284 = vunpack.c.l.b16 %v1092
        %v2285 = vunpack.c.h.b16 %v1092
        %v2286 = vunpack.c.l.b16 %v1093
        %v2287 = vunpack.c.h.b16 %v1093
        %v2288 = vunpack.c.l.b16 %v1094
        %v2289 = vunpack.c.h.b16 %v1094
        %v2290 = vunpack.c.l.b16 %v1095
        %v2291 = vunpack.c.h.b16 %v1095
        %v2292 = vunpack.c.l.b16 %v1096
        %v2293 = vunpack.c.h.b16 %v1096
        %v2294 = vunpack.c.l.b16 %v1097
        %v2295 = vunpack.c.h.b16 %v1097
        %v2296 = vunpack.c.l.b16 %v1098
        %v2297 = vunpack.c.h.b16 %v1098
        %v2298 = vunpack.c.l.b16 %v1099
        %v2299 = vunpack.c.h.b16 %v1099
        %v2300 = vunpack.c.l.b16 %v1100
        %v2301 = vunpack.c.h.b16 %v1100
        %v2302 = vunpack.c.l.b16 %v1101
        %v2303 = vunpack.c.h.b16 %v1101
        %v2304 = vunpack.c.l.b16 %v1102
        %v2305 = vunpack.c.h.b16 %v1102
        %v2306 = vunpack.c.l.b16 %v1103
        %v2307 = vunpack.c.h.b16 %v1103
        %v2308 = vunpack.c.l.b16 %v1104
        %v2309 = vunpack.c.h.b16 %v1104
        %v2310 = vunpack.c.l.b16 %v1105
        %v2311 = vunpack.c.h.b16 %v1105
        %v2312 = vunpack.c.l.b16 %v1106
        %v2313 = vunpack.c.h.b16 %v1106
        %v2314 = vunpack.c.l.b16 %v1107
        %v2315 = vunpack.c.h.b16 %v1107
        %v2316 = vunpack.c.l.b16 %v1108
        %v2317 = vunpack.c.h.b16 %v1108
        %v2318 = vunpack.c.l.b16 %v1109
        %v2319 = vunpack.c.h.b16 %v1109
        %v2320 = vunpack.c.l.b16 %v1110
        %v2321 = vunpack.c.h.b16 %v1110
        %v2322 = vunpack.c.l.b16 %v1111
        %v2323 = vunpack.c.h.b16 %v1111
        %v2324 = vunpack.c.l.b16 %v1112
        %v2325 = vunpack.c.h.b16 %v1112
        %v2326 = vunpack.c.l.b16 %v1113
        %v2327 = vunpack.c.h.b16 %v1113
        %v2328 = vunpack.c.l.b16 %v1114
        %v2329 = vunpack.c.h.b16 %v1114
        %v2330 = vunpack.c.l.b16 %v1115
        %v2331 = vunpack.c.h.b16 %v1115
        %v2332 = vunpack.c.l.b16 %v1116
        %v2333 = vunpack.c.h.b16 %v1116
        %v2334 = vunpack.c.l.b16 %v1117
        %v2335 = vunpack.c.h.b16 %v1117
        %v2336 = vunpack.c.l.b16 %v1118
        %v2337 = vunpack.c.h.b16 %v1118
        %v2338 = vunpack.c.l.b16 %v1119
        %v2339 = vunpack.c.h.b16 %v1119
        %v2340 = vunpack.c.l.b16 %v1120
        %v2341 = vunpack.c.h.b16 %v1120
        %v2342 = vunpack.c.l.b16 %v1121
        %v2343 = vunpack.c.h.b16 %v1121
        %v2344 = vunpack.c.l.b16 %v1122
        %v2345 = vunpack.c.h.b16 %v1122
        %v2346 = vunpack.c.l.b16 %v1123
        %v2347 = vunpack.c.h.b16 %v1123
        %v2348 = vunpack.c.l.b16 %v1124
        %v2349 = vunpack.c.h.b16 %v1124
        %v2350 = vunpack.c.l.b16 %v1125
        %v2351 = vunpack.c.h.b16 %v1125
        %v2352 = vunpack.c.l.b16 %v1126
        %v2353 = vunpack.c.h.b16 %v1126
        %v2354 = vunpack.c.l.b16 %v1127
        %v2355 = vunpack.c.h.b16 %v1127
        %v2356 = vunpack.c.l.b16 %v1128
        %v2357 = vunpack.c.h.b16 %v1128
        %v2358 = vunpack.c.l.b16 %v1129
        %v2359 = vunpack.c.h.b16 %v1129
        %v2360 = vunpack.c.l.b16 %v1130
        %v2361 = vunpack.c.h.b16 %v1130
        %v2362 = vunpack.c.l.b16 %v1131
        %v2363 = vunpack.c.h.b16 %v1131
        %v2364 = vunpack.c.l.b16 %v1132
        %v2365 = vunpack.c.h.b16 %v1132
        %v2366 = vunpack.c.l.b16 %v1133
        %v2367 = vunpack.c.h.b16 %v1133
        %v2368 = vunpack.c.l.b16 %v1134
        %v2369 = vunpack.c.h.b16 %v1134
        %v2370 = vunpack.c.l.b16 %v1135
        %v2371 = vunpack.c.h.b16 %v1135
        %v2372 = vunpack.c.l.b16 %v1136
        %v2373 = vunpack.c.h.b16 %v1136
        %v2374 = vunpack.c.l.b16 %v1137
        %v2375 = vunpack.c.h.b16 %v1137
        %v2376 = vunpack.c.l.b16 %v1138
        %v2377 = vunpack.c.h.b16 %v1138
        %v2378 = vunpack.c.l.b16 %v1139
        %v2379 = vunpack.c.h.b16 %v1139
        %v2380 = vunpack.c.l.b16 %v1140
        %v2381 = vunpack.c.h.b16 %v1140
        %v2382 = vunpack.c.l.b16 %v1141
        %v2383 = vunpack.c.h.b16 %v1141
        %v2384 = vunpack.c.l.b16 %v1142
        %v2385 = vunpack.c.h.b16 %v1142
        %v2386 = vunpack.c.l.b16 %v1143
        %v2387 = vunpack.c.h.b16 %v1143
        %v2388 = vunpack.c.l.b16 %v1144
        %v2389 = vunpack.c.h.b16 %v1144
        %v2390 = vunpack.c.l.b16 %v1145
        %v2391 = vunpack.c.h.b16 %v1145
        %v2392 = vunpack.c.l.b16 %v1146
        %v2393 = vunpack.c.h.b16 %v1146
        %v2394 = vunpack.c.l.b16 %v1147
        %v2395 = vunpack.c.h.b16 %v1147
        %v2396 = vunpack.c.l.b16 %v1148
        %v2397 = vunpack.c.h.b16 %v1148
        %v2398 = vunpack.c.l.b16 %v1149
        %v2399 = vunpack.c.h.b16 %v1149
        %v2400 = vunpack.c.l.b16 %v1150
        %v2401 = vunpack.c.h.b16 %v1150
        %v2402 = vunpack.c.l.b16 %v1151
        %v2403 = vunpack.c.h.b16 %v1151
        %v2404 = vunpack.c.l.b16 %v1152
        %v2405 = vunpack.c.h.b16 %v1152
        %v2406 = vunpack.c.l.b16 %v1153
        %v2407 = vunpack.c.h.b16 %v1153
        %v2408 = vunpack.c.l.b16 %v1154
        %v2409 = vunpack.c.h.b16 %v1154
        %v2410 = vunpack.c.l.b16 %v1155
        %v2411 = vunpack.c.h.b16 %v1155
        %v2412 = vunpack.c.l.b16 %v1156
        %v2413 = vunpack.c.h.b16 %v1156
        %v2414 = vunpack.c.l.b16 %v1157
        %v2415 = vunpack.c.h.b16 %v1157
        %v2416 = vunpack.c.l.b16 %v1158
        %v2417 = vunpack.c.h.b16 %v1158
        %v2418 = vunpack.c.l.b16 %v1159
        %v2419 = vunpack.c.h.b16 %v1159
        %v2420 = vunpack.c.l.b16 %v1160
        %v2421 = vunpack.c.h.b16 %v1160
        %v2422 = vunpack.c.l.b16 %v1161
        %v2423 = vunpack.c.h.b16 %v1161
        %v2424 = vunpack.c.l.b16 %v1162
        %v2425 = vunpack.c.h.b16 %v1162
        %v2426 = vunpack.c.l.b16 %v1163
        %v2427 = vunpack.c.h.b16 %v1163
        %v2428 = vunpack.c.l.b16 %v1164
        %v2429 = vunpack.c.h.b16 %v1164
        %v2430 = vunpack.c.l.b16 %v1165
        %v2431 = vunpack.c.h.b16 %v1165
        %v2432 = vunpack.c.l.b16 %v1166
        %v2433 = vunpack.c.h.b16 %v1166
        %v2434 = vunpack.c.l.b16 %v1167
        %v2435 = vunpack.c.h.b16 %v1167
        %v2436 = vunpack.c.l.b16 %v1168
        %v2437 = vunpack.c.h.b16 %v1168
        %v2438 = vunpack.c.l.b16 %v1169
        %v2439 = vunpack.c.h.b16 %v1169
        %v2440 = vunpack.c.l.b16 %v1170
        %v2441 = vunpack.c.h.b16 %v1170
        %v2442 = vunpack.c.l.b16 %v1171
        %v2443 = vunpack.c.h.b16 %v1171
        %v2444 = vunpack.c.l.b16 %v1172
        %v2445 = vunpack.c.h.b16 %v1172
        %v2446 = vunpack.c.l.b16 %v1173
        %v2447 = vunpack.c.h.b16 %v1173
        %v2448 = vunpack.c.l.b16 %v1174
        %v2449 = vunpack.c.h.b16 %v1174
        %v2450 = vunpack.c.l.b16 %v1175
        %v2451 = vunpack.c.h.b16 %v1175
        %v2452 = vunpack.c.l.b16 %v1176
        %v2453 = vunpack.c.h.b16 %v1176
        %v2454 = vunpack.c.l.b16 %v1177
        %v2455 = vunpack.c.h.b16 %v1177
        %v2456 = vunpack.c.l.b16 %v1178
        %v2457 = vunpack.c.h.b16 %v1178
        %v2458 = vunpack.c.l.b16 %v1179
        %v2459 = vunpack.c.h.b16 %v1179
        %v2460 = vunpack.c.l.b16 %v1180
        %v2461 = vunpack.c.h.b16 %v1180
        %v2462 = vunpack.c.l.b16 %v1181
        %v2463 = vunpack.c.h.b16 %v1181
        %v2464 = vunpack.c.l.b16 %v1182
        %v2465 = vunpack.c.h.b16 %v1182
        %v2466 = vunpack.c.l.b16 %v1183
        %v2467 = vunpack.c.h.b16 %v1183
        %v2468 = vunpack.c.l.b16 %v1184
        %v2469 = vunpack.c.h.b16 %v1184
        %v2470 = vunpack.c.l.b16 %v1185
        %v2471 = vunpack.c.h.b16 %v1185
        %v2472 = vunpack.c.l.b16 %v1186
        %v2473 = vunpack.c.h.b16 %v1186
        %v2474 = vunpack.c.l.b16 %v1187
        %v2475 = vunpack.c.h.b16 %v1187
        %v2476 = vunpack.c.l.b16 %v1188
        %v2477 = vunpack.c.h.b16 %v1188
        %v2478 = vunpack.c.l.b16 %v1189
        %v2479 = vunpack.c.h.b16 %v1189
        %v2480 = vunpack.c.l.b16 %v1190
        %v2481 = vunpack.c.h.b16 %v1190
        %v2482 = vunpack.c.l.b16 %v1191
        %v2483 = vunpack.c.h.b16 %v1191
        %v2484 = vunpack.c.l.b16 %v1192
        %v2485 = vunpack.c.h.b16 %v1192
        %v2486 = vunpack.c.l.b16 %v1193
        %v2487 = vunpack.c.h.b16 %v1193
        %v2488 = vunpack.c.l.b16 %v1194
        %v2489 = vunpack.c.h.b16 %v1194
        %v2490 = vunpack.c.l.b16 %v1195
        %v2491 = vunpack.c.h.b16 %v1195
        %v2492 = vunpack.c.l.b16 %v1196
        %v2493 = vunpack.c.h.b16 %v1196
        %v2494 = vunpack.c.l.b16 %v1197
        %v2495 = vunpack.c.h.b16 %v1197
        %v2496 = vunpack.c.l.b16 %v1198
        %v2497 = vunpack.c.h.b16 %v1198
        %v2498 = vunpack.c.l.b16 %v1199
        %v2499 = vunpack.c.h.b16 %v1199
        %v2500 = vunpack.c.l.b16 %v1200
        %v2501 = vunpack.c.h.b16 %v1200
        %v2502 = vunpack.c.l.b16 %v1201
        %v2503 = vunpack.c.h.b16 %v1201
        %v2504 = vunpack.c.l.b16 %v1202
        %v2505 = vunpack.c.h.b16 %v1202
        %v2506 = vunpack.c.l.b16 %v1203
        %v2507 = vunpack.c.h.b16 %v1203
        %v2508 = vunpack.c.l.b16 %v1204
        %v2509 = vunpack.c.h.b16 %v1204
        %v2510 = vunpack.c.l.b16 %v1205
        %v2511 = vunpack.c.h.b16 %v1205
        %v2512 = vunpack.c.l.b16 %v1206
        %v2513 = vunpack.c.h.b16 %v1206
        %v2514 = vunpack.c.l.b16 %v1207
        %v2515 = vunpack.c.h.b16 %v1207
        %v2516 = vunpack.c.l.b16 %v1208
        %v2517 = vunpack.c.h.b16 %v1208
        %v2518 = vunpack.c.l.b16 %v1209
        %v2519 = vunpack.c.h.b16 %v1209
        %v2520 = vunpack.c.l.b16 %v1210
        %v2521 = vunpack.c.h.b16 %v1210
        %v2522 = vunpack.c.l.b16 %v1211
        %v2523 = vunpack.c.h.b16 %v1211
        %v2524 = vunpack.c.l.b16 %v1212
        %v2525 = vunpack.c.h.b16 %v1212
        %v2526 = vunpack.c.l.b16 %v1213
        %v2527 = vunpack.c.h.b16 %v1213
        %v2528 = vunpack.c.l.b16 %v1214
        %v2529 = vunpack.c.h.b16 %v1214
        %v2530 = vunpack.c.l.b16 %v1215
        %v2531 = vunpack.c.h.b16 %v1215
        %v2532 = vunpack.c.l.b16 %v1216
        %v2533 = vunpack.c.h.b16 %v1216
        %v2534 = vunpack.c.l.b16 %v1217
        %v2535 = vunpack.c.h.b16 %v1217
        %v2536 = vunpack.c.l.b16 %v1218
        %v2537 = vunpack.c.h.b16 %v1218
        %v2538 = vunpack.c.l.b16 %v1219
        %v2539 = vunpack.c.h.b16 %v1219
        %v2540 = vunpack.c.l.b16 %v1220
        %v2541 = vunpack.c.h.b16 %v1220
        %v2542 = vunpack.c.l.b16 %v1221
        %v2543 = vunpack.c.h.b16 %v1221
        %v2544 = vunpack.c.l.b16 %v1222
        %v2545 = vunpack.c.h.b16 %v1222
        %v2546 = vunpack.c.l.b16 %v1223
        %v2547 = vunpack.c.h.b16 %v1223
        %v2548 = vunpack.c.l.b16 %v1224
        %v2549 = vunpack.c.h.b16 %v1224
        %v2550 = vunpack.c.l.b16 %v1225
        %v2551 = vunpack.c.h.b16 %v1225
        %v2552 = vunpack.c.l.b16 %v1226
        %v2553 = vunpack.c.h.b16 %v1226
        %v2554 = vunpack.c.l.b16 %v1227
        %v2555 = vunpack.c.h.b16 %v1227
        %v2556 = vunpack.c.l.b16 %v1228
        %v2557 = vunpack.c.h.b16 %v1228
        %v2558 = vunpack.c.l.b16 %v1229
        %v2559 = vunpack.c.h.b16 %v1229
        %v2560 = vunpack.c.l.b16 %v1230
        %v2561 = vunpack.c.h.b16 %v1230
        %v2562 = vunpack.c.l.b16 %v1231
        %v2563 = vunpack.c.h.b16 %v1231
        %v2564 = vunpack.c.l.b16 %v1232
        %v2565 = vunpack.c.h.b16 %v1232
        %v2566 = vunpack.c.l.b16 %v1233
        %v2567 = vunpack.c.h.b16 %v1233
        %v2568 = vunpack.c.l.b16 %v1234
        %v2569 = vunpack.c.h.b16 %v1234
        %v2570 = vunpack.c.l.b16 %v1235
        %v2571 = vunpack.c.h.b16 %v1235
        %v2572 = vunpack.c.l.b16 %v1236
        %v2573 = vunpack.c.h.b16 %v1236
        %v2574 = vunpack.c.l.b16 %v1237
        %v2575 = vunpack.c.h.b16 %v1237
        %v2576 = vunpack.c.l.b16 %v1238
        %v2577 = vunpack.c.h.b16 %v1238
        %v2578 = vunpack.c.l.b16 %v1239
        %v2579 = vunpack.c.h.b16 %v1239
        %v2580 = vunpack.c.l.b16 %v1240
        %v2581 = vunpack.c.h.b16 %v1240
        %v2582 = vunpack.c.l.b16 %v1241
        %v2583 = vunpack.c.h.b16 %v1241
        %v2584 = vunpack.c.l.b16 %v1242
        %v2585 = vunpack.c.h.b16 %v1242
        %v2586 = vunpack.c.l.b16 %v1243
        %v2587 = vunpack.c.h.b16 %v1243
        %v2588 = vunpack.c.l.b16 %v1244
        %v2589 = vunpack.c.h.b16 %v1244
        %v2590 = vunpack.c.l.b16 %v1245
        %v2591 = vunpack.c.h.b16 %v1245
        %v2592 = vunpack.c.l.b16 %v1246
        %v2593 = vunpack.c.h.b16 %v1246
        %v2594 = vunpack.c.l.b16 %v1247
        %v2595 = vunpack.c.h.b16 %v1247
        %v2596 = vunpack.c.l.b16 %v1248
        %v2597 = vunpack.c.h.b16 %v1248
        %v2598 = vunpack.c.l.b16 %v1249
        %v2599 = vunpack.c.h.b16 %v1249
        %v2600 = vunpack.c.l.b16 %v1250
        %v2601 = vunpack.c.h.b16 %v1250
        %v2602 = vunpack.c.l.b16 %v1251
        %v2603 = vunpack.c.h.b16 %v1251
        %v2604 = vunpack.c.l.b16 %v1252
        %v2605 = vunpack.c.h.b16 %v1252
        %v2606 = vunpack.c.l.b16 %v1253
        %v2607 = vunpack.c.h.b16 %v1253
        %v2608 = vunpack.c.l.b16 %v1254
        %v2609 = vunpack.c.h.b16 %v1254
        %v2610 = vunpack.c.l.b16 %v1255
        %v2611 = vunpack.c.h.b16 %v1255
        %v2612 = vunpack.c.l.b16 %v1256
        %v2613 = vunpack.c.h.b16 %v1256
        %v2614 = vunpack.c.l.b16 %v1257
        %v2615 = vunpack.c.h.b16 %v1257
        %v2616 = vunpack.c.l.b16 %v1258
        %v2617 = vunpack.c.h.b16 %v1258
        %v2618 = vunpack.c.l.b16 %v1259
        %v2619 = vunpack.c.h.b16 %v1259
        %v2620 = vunpack.c.l.b16 %v1260
        %v2621 = vunpack.c.h.b16 %v1260
        %v2622 = vunpack.c.l.b16 %v1261
        %v2623 = vunpack.c.h.b16 %v1261
        %v2624 = vunpack.c.l.b16 %v1262
        %v2625 = vunpack.c.h.b16 %v1262
        %v2626 = vunpack.c.l.b16 %v1263
        %v2627 = vunpack.c.h.b16 %v1263
        %v2628 = vunpack.c.l.b16 %v1264
        %v2629 = vunpack.c.h.b16 %v1264
        %v2630 = vunpack.c.l.b16 %v1265
        %v2631 = vunpack.c.h.b16 %v1265
        %v2632 = vunpack.c.l.b16 %v1266
        %v2633 = vunpack.c.h.b16 %v1266
        %v2634 = vunpack.c.l.b16 %v1267
        %v2635 = vunpack.c.h.b16 %v1267
        %v2636 = vunpack.c.l.b16 %v1268
        %v2637 = vunpack.c.h.b16 %v1268
        %v2638 = vunpack.c.l.b16 %v1269
        %v2639 = vunpack.c.h.b16 %v1269
        %v2640 = vunpack.c.l.b16 %v1270
        %v2641 = vunpack.c.h.b16 %v1270
        %v2642 = vunpack.c.l.b16 %v1271
        %v2643 = vunpack.c.h.b16 %v1271
        %v2644 = vunpack.c.l.b16 %v1272
        %v2645 = vunpack.c.h.b16 %v1272
        %v2646 = vunpack.c.l.b16 %v1273
        %v2647 = vunpack.c.h.b16 %v1273
        %v2648 = vunpack.c.l.b16 %v1274
        %v2649 = vunpack.c.h.b16 %v1274
        %v2650 = vunpack.c.l.b16 %v1275
        %v2651 = vunpack.c.h.b16 %v1275
        %v2652 = vunpack.c.l.b16 %v1276
        %v2653 = vunpack.c.h.b16 %v1276
        %v2654 = vunpack.c.l.b16 %v1277
        %v2655 = vunpack.c.h.b16 %v1277
        %v2656 = vunpack.c.l.b16 %v1278
        %v2657 = vunpack.c.h.b16 %v1278
        %v2658 = vunpack.c.l.b16 %v1279
        %v2659 = vunpack.c.h.b16 %v1279
        %v2660 = vunpack.c.l.b16 %v1280
        %v2661 = vunpack.c.h.b16 %v1280
        %v2662 = vunpack.c.l.b16 %v1281
        %v2663 = vunpack.c.h.b16 %v1281
        %v2664 = vunpack.c.l.b16 %v1282
        %v2665 = vunpack.c.h.b16 %v1282
        %v2666 = vunpack.c.l.b16 %v1283
        %v2667 = vunpack.c.h.b16 %v1283
        %v2668 = vunpack.c.l.b16 %v1284
        %v2669 = vunpack.c.h.b16 %v1284
        %v2670 = vunpack.c.l.b16 %v1285
        %v2671 = vunpack.c.h.b16 %v1285
        %v2672 = vunpack.c.l.b16 %v1286
        %v2673 = vunpack.c.h.b16 %v1286
        %v2674 = vunpack.c.l.b16 %v1287
        %v2675 = vunpack.c.h.b16 %v1287
        %v2676 = vunpack.c.l.b16 %v1288
        %v2677 = vunpack.c.h.b16 %v1288
        %v2678 = vunpack.c.l.b16 %v1289
        %v2679 = vunpack.c.h.b16 %v1289
        %v2680 = vunpack.c.l.b16 %v1290
        %v2681 = vunpack.c.h.b16 %v1290
        %v2682 = vunpack.c.l.b16 %v1291
        %v2683 = vunpack.c.h.b16 %v1291
        %v2684 = vunpack.c.l.b16 %v1292
        %v2685 = vunpack.c.h.b16 %v1292
        %v2686 = vunpack.c.l.b16 %v1293
        %v2687 = vunpack.c.h.b16 %v1293
        %v2688 = vunpack.c.l.b16 %v1294
        %v2689 = vunpack.c.h.b16 %v1294
        %v2690 = vunpack.c.l.b16 %v1295
        %v2691 = vunpack.c.h.b16 %v1295
        %v2692 = vunpack.c.l.b16 %v1296
        %v2693 = vunpack.c.h.b16 %v1296
        %v2694 = vunpack.c.l.b16 %v1297
        %v2695 = vunpack.c.h.b16 %v1297
        %v2696 = vunpack.c.l.b16 %v1298
        %v2697 = vunpack.c.h.b16 %v1298
        %v2698 = vunpack.c.l.b16 %v1299
        %v2699 = vunpack.c.h.b16 %v1299
        %v2700 = vunpack.c.l.b16 %v1300
        %v2701 = vunpack.c.h.b16 %v1300
        %v2702 = vunpack.c.l.b16 %v1301
        %v2703 = vunpack.c.h.b16 %v1301
        %v2704 = vunpack.c.l.b16 %v1302
        %v2705 = vunpack.c.h.b16 %v1302
        %v2706 = vunpack.c.l.b16 %v1303
        %v2707 = vunpack.c.h.b16 %v1303
        %v2708 = vunpack.c.l.b16 %v1304
        %v2709 = vunpack.c.h.b16 %v1304
        %v2710 = vunpack.c.l.b16 %v1305
        %v2711 = vunpack.c.h.b16 %v1305
        %v2712 = vunpack.c.l.b16 %v1306
        %v2713 = vunpack.c.h.b16 %v1306
        %v2714 = vunpack.c.l.b16 %v1307
        %v2715 = vunpack.c.h.b16 %v1307
        %v2716 = vunpack.c.l.b16 %v1308
        %v2717 = vunpack.c.h.b16 %v1308
        %v2718 = vunpack.c.l.b16 %v1309
        %v2719 = vunpack.c.h.b16 %v1309
        %v2720 = vunpack.c.l.b16 %v1310
        %v2721 = vunpack.c.h.b16 %v1310
        %v2722 = vunpack.c.l.b16 %v1311
        %v2723 = vunpack.c.h.b16 %v1311
        %v2724 = vunpack.c.l.b16 %v1312
        %v2725 = vunpack.c.h.b16 %v1312
        %v2726 = vunpack.c.l.b16 %v1313
        %v2727 = vunpack.c.h.b16 %v1313
        %v2728 = vunpack.c.l.b16 %v1314
        %v2729 = vunpack.c.h.b16 %v1314
        %v2730 = vunpack.c.l.b16 %v1315
        %v2731 = vunpack.c.h.b16 %v1315
        %v2732 = vunpack.c.l.b16 %v1316
        %v2733 = vunpack.c.h.b16 %v1316
        %v2734 = vunpack.c.l.b16 %v1317
        %v2735 = vunpack.c.h.b16 %v1317
        %v2736 = vunpack.c.l.b16 %v1318
        %v2737 = vunpack.c.h.b16 %v1318
        %v2738 = vunpack.c.l.b16 %v1319
        %v2739 = vunpack.c.h.b16 %v1319
        %v2740 = vunpack.c.l.b16 %v1320
        %v2741 = vunpack.c.h.b16 %v1320
        %v2742 = vunpack.c.l.b16 %v1321
        %v2743 = vunpack.c.h.b16 %v1321
        %v2744 = vunpack.c.l.b16 %v1322
        %v2745 = vunpack.c.h.b16 %v1322
        %v2746 = vunpack.c.l.b16 %v1323
        %v2747 = vunpack.c.h.b16 %v1323
        %v2748 = vunpack.c.l.b16 %v1324
        %v2749 = vunpack.c.h.b16 %v1324
        %v2750 = vunpack.c.l.b16 %v1325
        %v2751 = vunpack.c.h.b16 %v1325
        %v2752 = vunpack.c.l.b16 %v1326
        %v2753 = vunpack.c.h.b16 %v1326
        %v2754 = vunpack.c.l.b16 %v1327
        %v2755 = vunpack.c.h.b16 %v1327
        %v2756 = vunpack.c.l.b16 %v1328
        %v2757 = vunpack.c.h.b16 %v1328
        %v2758 = vunpack.c.l.b16 %v1329
        %v2759 = vunpack.c.h.b16 %v1329
        %v2760 = vunpack.c.l.b16 %v1330
        %v2761 = vunpack.c.h.b16 %v1330
        %v2762 = vunpack.c.l.b16 %v1331
        %v2763 = vunpack.c.h.b16 %v1331
        %v2764 = vunpack.c.l.b16 %v1332
        %v2765 = vunpack.c.h.b16 %v1332
        %v2766 = vunpack.c.l.b16 %v1333
        %v2767 = vunpack.c.h.b16 %v1333
        %v2768 = vunpack.c.l.b16 %v1334
        %v2769 = vunpack.c.h.b16 %v1334
        %v2770 = vunpack.c.l.b16 %v1335
        %v2771 = vunpack.c.h.b16 %v1335
        %v2772 = vunpack.c.l.b16 %v1336
        %v2773 = vunpack.c.h.b16 %v1336
        %v2774 = vunpack.c.l.b16 %v1337
        %v2775 = vunpack.c.h.b16 %v1337
        %v2776 = vunpack.c.l.b16 %v1338
        %v2777 = vunpack.c.h.b16 %v1338
        %v2778 = vunpack.c.l.b16 %v1339
        %v2779 = vunpack.c.h.b16 %v1339
        %v2780 = vunpack.c.l.b16 %v1340
        %v2781 = vunpack.c.h.b16 %v1340
        %v2782 = vunpack.c.l.b16 %v1341
        %v2783 = vunpack.c.h.b16 %v1341
        %v2784 = vunpack.c.l.b16 %v1342
        %v2785 = vunpack.c.h.b16 %v1342
        %v2786 = vunpack.c.l.b16 %v1343
        %v2787 = vunpack.c.h.b16 %v1343
        %v2788 = vunpack.c.l.b16 %v1344
        %v2789 = vunpack.c.h.b16 %v1344
        %v2790 = vunpack.c.l.b16 %v1345
        %v2791 = vunpack.c.h.b16 %v1345
        %v2792 = vunpack.c.l.b16 %v1346
        %v2793 = vunpack.c.h.b16 %v1346
        %v2794 = vunpack.c.l.b16 %v1347
        %v2795 = vunpack.c.h.b16 %v1347
        %v2796 = vunpack.c.l.b16 %v1348
        %v2797 = vunpack.c.h.b16 %v1348
        %v2798 = vunpack.c.l.b16 %v1349
        %v2799 = vunpack.c.h.b16 %v1349
        %v2800 = vunpack.c.l.b16 %v1350
        %v2801 = vunpack.c.h.b16 %v1350
        %v2802 = vunpack.c.l.b16 %v1351
        %v2803 = vunpack.c.h.b16 %v1351
        %v2804 = vunpack.c.l.b16 %v1352
        %v2805 = vunpack.c.h.b16 %v1352
        %v2806 = vunpack.c.l.b16 %v1353
        %v2807 = vunpack.c.h.b16 %v1353
        %v2808 = vunpack.c.l.b16 %v1354
        %v2809 = vunpack.c.h.b16 %v1354
        %v2810 = vunpack.c.l.b16 %v1355
        %v2811 = vunpack.c.h.b16 %v1355
        %v2812 = vunpack.c.l.b16 %v1356
        %v2813 = vunpack.c.h.b16 %v1356
        %v2814 = vunpack.c.l.b16 %v1357
        %v2815 = vunpack.c.h.b16 %v1357
        %v2816 = vunpack.c.l.b16 %v1358
        %v2817 = vunpack.c.h.b16 %v1358
        %v2818 = vunpack.c.l.b16 %v1359
        %v2819 = vunpack.c.h.b16 %v1359
        %v2820 = vunpack.c.l.b16 %v1360
        %v2821 = vunpack.c.h.b16 %v1360
        %v2822 = vunpack.c.l.b16 %v1361
        %v2823 = vunpack.c.h.b16 %v1361
        %v2824 = vunpack.c.l.b16 %v1362
        %v2825 = vunpack.c.h.b16 %v1362
        %v2826 = vunpack.c.l.b16 %v1363
        %v2827 = vunpack.c.h.b16 %v1363
        %v2828 = vunpack.c.l.b16 %v1364
        %v2829 = vunpack.c.h.b16 %v1364
        %v2830 = vunpack.c.l.b16 %v1365
        %v2831 = vunpack.c.h.b16 %v1365
        %v2832 = vunpack.c.l.b16 %v1366
        %v2833 = vunpack.c.h.b16 %v1366
        %v2834 = vunpack.c.l.b16 %v1367
        %v2835 = vunpack.c.h.b16 %v1367
        %v2836 = vunpack.c.l.b16 %v1368
        %v2837 = vunpack.c.h.b16 %v1368
        %v2838 = vunpack.c.l.b16 %v1369
        %v2839 = vunpack.c.h.b16 %v1369
        %v2840 = vunpack.c.l.b16 %v1370
        %v2841 = vunpack.c.h.b16 %v1370
        %v2842 = vunpack.c.l.b16 %v1371
        %v2843 = vunpack.c.h.b16 %v1371
        %v2844 = vunpack.c.l.b16 %v1372
        %v2845 = vunpack.c.h.b16 %v1372
        %v2846 = vunpack.c.l.b16 %v1373
        %v2847 = vunpack.c.h.b16 %v1373
        %v2848 = vunpack.c.l.b16 %v1374
        %v2849 = vunpack.c.h.b16 %v1374
        %v2850 = vunpack.c.l.b16 %v1375
        %v2851 = vunpack.c.h.b16 %v1375
        %v2852 = vunpack.c.l.b16 %v1376
        %v2853 = vunpack.c.h.b16 %v1376
        %v2854 = vunpack.c.l.b16 %v1377
        %v2855 = vunpack.c.h.b16 %v1377
        %v2856 = vunpack.c.l.b16 %v1378
        %v2857 = vunpack.c.h.b16 %v1378
        %v2858 = vunpack.c.l.b16 %v1379
        %v2859 = vunpack.c.h.b16 %v1379
        %v2860 = vunpack.c.l.b16 %v1380
        %v2861 = vunpack.c.h.b16 %v1380
        %v2862 = vunpack.c.l.b16 %v1381
        %v2863 = vunpack.c.h.b16 %v1381
        %v2864 = vunpack.c.l.b16 %v1382
        %v2865 = vunpack.c.h.b16 %v1382
        %v2866 = vunpack.c.l.b16 %v1383
        %v2867 = vunpack.c.h.b16 %v1383
        %v2868 = vunpack.c.l.b16 %v1384
        %v2869 = vunpack.c.h.b16 %v1384
        %v2870 = vunpack.c.l.b16 %v1385
        %v2871 = vunpack.c.h.b16 %v1385
        %v2872 = vunpack.c.l.b16 %v1386
        %v2873 = vunpack.c.h.b16 %v1386
        %v2874 = vunpack.c.l.b16 %v1387
        %v2875 = vunpack.c.h.b16 %v1387
        %v2876 = vunpack.c.l.b16 %v1388
        %v2877 = vunpack.c.h.b16 %v1388
        %v2878 = vunpack.c.l.b16 %v1389
        %v2879 = vunpack.c.h.b16 %v1389
        %v2880 = vunpack.c.l.b16 %v1390
        %v2881 = vunpack.c.h.b16 %v1390
        %v2882 = vunpack.c.l.b16 %v1391
        %v2883 = vunpack.c.h.b16 %v1391
        %v2884 = vunpack.c.l.b16 %v1392
        %v2885 = vunpack.c.h.b16 %v1392
        %v2886 = vunpack.c.l.b16 %v1393
        %v2887 = vunpack.c.h.b16 %v1393
        %v2888 = vunpack.c.l.b16 %v1394
        %v2889 = vunpack.c.h.b16 %v1394
        %v2890 = vunpack.c.l.b16 %v1395
        %v2891 = vunpack.c.h.b16 %v1395
        %v2892 = vunpack.c.l.b16 %v1396
        %v2893 = vunpack.c.h.b16 %v1396
        %v2894 = vunpack.c.l.b16 %v1397
        %v2895 = vunpack.c.h.b16 %v1397
        %v2896 = vunpack.c.l.b16 %v1398
        %v2897 = vunpack.c.h.b16 %v1398
        %v2898 = vunpack.c.l.b16 %v1399
        %v2899 = vunpack.c.h.b16 %v1399
        %v2900 = vunpack.c.l.b16 %v1400
        %v2901 = vunpack.c.h.b16 %v1400
        %v2902 = vunpack.c.l.b16 %v1401
        %v2903 = vunpack.c.h.b16 %v1401
        %v2904 = vunpack.c.l.b16 %v1402
        %v2905 = vunpack.c.h.b16 %v1402
        %v2906 = vunpack.c.l.b16 %v1403
        %v2907 = vunpack.c.h.b16 %v1403
        %v2908 = vunpack.c.l.b16 %v1404
        %v2909 = vunpack.c.h.b16 %v1404
        %v2910 = vunpack.c.l.b16 %v1405
        %v2911 = vunpack.c.h.b16 %v1405
        %v2912 = vunpack.c.l.b16 %v1406
        %v2913 = vunpack.c.h.b16 %v1406
        %v2914 = vunpack.c.l.b16 %v1407
        %v2915 = vunpack.c.h.b16 %v1407
        %v2916 = vunpack.c.l.b16 %v1408
        %v2917 = vunpack.c.h.b16 %v1408
        %v2918 = vunpack.c.l.b16 %v1409
        %v2919 = vunpack.c.h.b16 %v1409
        %v2920 = vunpack.c.l.b16 %v1410
        %v2921 = vunpack.c.h.b16 %v1410
        %v2922 = vunpack.c.l.b16 %v1411
        %v2923 = vunpack.c.h.b16 %v1411
        %v2924 = vunpack.c.l.b16 %v1412
        %v2925 = vunpack.c.h.b16 %v1412
        %v2926 = vunpack.c.l.b16 %v1413
        %v2927 = vunpack.c.h.b16 %v1413
        %v2928 = vunpack.c.l.b16 %v1414
        %v2929 = vunpack.c.h.b16 %v1414
        %v2930 = vunpack.c.l.b16 %v1415
        %v2931 = vunpack.c.h.b16 %v1415
        %v2932 = vunpack.c.l.b16 %v1416
        %v2933 = vunpack.c.h.b16 %v1416
        %v2934 = vunpack.c.l.b16 %v1417
        %v2935 = vunpack.c.h.b16 %v1417
        %v2936 = vunpack.c.l.b16 %v1418
        %v2937 = vunpack.c.h.b16 %v1418
        %v2938 = vunpack.c.l.b16 %v1419
        %v2939 = vunpack.c.h.b16 %v1419
        %v2940 = vunpack.c.l.b16 %v1420
        %v2941 = vunpack.c.h.b16 %v1420
        %v2942 = vunpack.c.l.b16 %v1421
        %v2943 = vunpack.c.h.b16 %v1421
        %v2944 = vunpack.c.l.b16 %v1422
        %v2945 = vunpack.c.h.b16 %v1422
        %v2946 = vunpack.c.l.b16 %v1423
        %v2947 = vunpack.c.h.b16 %v1423
        %v2948 = vunpack.c.l.b16 %v1424
        %v2949 = vunpack.c.h.b16 %v1424
        %v2950 = vunpack.c.l.b16 %v1425
        %v2951 = vunpack.c.h.b16 %v1425
        %v2952 = vunpack.c.l.b16 %v1426
        %v2953 = vunpack.c.h.b16 %v1426
        %v2954 = vunpack.c.l.b16 %v1427
        %v2955 = vunpack.c.h.b16 %v1427
        %v2956 = vunpack.c.l.b16 %v1428
        %v2957 = vunpack.c.h.b16 %v1428
        %v2958 = vunpack.c.l.b16 %v1429
        %v2959 = vunpack.c.h.b16 %v1429
        %v2960 = vunpack.c.l.b16 %v1430
        %v2961 = vunpack.c.h.b16 %v1430
        %v2962 = vunpack.c.l.b16 %v1431
        %v2963 = vunpack.c.h.b16 %v1431
        %v2964 = vunpack.c.l.b16 %v1432
        %v2965 = vunpack.c.h.b16 %v1432
        %v2966 = vunpack.c.l.b16 %v1433
        %v2967 = vunpack.c.h.b16 %v1433
        %v2968 = vunpack.c.l.b16 %v1434
        %v2969 = vunpack.c.h.b16 %v1434
        %v2970 = vunpack.c.l.b16 %v1435
        %v2971 = vunpack.c.h.b16 %v1435
        %v2972 = vunpack.c.l.b16 %v1436
        %v2973 = vunpack.c.h.b16 %v1436
        %v2974 = vunpack.c.l.b16 %v1437
        %v2975 = vunpack.c.h.b16 %v1437
        %v2976 = vunpack.c.l.b16 %v1438
        %v2977 = vunpack.c.h.b16 %v1438
        %v2978 = vunpack.c.l.b16 %v1439
        %v2979 = vunpack.c.h.b16 %v1439
        %v2980 = vunpack.c.l.b16 %v1440
        %v2981 = vunpack.c.h.b16 %v1440
        %v2982 = vunpack.c.l.b16 %v1441
        %v2983 = vunpack.c.h.b16 %v1441
        %v2984 = vunpack.c.l.b16 %v1442
        %v2985 = vunpack.c.h.b16 %v1442
        %v2986 = vunpack.c.l.b16 %v1443
        %v2987 = vunpack.c.h.b16 %v1443
        %v2988 = vunpack.c.l.b16 %v1444
        %v2989 = vunpack.c.h.b16 %v1444
        %v2990 = vunpack.c.l.b16 %v1445
        %v2991 = vunpack.c.h.b16 %v1445
        %v2992 = vunpack.c.l.b16 %v1446
        %v2993 = vunpack.c.h.b16 %v1446
        %v2994 = vunpack.c.l.b16 %v1447
        %v2995 = vunpack.c.h.b16 %v1447
        %v2996 = vunpack.c.l.b16 %v1448
        %v2997 = vunpack.c.h.b16 %v1448
        %v2998 = vunpack.c.l.b16 %v1449
        %v2999 = vunpack.c.h.b16 %v1449
        %v3000 = vunpack.c.l.b16 %v1450
        %v3001 = vunpack.c.h.b16 %v1450
        %v3002 = vunpack.c.l.b16 %v1451
        %v3003 = vunpack.c.h.b16 %v1451
        %v3004 = vunpack.c.l.b16 %v1452
        %v3005 = vunpack.c.h.b16 %v1452
        %v3006 = vunpack.c.l.b16 %v1453
        %v3007 = vunpack.c.h.b16 %v1453
        %v3008 = vunpack.c.l.b16 %v1454
        %v3009 = vunpack.c.h.b16 %v1454
        %v3010 = vunpack.c.l.b16 %v1455
        %v3011 = vunpack.c.h.b16 %v1455
        %v3012 = vunpack.c.l.b16 %v1456
        %v3013 = vunpack.c.h.b16 %v1456
        %v3014 = vunpack.c.l.b16 %v1457
        %v3015 = vunpack.c.h.b16 %v1457
        %v3016 = vunpack.c.l.b16 %v1458
        %v3017 = vunpack.c.h.b16 %v1458
        %v3018 = vunpack.c.l.b16 %v1459
        %v3019 = vunpack.c.h.b16 %v1459
        %v3020 = vunpack.c.l.b16 %v1460
        %v3021 = vunpack.c.h.b16 %v1460
        %v3022 = vunpack.c.l.b16 %v1461
        %v3023 = vunpack.c.h.b16 %v1461
        %v3024 = vunpack.c.l.b16 %v1462
        %v3025 = vunpack.c.h.b16 %v1462
        %v3026 = vunpack.c.l.b16 %v1463
        %v3027 = vunpack.c.h.b16 %v1463
        %v3028 = vunpack.c.l.b16 %v1464
        %v3029 = vunpack.c.h.b16 %v1464
        %v3030 = vunpack.c.l.b16 %v1465
        %v3031 = vunpack.c.h.b16 %v1465
        %v3032 = vunpack.c.l.b16 %v1466
        %v3033 = vunpack.c.h.b16 %v1466
        %v3034 = vunpack.c.l.b16 %v1467
        %v3035 = vunpack.c.h.b16 %v1467
        %v3036 = vunpack.c.l.b16 %v1468
        %v3037 = vunpack.c.h.b16 %v1468
        %v3038 = vunpack.c.l.b16 %v1469
        %v3039 = vunpack.c.h.b16 %v1469
        %v3040 = vunpack.c.l.b16 %v1470
        %v3041 = vunpack.c.h.b16 %v1470
        %v3042 = vunpack.c.l.b16 %v1471
        %v3043 = vunpack.c.h.b16 %v1471
        %v3044 = vunpack.c.l.b16 %v1472
        %v3045 = vunpack.c.h.b16 %v1472
        %v3046 = vunpack.c.l.b16 %v1473
        %v3047 = vunpack.c.h.b16 %v1473
        %v3048 = vunpack.c.l.b16 %v1474
        %v3049 = vunpack.c.h.b16 %v1474
        %v3050 = vunpack.c.l.b16 %v1475
        %v3051 = vunpack.c.h.b16 %v1475
        %v3052 = vunpack.c.l.b16 %v1476
        %v3053 = vunpack.c.h.b16 %v1476
        %v3054 = vunpack.c.l.b16 %v1477
        %v3055 = vunpack.c.h.b16 %v1477
        %v3056 = vunpack.c.l.b16 %v1478
        %v3057 = vunpack.c.h.b16 %v1478
        %v3058 = vunpack.c.l.b16 %v1479
        %v3059 = vunpack.c.h.b16 %v1479
        %v3060 = vunpack.c.l.b16 %v1480
        %v3061 = vunpack.c.h.b16 %v1480
        %v3062 = vunpack.c.l.b16 %v1481
        %v3063 = vunpack.c.h.b16 %v1481
        %v3064 = vpack.c.b16 %v2048, %v2040
        %v3065 = vpack.c.b16 %v2049, %v2041
        %v3066 = vpack.c.b16 %v2050, %v2042
        %v3067 = vpack.c.b16 %v2051, %v2043
        %v3068 = vpack.c.b16 %v2052, %v2044
        %v3069 = vpack.c.b16 %v2053, %v2045
        %v3070 = vpack.c.b16 %v2054, %v2046
        %v3071 = vpack.c.b16 %v2055, %v2047
        %v3072 = vpack.c.b16 %v2064, %v2056
        %v3073 = vpack.c.b16 %v2065, %v2057
        %v3074 = vpack.c.b16 %v2066, %v2058
        %v3075 = vpack.c.b16 %v2067, %v2059
        %v3076 = vpack.c.b16 %v2068, %v2060
        %v3077 = vpack.c.b16 %v2069, %v2061
        %v3078 = vpack.c.b16 %v2070, %v2062
        %v3079 = vpack.c.b16 %v2071, %v2063
        %v3080 = vpack.c.b16 %v2080, %v2072
        %v3081 = vpack.c.b16 %v2081, %v2073
        %v3082 = vpack.c.b16 %v2082, %v2074
        %v3083 = vpack.c.b16 %v2083, %v2075
        %v3084 = vpack.c.b16 %v2084, %v2076
        %v3085 = vpack.c.b16 %v2085, %v2077
        %v3086 = vpack.c.b16 %v2086, %v2078
        %v3087 = vpack.c.b16 %v2087, %v2079
        %v3088 = vpack.c.b16 %v2096, %v2088
        %v3089 = vpack.c.b16 %v2097, %v2089
        %v3090 = vpack.c.b16 %v2098, %v2090
        %v3091 = vpack.c.b16 %v2099, %v2091
        %v3092 = vpack.c.b16 %v2100, %v2092
        %v3093 = vpack.c.b16 %v2101, %v2093
        %v3094 = vpack.c.b16 %v2102, %v2094
        %v3095 = vpack.c.b16 %v2103, %v2095
        %v3096 = vpack.c.b16 %v2112, %v2104
        %v3097 = vpack.c.b16 %v2113, %v2105
        %v3098 = vpack.c.b16 %v2114, %v2106
        %v3099 = vpack.c.b16 %v2115, %v2107
        %v3100 = vpack.c.b16 %v2116, %v2108
        %v3101 = vpack.c.b16 %v2117, %v2109
        %v3102 = vpack.c.b16 %v2118, %v2110
        %v3103 = vpack.c.b16 %v2119, %v2111
        %v3104 = vpack.c.b16 %v2128, %v2120
        %v3105 = vpack.c.b16 %v2129, %v2121
        %v3106 = vpack.c.b16 %v2130, %v2122
        %v3107 = vpack.c.b16 %v2131, %v2123
        %v3108 = vpack.c.b16 %v2132, %v2124
        %v3109 = vpack.c.b16 %v2133, %v2125
        %v3110 = vpack.c.b16 %v2134, %v2126
        %v3111 = vpack.c.b16 %v2135, %v2127
        %v3112 = vpack.c.b16 %v2144, %v2136
        %v3113 = vpack.c.b16 %v2145, %v2137
        %v3114 = vpack.c.b16 %v2146, %v2138
        %v3115 = vpack.c.b16 %v2147, %v2139
        %v3116 = vpack.c.b16 %v2148, %v2140
        %v3117 = vpack.c.b16 %v2149, %v2141
        %v3118 = vpack.c.b16 %v2150, %v2142
        %v3119 = vpack.c.b16 %v2151, %v2143
        %v3120 = vpack.c.b16 %v2160, %v2152
        %v3121 = vpack.c.b16 %v2161, %v2153
        %v3122 = vpack.c.b16 %v2162, %v2154
        %v3123 = vpack.c.b16 %v2163, %v2155
        %v3124 = vpack.c.b16 %v2164, %v2156
        %v3125 = vpack.c.b16 %v2165, %v2157
        %v3126 = vpack.c.b16 %v2166, %v2158
        %v3127 = vpack.c.b16 %v2167, %v2159
        %v3128 = vpack.c.b16 %v2176, %v2168
        %v3129 = vpack.c.b16 %v2177, %v2169
        %v3130 = vpack.c.b16 %v2178, %v2170
        %v3131 = vpack.c.b16 %v2179, %v2171
        %v3132 = vpack.c.b16 %v2180, %v2172
        %v3133 = vpack.c.b16 %v2181, %v2173
        %v3134 = vpack.c.b16 %v2182, %v2174
        %v3135 = vpack.c.b16 %v2183, %v2175
        %v3136 = vpack.c.b16 %v2192, %v2184
        %v3137 = vpack.c.b16 %v2193, %v2185
        %v3138 = vpack.c.b16 %v2194, %v2186
        %v3139 = vpack.c.b16 %v2195, %v2187
        %v3140 = vpack.c.b16 %v2196, %v2188
        %v3141 = vpack.c.b16 %v2197, %v2189
        %v3142 = vpack.c.b16 %v2198, %v2190
        %v3143 = vpack.c.b16 %v2199, %v2191
        %v3144 = vpack.c.b16 %v2208, %v2200
        %v3145 = vpack.c.b16 %v2209, %v2201
        %v3146 = vpack.c.b16 %v2210, %v2202
        %v3147 = vpack.c.b16 %v2211, %v2203
        %v3148 = vpack.c.b16 %v2212, %v2204
        %v3149 = vpack.c.b16 %v2213, %v2205
        %v3150 = vpack.c.b16 %v2214, %v2206
        %v3151 = vpack.c.b16 %v2215, %v2207
        %v3152 = vpack.c.b16 %v2224, %v2216
        %v3153 = vpack.c.b16 %v2225, %v2217
        %v3154 = vpack.c.b16 %v2226, %v2218
        %v3155 = vpack.c.b16 %v2227, %v2219
        %v3156 = vpack.c.b16 %v2228, %v2220
        %v3157 = vpack.c.b16 %v2229, %v2221
        %v3158 = vpack.c.b16 %v2230, %v2222
        %v3159 = vpack.c.b16 %v2231, %v2223
        %v3160 = vpack.c.b16 %v2240, %v2232
        %v3161 = vpack.c.b16 %v2241, %v2233
        %v3162 = vpack.c.b16 %v2242, %v2234
        %v3163 = vpack.c.b16 %v2243, %v2235
        %v3164 = vpack.c.b16 %v2244, %v2236
        %v3165 = vpack.c.b16 %v2245, %v2237
        %v3166 = vpack.c.b16 %v2246, %v2238
        %v3167 = vpack.c.b16 %v2247, %v2239
        %v3168 = vpack.c.b16 %v2256, %v2248
        %v3169 = vpack.c.b16 %v2257, %v2249
        %v3170 = vpack.c.b16 %v2258, %v2250
        %v3171 = vpack.c.b16 %v2259, %v2251
        %v3172 = vpack.c.b16 %v2260, %v2252
        %v3173 = vpack.c.b16 %v2261, %v2253
        %v3174 = vpack.c.b16 %v2262, %v2254
        %v3175 = vpack.c.b16 %v2263, %v2255
        %v3176 = vpack.c.b16 %v2272, %v2264
        %v3177 = vpack.c.b16 %v2273, %v2265
        %v3178 = vpack.c.b16 %v2274, %v2266
        %v3179 = vpack.c.b16 %v2275, %v2267
        %v3180 = vpack.c.b16 %v2276, %v2268
        %v3181 = vpack.c.b16 %v2277, %v2269
        %v3182 = vpack.c.b16 %v2278, %v2270
        %v3183 = vpack.c.b16 %v2279, %v2271
        %v3184 = vpack.c.b16 %v2288, %v2280
        %v3185 = vpack.c.b16 %v2289, %v2281
        %v3186 = vpack.c.b16 %v2290, %v2282
        %v3187 = vpack.c.b16 %v2291, %v2283
        %v3188 = vpack.c.b16 %v2292, %v2284
        %v3189 = vpack.c.b16 %v2293, %v2285
        %v3190 = vpack.c.b16 %v2294, %v2286
        %v3191 = vpack.c.b16 %v2295, %v2287
        %v3192 = vpack.c.b16 %v2304, %v2296
        %v3193 = vpack.c.b16 %v2305, %v2297
        %v3194 = vpack.c.b16 %v2306, %v2298
        %v3195 = vpack.c.b16 %v2307, %v2299
        %v3196 = vpack.c.b16 %v2308, %v2300
        %v3197 = vpack.c.b16 %v2309, %v2301
        %v3198 = vpack.c.b16 %v2310, %v2302
        %v3199 = vpack.c.b16 %v2311, %v2303
        %v3200 = vpack.c.b16 %v2320, %v2312
        %v3201 = vpack.c.b16 %v2321, %v2313
        %v3202 = vpack.c.b16 %v2322, %v2314
        %v3203 = vpack.c.b16 %v2323, %v2315
        %v3204 = vpack.c.b16 %v2324, %v2316
        %v3205 = vpack.c.b16 %v2325, %v2317
        %v3206 = vpack.c.b16 %v2326, %v2318
        %v3207 = vpack.c.b16 %v2327, %v2319
        %v3208 = vpack.c.b16 %v2336, %v2328
        %v3209 = vpack.c.b16 %v2337, %v2329
        %v3210 = vpack.c.b16 %v2338, %v2330
        %v3211 = vpack.c.b16 %v2339, %v2331
        %v3212 = vpack.c.b16 %v2340, %v2332
        %v3213 = vpack.c.b16 %v2341, %v2333
        %v3214 = vpack.c.b16 %v2342, %v2334
        %v3215 = vpack.c.b16 %v2343, %v2335
        %v3216 = vpack.c.b16 %v2352, %v2344
        %v3217 = vpack.c.b16 %v2353, %v2345
        %v3218 = vpack.c.b16 %v2354, %v2346
        %v3219 = vpack.c.b16 %v2355, %v2347
        %v3220 = vpack.c.b16 %v2356, %v2348
        %v3221 = vpack.c.b16 %v2357, %v2349
        %v3222 = vpack.c.b16 %v2358, %v2350
        %v3223 = vpack.c.b16 %v2359, %v2351
        %v3224 = vpack.c.b16 %v2368, %v2360
        %v3225 = vpack.c.b16 %v2369, %v2361
        %v3226 = vpack.c.b16 %v2370, %v2362
        %v3227 = vpack.c.b16 %v2371, %v2363
        %v3228 = vpack.c.b16 %v2372, %v2364
        %v3229 = vpack.c.b16 %v2373, %v2365
        %v3230 = vpack.c.b16 %v2374, %v2366
        %v3231 = vpack.c.b16 %v2375, %v2367
        %v3232 = vpack.c.b16 %v2384, %v2376
        %v3233 = vpack.c.b16 %v2385, %v2377
        %v3234 = vpack.c.b16 %v2386, %v2378
        %v3235 = vpack.c.b16 %v2387, %v2379
        %v3236 = vpack.c.b16 %v2388, %v2380
        %v3237 = vpack.c.b16 %v2389, %v2381
        %v3238 = vpack.c.b16 %v2390, %v2382
        %v3239 = vpack.c.b16 %v2391, %v2383
        %v3240 = vpack.c.b16 %v2400, %v2392
        %v3241 = vpack.c.b16 %v2401, %v2393
        %v3242 = vpack.c.b16 %v2402, %v2394
        %v3243 = vpack.c.b16 %v2403, %v2395
        %v3244 = vpack.c.b16 %v2404, %v2396
        %v3245 = vpack.c.b16 %v2405, %v2397
        %v3246 = vpack.c.b16 %v2406, %v2398
        %v3247 = vpack.c.b16 %v2407, %v2399
        %v3248 = vpack.c.b16 %v2416, %v2408
        %v3249 = vpack.c.b16 %v2417, %v2409
        %v3250 = vpack.c.b16 %v2418, %v2410
        %v3251 = vpack.c.b16 %v2419, %v2411
        %v3252 = vpack.c.b16 %v2420, %v2412
        %v3253 = vpack.c.b16 %v2421, %v2413
        %v3254 = vpack.c.b16 %v2422, %v2414
        %v3255 = vpack.c.b16 %v2423, %v2415
        %v3256 = vpack.c.b16 %v2432, %v2424
        %v3257 = vpack.c.b16 %v2433, %v2425
        %v3258 = vpack.c.b16 %v2434, %v2426
        %v3259 = vpack.c.b16 %v2435, %v2427
        %v3260 = vpack.c.b16 %v2436, %v2428
        %v3261 = vpack.c.b16 %v2437, %v2429
        %v3262 = vpack.c.b16 %v2438, %v2430
        %v3263 = vpack.c.b16 %v2439, %v2431
        %v3264 = vpack.c.b16 %v2448, %v2440
        %v3265 = vpack.c.b16 %v2449, %v2441
        %v3266 = vpack.c.b16 %v2450, %v2442
        %v3267 = vpack.c.b16 %v2451, %v2443
        %v3268 = vpack.c.b16 %v2452, %v2444
        %v3269 = vpack.c.b16 %v2453, %v2445
        %v3270 = vpack.c.b16 %v2454, %v2446
        %v3271 = vpack.c.b16 %v2455, %v2447
        %v3272 = vpack.c.b16 %v2464, %v2456
        %v3273 = vpack.c.b16 %v2465, %v2457
        %v3274 = vpack.c.b16 %v2466, %v2458
        %v3275 = vpack.c.b16 %v2467, %v2459
        %v3276 = vpack.c.b16 %v2468, %v2460
        %v3277 = vpack.c.b16 %v2469, %v2461
        %v3278 = vpack.c.b16 %v2470, %v2462
        %v3279 = vpack.c.b16 %v2471, %v2463
        %v3280 = vpack.c.b16 %v2480, %v2472
        %v3281 = vpack.c.b16 %v2481, %v2473
        %v3282 = vpack.c.b16 %v2482, %v2474
        %v3283 = vpack.c.b16 %v2483, %v2475
        %v3284 = vpack.c.b16 %v2484, %v2476
        %v3285 = vpack.c.b16 %v2485, %v2477
        %v3286 = vpack.c.b16 %v2486, %v2478
        %v3287 = vpack.c.b16 %v2487, %v2479
        %v3288 = vpack.c.b16 %v2496, %v2488
        %v3289 = vpack.c.b16 %v2497, %v2489
        %v3290 = vpack.c.b16 %v2498, %v2490
        %v3291 = vpack.c.b16 %v2499, %v2491
        %v3292 = vpack.c.b16 %v2500, %v2492
        %v3293 = vpack.c.b16 %v2501, %v2493
        %v3294 = vpack.c.b16 %v2502, %v2494
        %v3295 = vpack.c.b16 %v2503, %v2495
        %v3296 = vpack.c.b16 %v2512, %v2504
        %v3297 = vpack.c.b16 %v2513, %v2505
        %v3298 = vpack.c.b16 %v2514, %v2506
        %v3299 = vpack.c.b16 %v2515, %v2507
        %v3300 = vpack.c.b16 %v2516, %v2508
        %v3301 = vpack.c.b16 %v2517, %v2509
        %v3302 = vpack.c.b16 %v2518, %v2510
        %v3303 = vpack.c.b16 %v2519, %v2511
        %v3304 = vpack.c.b16 %v2528, %v2520
        %v3305 = vpack.c.b16 %v2529, %v2521
        %v3306 = vpack.c.b16 %v2530, %v2522
        %v3307 = vpack.c.b16 %v2531, %v2523
        %v3308 = vpack.c.b16 %v2532, %v2524
        %v3309 = vpack.c.b16 %v2533, %v2525
        %v3310 = vpack.c.b16 %v2534, %v2526
        %v3311 = vpack.c.b16 %v2535, %v2527
        %v3312 = vpack.c.b16 %v2544, %v2536
        %v3313 = vpack.c.b16 %v2545, %v2537
        %v3314 = vpack.c.b16 %v2546, %v2538
        %v3315 = vpack.c.b16 %v2547, %v2539
        %v3316 = vpack.c.b16 %v2548, %v2540
        %v3317 = vpack.c.b16 %v2549, %v2541
        %v3318 = vpack.c.b16 %v2550, %v2542
        %v3319 = vpack.c.b16 %v2551, %v2543
        %v3320 = vpack.c.b16 %v2560, %v2552
        %v3321 = vpack.c.b16 %v2561, %v2553
        %v3322 = vpack.c.b16 %v2562, %v2554
        %v3323 = vpack.c.b16 %v2563, %v2555
        %v3324 = vpack.c.b16 %v2564, %v2556
        %v3325 = vpack.c.b16 %v2565, %v2557
        %v3326 = vpack.c.b16 %v2566, %v2558
        %v3327 = vpack.c.b16 %v2567, %v2559
        %v3328 = vpack.c.b16 %v2576, %v2568
        %v3329 = vpack.c.b16 %v2577, %v2569
        %v3330 = vpack.c.b16 %v2578, %v2570
        %v3331 = vpack.c.b16 %v2579, %v2571
        %v3332 = vpack.c.b16 %v2580, %v2572
        %v3333 = vpack.c.b16 %v2581, %v2573
        %v3334 = vpack.c.b16 %v2582, %v2574
        %v3335 = vpack.c.b16 %v2583, %v2575
        %v3336 = vpack.c.b16 %v2592, %v2584
        %v3337 = vpack.c.b16 %v2593, %v2585
        %v3338 = vpack.c.b16 %v2594, %v2586
        %v3339 = vpack.c.b16 %v2595, %v2587
        %v3340 = vpack.c.b16 %v2596, %v2588
        %v3341 = vpack.c.b16 %v2597, %v2589
        %v3342 = vpack.c.b16 %v2598, %v2590
        %v3343 = vpack.c.b16 %v2599, %v2591
        %v3344 = vpack.c.b16 %v2608, %v2600
        %v3345 = vpack.c.b16 %v2609, %v2601
        %v3346 = vpack.c.b16 %v2610, %v2602
        %v3347 = vpack.c.b16 %v2611, %v2603
        %v3348 = vpack.c.b16 %v2612, %v2604
        %v3349 = vpack.c.b16 %v2613, %v2605
        %v3350 = vpack.c.b16 %v2614, %v2606
        %v3351 = vpack.c.b16 %v2615, %v2607
        %v3352 = vpack.c.b16 %v2624, %v2616
        %v3353 = vpack.c.b16 %v2625, %v2617
        %v3354 = vpack.c.b16 %v2626, %v2618
        %v3355 = vpack.c.b16 %v2627, %v2619
        %v3356 = vpack.c.b16 %v2628, %v2620
        %v3357 = vpack.c.b16 %v2629, %v2621
        %v3358 = vpack.c.b16 %v2630, %v2622
        %v3359 = vpack.c.b16 %v2631, %v2623
        %v3360 = vpack.c.b16 %v2640, %v2632
        %v3361 = vpack.c.b16 %v2641, %v2633
        %v3362 = vpack.c.b16 %v2642, %v2634
        %v3363 = vpack.c.b16 %v2643, %v2635
        %v3364 = vpack.c.b16 %v2644, %v2636
        %v3365 = vpack.c.b16 %v2645, %v2637
        %v3366 = vpack.c.b16 %v2646, %v2638
        %v3367 = vpack.c.b16 %v2647, %v2639
        %v3368 = vpack.c.b16 %v2656, %v2648
        %v3369 = vpack.c.b16 %v2657, %v2649
        %v3370 = vpack.c.b16 %v2658, %v2650
        %v3371 = vpack.c.b16 %v2659, %v2651
        %v3372 = vpack.c.b16 %v2660, %v2652
        %v3373 = vpack.c.b16 %v2661, %v2653
        %v3374 = vpack.c.b16 %v2662, %v2654
        %v3375 = vpack.c.b16 %v2663, %v2655
        %v3376 = vpack.c.b16 %v2672, %v2664
        %v3377 = vpack.c.b16 %v2673, %v2665
        %v3378 = vpack.c.b16 %v2674, %v2666
        %v3379 = vpack.c.b16 %v2675, %v2667
        %v3380 = vpack.c.b16 %v2676, %v2668
        %v3381 = vpack.c.b16 %v2677, %v2669
        %v3382 = vpack.c.b16 %v2678, %v2670
        %v3383 = vpack.c.b16 %v2679, %v2671
        %v3384 = vpack.c.b16 %v2688, %v2680
        %v3385 = vpack.c.b16 %v2689, %v2681
        %v3386 = vpack.c.b16 %v2690, %v2682
        %v3387 = vpack.c.b16 %v2691, %v2683
        %v3388 = vpack.c.b16 %v2692, %v2684
        %v3389 = vpack.c.b16 %v2693, %v2685
        %v3390 = vpack.c.b16 %v2694, %v2686
        %v3391 = vpack.c.b16 %v2695, %v2687
        %v3392 = vpack.c.b16 %v2704, %v2696
        %v3393 = vpack.c.b16 %v2705, %v2697
        %v3394 = vpack.c.b16 %v2706, %v2698
        %v3395 = vpack.c.b16 %v2707, %v2699
        %v3396 = vpack.c.b16 %v2708, %v2700
        %v3397 = vpack.c.b16 %v2709, %v2701
        %v3398 = vpack.c.b16 %v2710, %v2702
        %v3399 = vpack.c.b16 %v2711, %v2703
        %v3400 = vpack.c.b16 %v2720, %v2712
        %v3401 = vpack.c.b16 %v2721, %v2713
        %v3402 = vpack.c.b16 %v2722, %v2714
        %v3403 = vpack.c.b16 %v2723, %v2715
        %v3404 = vpack.c.b16 %v2724, %v2716
        %v3405 = vpack.c.b16 %v2725, %v2717
        %v3406 = vpack.c.b16 %v2726, %v2718
        %v3407 = vpack.c.b16 %v2727, %v2719
        %v3408 = vpack.c.b16 %v2736, %v2728
        %v3409 = vpack.c.b16 %v2737, %v2729
        %v3410 = vpack.c.b16 %v2738, %v2730
        %v3411 = vpack.c.b16 %v2739, %v2731
        %v3412 = vpack.c.b16 %v2740, %v2732
        %v3413 = vpack.c.b16 %v2741, %v2733
        %v3414 = vpack.c.b16 %v2742, %v2734
        %v3415 = vpack.c.b16 %v2743, %v2735
        %v3416 = vpack.c.b16 %v2752, %v2744
        %v3417 = vpack.c.b16 %v2753, %v2745
        %v3418 = vpack.c.b16 %v2754, %v2746
        %v3419 = vpack.c.b16 %v2755, %v2747
        %v3420 = vpack.c.b16 %v2756, %v2748
        %v3421 = vpack.c.b16 %v2757, %v2749
        %v3422 = vpack.c.b16 %v2758, %v2750
        %v3423 = vpack.c.b16 %v2759, %v2751
        %v3424 = vpack.c.b16 %v2768, %v2760
        %v3425 = vpack.c.b16 %v2769, %v2761
        %v3426 = vpack.c.b16 %v2770, %v2762
        %v3427 = vpack.c.b16 %v2771, %v2763
        %v3428 = vpack.c.b16 %v2772, %v2764
        %v3429 = vpack.c.b16 %v2773, %v2765
        %v3430 = vpack.c.b16 %v2774, %v2766
        %v3431 = vpack.c.b16 %v2775, %v2767
        %v3432 = vpack.c.b16 %v2784, %v2776
        %v3433 = vpack.c.b16 %v2785, %v2777
        %v3434 = vpack.c.b16 %v2786, %v2778
        %v3435 = vpack.c.b16 %v2787, %v2779
        %v3436 = vpack.c.b16 %v2788, %v2780
        %v3437 = vpack.c.b16 %v2789, %v2781
        %v3438 = vpack.c.b16 %v2790, %v2782
        %v3439 = vpack.c.b16 %v2791, %v2783
        %v3440 = vpack.c.b16 %v2800, %v2792
        %v3441 = vpack.c.b16 %v2801, %v2793
        %v3442 = vpack.c.b16 %v2802, %v2794
        %v3443 = vpack.c.b16 %v2803, %v2795
        %v3444 = vpack.c.b16 %v2804, %v2796
        %v3445 = vpack.c.b16 %v2805, %v2797
        %v3446 = vpack.c.b16 %v2806, %v2798
        %v3447 = vpack.c.b16 %v2807, %v2799
        %v3448 = vpack.c.b16 %v2816, %v2808
        %v3449 = vpack.c.b16 %v2817, %v2809
        %v3450 = vpack.c.b16 %v2818, %v2810
        %v3451 = vpack.c.b16 %v2819, %v2811
        %v3452 = vpack.c.b16 %v2820, %v2812
        %v3453 = vpack.c.b16 %v2821, %v2813
        %v3454 = vpack.c.b16 %v2822, %v2814
        %v3455 = vpack.c.b16 %v2823, %v2815
        %v3456 = vpack.c.b16 %v2832, %v2824
        %v3457 = vpack.c.b16 %v2833, %v2825
        %v3458 = vpack.c.b16 %v2834, %v2826
        %v3459 = vpack.c.b16 %v2835, %v2827
        %v3460 = vpack.c.b16 %v2836, %v2828
        %v3461 = vpack.c.b16 %v2837, %v2829
        %v3462 = vpack.c.b16 %v2838, %v2830
        %v3463 = vpack.c.b16 %v2839, %v2831
        %v3464 = vpack.c.b16 %v2848, %v2840
        %v3465 = vpack.c.b16 %v2849, %v2841
        %v3466 = vpack.c.b16 %v2850, %v2842
        %v3467 = vpack.c.b16 %v2851, %v2843
        %v3468 = vpack.c.b16 %v2852, %v2844
        %v3469 = vpack.c.b16 %v2853, %v2845
        %v3470 = vpack.c.b16 %v2854, %v2846
        %v3471 = vpack.c.b16 %v2855, %v2847
        %v3472 = vpack.c.b16 %v2864, %v2856
        %v3473 = vpack.c.b16 %v2865, %v2857
        %v3474 = vpack.c.b16 %v2866, %v2858
        %v3475 = vpack.c.b16 %v2867, %v2859
        %v3476 = vpack.c.b16 %v2868, %v2860
        %v3477 = vpack.c.b16 %v2869, %v2861
        %v3478 = vpack.c.b16 %v2870, %v2862
        %v3479 = vpack.c.b16 %v2871, %v2863
        %v3480 = vpack.c.b16 %v2880, %v2872
        %v3481 = vpack.c.b16 %v2881, %v2873
        %v3482 = vpack.c.b16 %v2882, %v2874
        %v3483 = vpack.c.b16 %v2883, %v2875
        %v3484 = vpack.c.b16 %v2884, %v2876
        %v3485 = vpack.c.b16 %v2885, %v2877
        %v3486 = vpack.c.b16 %v2886, %v2878
        %v3487 = vpack.c.b16 %v2887, %v2879
        %v3488 = vpack.c.b16 %v2896, %v2888
        %v3489 = vpack.c.b16 %v2897, %v2889
        %v3490 = vpack.c.b16 %v2898, %v2890
        %v3491 = vpack.c.b16 %v2899, %v2891
        %v3492 = vpack.c.b16 %v2900, %v2892
        %v3493 = vpack.c.b16 %v2901, %v2893
        %v3494 = vpack.c.b16 %v2902, %v2894
        %v3495 = vpack.c.b16 %v2903, %v2895
        %v3496 = vpack.c.b16 %v2912, %v2904
        %v3497 = vpack.c.b16 %v2913, %v2905
        %v3498 = vpack.c.b16 %v2914, %v2906
        %v3499 = vpack.c.b16 %v2915, %v2907
        %v3500 = vpack.c.b16 %v2916, %v2908
        %v3501 = vpack.c.b16 %v2917, %v2909
        %v3502 = vpack.c.b16 %v2918, %v2910
        %v3503 = vpack.c.b16 %v2919, %v2911
        %v3504 = vpack.c.b16 %v2928, %v2920
        %v3505 = vpack.c.b16 %v2929, %v2921
        %v3506 = vpack.c.b16 %v2930, %v2922
        %v3507 = vpack.c.b16 %v2931, %v2923
        %v3508 = vpack.c.b16 %v2932, %v2924
        %v3509 = vpack.c.b16 %v2933, %v2925
        %v3510 = vpack.c.b16 %v2934, %v2926
        %v3511 = vpack.c.b16 %v2935, %v2927
        %v3512 = vpack.c.b16 %v2944, %v2936
        %v3513 = vpack.c.b16 %v2945, %v2937
        %v3514 = vpack.c.b16 %v2946, %v2938
        %v3515 = vpack.c.b16 %v2947, %v2939
        %v3516 = vpack.c.b16 %v2948, %v2940
        %v3517 = vpack.c.b16 %v2949, %v2941
        %v3518 = vpack.c.b16 %v2950, %v2942
        %v3519 = vpack.c.b16 %v2951, %v2943
        %v3520 = vpack.c.b16 %v2960, %v2952
        %v3521 = vpack.c.b16 %v2961, %v2953
        %v3522 = vpack.c.b16 %v2962, %v2954
        %v3523 = vpack.c.b16 %v2963, %v2955
        %v3524 = vpack.c.b16 %v2964, %v2956
        %v3525 = vpack.c.b16 %v2965, %v2957
        %v3526 = vpack.c.b16 %v2966, %v2958
        %v3527 = vpack.c.b16 %v2967, %v2959
        %v3528 = vpack.c.b16 %v2976, %v2968
        %v3529 = vpack.c.b16 %v2977, %v2969
        %v3530 = vpack.c.b16 %v2978, %v2970
        %v3531 = vpack.c.b16 %v2979, %v2971
        %v3532 = vpack.c.b16 %v2980, %v2972
        %v3533 = vpack.c.b16 %v2981, %v2973
        %v3534 = vpack.c.b16 %v2982, %v2974
        %v3535 = vpack.c.b16 %v2983, %v2975
        %v3536 = vpack.c.b16 %v2992, %v2984
        %v3537 = vpack.c.b16 %v2993, %v2985
        %v3538 = vpack.c.b16 %v2994, %v2986
        %v3539 = vpack.c.b16 %v2995, %v2987
        %v3540 = vpack.c.b16 %v2996, %v2988
        %v3541 = vpack.c.b16 %v2997, %v2989
        %v3542 = vpack.c.b16 %v2998, %v2990
        %v3543 = vpack.c.b16 %v2999, %v2991
        %v3544 = vpack.c.b16 %v3008, %v3000
        %v3545 = vpack.c.b16 %v3009, %v3001
        %v3546 = vpack.c.b16 %v3010, %v3002
        %v3547 = vpack.c.b16 %v3011, %v3003
        %v3548 = vpack.c.b16 %v3012, %v3004
        %v3549 = vpack.c.b16 %v3013, %v3005
        %v3550 = vpack.c.b16 %v3014, %v3006
        %v3551 = vpack.c.b16 %v3015, %v3007
        %v3552 = vpack.c.b16 %v3024, %v3016
        %v3553 = vpack.c.b16 %v3025, %v3017
        %v3554 = vpack.c.b16 %v3026, %v3018
        %v3555 = vpack.c.b16 %v3027, %v3019
        %v3556 = vpack.c.b16 %v3028, %v3020
        %v3557 = vpack.c.b16 %v3029, %v3021
        %v3558 = vpack.c.b16 %v3030, %v3022
        %v3559 = vpack.c.b16 %v3031, %v3023
        %v3560 = vpack.c.b16 %v3040, %v3032
        %v3561 = vpack.c.b16 %v3041, %v3033
        %v3562 = vpack.c.b16 %v3042, %v3034
        %v3563 = vpack.c.b16 %v3043, %v3035
        %v3564 = vpack.c.b16 %v3044, %v3036
        %v3565 = vpack.c.b16 %v3045, %v3037
        %v3566 = vpack.c.b16 %v3046, %v3038
        %v3567 = vpack.c.b16 %v3047, %v3039
        %v3568 = vpack.c.b16 %v3056, %v3048
        %v3569 = vpack.c.b16 %v3057, %v3049
        %v3570 = vpack.c.b16 %v3058, %v3050
        %v3571 = vpack.c.b16 %v3059, %v3051
        %v3572 = vpack.c.b16 %v3060, %v3052
        %v3573 = vpack.c.b16 %v3061, %v3053
        %v3574 = vpack.c.b16 %v3062, %v3054
        %v3575 = vpack.c.b16 %v3063, %v3055
        %4088 = vmatpush.bf16.msra.mxu0 %v3120
        %4089 = vmatpush.bf16.msra.mxu0 %v3112
        %4090 = vmatpush.bf16.msra.mxu0 %v3104
        %4091 = vmatpush.bf16.msra.mxu0 %v3096
        %4092 = vmatpush.bf16.msra.mxu0 %v3088
        %4093 = vmatpush.bf16.msra.mxu0 %v3080
        %4094 = vmatpush.bf16.msra.mxu0 %v3072
        %4095 = vmatpush.bf16.msra.mxu0 %v3064
        %4096 = vmatmul.bf16.gmra.mxu0 %v1512
        %v4097 = vpop.f32.mrf.mxu0
        %v4098 = vadd.f32 %v1484, %v4097
        %v4099 = vpop.f32.mrf.mxu0
        %4100 = vdwg.mxu0
        %4101 = vmatpush.bf16.msra.mxu0 %v3184
        %4102 = vmatpush.bf16.msra.mxu0 %v3176
        %4103 = vmatpush.bf16.msra.mxu0 %v3168
        %4104 = vmatpush.bf16.msra.mxu0 %v3160
        %4105 = vmatpush.bf16.msra.mxu0 %v3152
        %4106 = vmatpush.bf16.msra.mxu0 %v3144
        %4107 = vmatpush.bf16.msra.mxu0 %v3136
        %4108 = vmatpush.bf16.msra.mxu0 %v3128
        %4109 = vmatmul.bf16.gmra.mxu0 %v1513
        %v4110 = vpop.f32.mrf.mxu0
        %v4111 = vadd.f32 %v4098, %v4110
        %v4112 = vpop.f32.mrf.mxu0
        %4113 = vdwg.mxu0
        %4114 = vmatpush.bf16.msra.mxu0 %v3248
        %4115 = vmatpush.bf16.msra.mxu0 %v3240
        %4116 = vmatpush.bf16.msra.mxu0 %v3232
        %4117 = vmatpush.bf16.msra.mxu0 %v3224
        %4118 = vmatpush.bf16.msra.mxu0 %v3216
        %4119 = vmatpush.bf16.msra.mxu0 %v3208
        %4120 = vmatpush.bf16.msra.mxu0 %v3200
        %4121 = vmatpush.bf16.msra.mxu0 %v3192
        %4122 = vmatmul.bf16.gmra.mxu0 %v1514
        %v4123 = vpop.f32.mrf.mxu0
        %v4124 = vadd.f32 %v4111, %v4123
        %v4125 = vpop.f32.mrf.mxu0
        %4126 = vdwg.mxu0
        %4127 = vmatpush.bf16.msra.mxu0 %v3312
        %4128 = vmatpush.bf16.msra.mxu0 %v3304
        %4129 = vmatpush.bf16.msra.mxu0 %v3296
        %4130 = vmatpush.bf16.msra.mxu0 %v3288
        %4131 = vmatpush.bf16.msra.mxu0 %v3280
        %4132 = vmatpush.bf16.msra.mxu0 %v3272
        %4133 = vmatpush.bf16.msra.mxu0 %v3264
        %4134 = vmatpush.bf16.msra.mxu0 %v3256
        %4135 = vmatmul.bf16.gmra.mxu0 %v1515
        %v4136 = vpop.f32.mrf.mxu0
        %v4137 = vadd.f32 %v4124, %v4136
        %v4138 = vpop.f32.mrf.mxu0
        %4139 = vdwg.mxu0
        %4140 = vmatpush.bf16.msra.mxu0 %v3376
        %4141 = vmatpush.bf16.msra.mxu0 %v3368
        %4142 = vmatpush.bf16.msra.mxu0 %v3360
        %4143 = vmatpush.bf16.msra.mxu0 %v3352
        %4144 = vmatpush.bf16.msra.mxu0 %v3344
        %4145 = vmatpush.bf16.msra.mxu0 %v3336
        %4146 = vmatpush.bf16.msra.mxu0 %v3328
        %4147 = vmatpush.bf16.msra.mxu0 %v3320
        %4148 = vmatmul.bf16.gmra.mxu0 %v1516
        %v4149 = vpop.f32.mrf.mxu0
        %v4150 = vadd.f32 %v4137, %v4149
        %v4151 = vpop.f32.mrf.mxu0
        %4152 = vdwg.mxu0
        %4153 = vmatpush.bf16.msra.mxu0 %v3440
        %4154 = vmatpush.bf16.msra.mxu0 %v3432
        %4155 = vmatpush.bf16.msra.mxu0 %v3424
        %4156 = vmatpush.bf16.msra.mxu0 %v3416
        %4157 = vmatpush.bf16.msra.mxu0 %v3408
        %4158 = vmatpush.bf16.msra.mxu0 %v3400
        %4159 = vmatpush.bf16.msra.mxu0 %v3392
        %4160 = vmatpush.bf16.msra.mxu0 %v3384
        %4161 = vmatmul.bf16.gmra.mxu0 %v1517
        %v4162 = vpop.f32.mrf.mxu0
        %v4163 = vadd.f32 %v4150, %v4162
        %v4164 = vpop.f32.mrf.mxu0
        %4165 = vdwg.mxu0
        %4166 = vmatpush.bf16.msra.mxu0 %v3504
        %4167 = vmatpush.bf16.msra.mxu0 %v3496
        %4168 = vmatpush.bf16.msra.mxu0 %v3488
        %4169 = vmatpush.bf16.msra.mxu0 %v3480
        %4170 = vmatpush.bf16.msra.mxu0 %v3472
        %4171 = vmatpush.bf16.msra.mxu0 %v3464
        %4172 = vmatpush.bf16.msra.mxu0 %v3456
        %4173 = vmatpush.bf16.msra.mxu0 %v3448
        %4174 = vmatmul.bf16.gmra.mxu0 %v1518
        %v4175 = vpop.f32.mrf.mxu0
        %v4176 = vadd.f32 %v4163, %v4175
        %v4177 = vpop.f32.mrf.mxu0
        %4178 = vdwg.mxu0
        %4179 = vmatpush.bf16.msra.mxu0 %v3568
        %4180 = vmatpush.bf16.msra.mxu0 %v3560
        %4181 = vmatpush.bf16.msra.mxu0 %v3552
        %4182 = vmatpush.bf16.msra.mxu0 %v3544
        %4183 = vmatpush.bf16.msra.mxu0 %v3536
        %4184 = vmatpush.bf16.msra.mxu0 %v3528
        %4185 = vmatpush.bf16.msra.mxu0 %v3520
        %4186 = vmatpush.bf16.msra.mxu0 %v3512
        %4187 = vmatmul.bf16.gmra.mxu0 %v1519
        %v4188 = vpop.f32.mrf.mxu0
        %v4189 = vadd.f32 %v4176, %v4188
        %v4190 = vpop.f32.mrf.mxu0
        %4191 = vdwg.mxu0
        %4192 = vmatpush.bf16.msra.mxu0 %v3121
        %4193 = vmatpush.bf16.msra.mxu0 %v3113
        %4194 = vmatpush.bf16.msra.mxu0 %v3105
        %4195 = vmatpush.bf16.msra.mxu0 %v3097
        %4196 = vmatpush.bf16.msra.mxu0 %v3089
        %4197 = vmatpush.bf16.msra.mxu0 %v3081
        %4198 = vmatpush.bf16.msra.mxu0 %v3073
        %4199 = vmatpush.bf16.msra.mxu0 %v3065
        %4200 = vmatmul.bf16.gmra.mxu0 %v1512
        %v4201 = vpop.f32.mrf.mxu0
        %v4202 = vadd.f32 %v1485, %v4201
        %v4203 = vpop.f32.mrf.mxu0
        %4204 = vdwg.mxu0
        %4205 = vmatpush.bf16.msra.mxu0 %v3185
        %4206 = vmatpush.bf16.msra.mxu0 %v3177
        %4207 = vmatpush.bf16.msra.mxu0 %v3169
        %4208 = vmatpush.bf16.msra.mxu0 %v3161
        %4209 = vmatpush.bf16.msra.mxu0 %v3153
        %4210 = vmatpush.bf16.msra.mxu0 %v3145
        %4211 = vmatpush.bf16.msra.mxu0 %v3137
        %4212 = vmatpush.bf16.msra.mxu0 %v3129
        %4213 = vmatmul.bf16.gmra.mxu0 %v1513
        %v4214 = vpop.f32.mrf.mxu0
        %v4215 = vadd.f32 %v4202, %v4214
        %v4216 = vpop.f32.mrf.mxu0
        %4217 = vdwg.mxu0
        %4218 = vmatpush.bf16.msra.mxu0 %v3249
        %4219 = vmatpush.bf16.msra.mxu0 %v3241
        %4220 = vmatpush.bf16.msra.mxu0 %v3233
        %4221 = vmatpush.bf16.msra.mxu0 %v3225
        %4222 = vmatpush.bf16.msra.mxu0 %v3217
        %4223 = vmatpush.bf16.msra.mxu0 %v3209
        %4224 = vmatpush.bf16.msra.mxu0 %v3201
        %4225 = vmatpush.bf16.msra.mxu0 %v3193
        %4226 = vmatmul.bf16.gmra.mxu0 %v1514
        %v4227 = vpop.f32.mrf.mxu0
        %v4228 = vadd.f32 %v4215, %v4227
        %v4229 = vpop.f32.mrf.mxu0
        %4230 = vdwg.mxu0
        %4231 = vmatpush.bf16.msra.mxu0 %v3313
        %4232 = vmatpush.bf16.msra.mxu0 %v3305
        %4233 = vmatpush.bf16.msra.mxu0 %v3297
        %4234 = vmatpush.bf16.msra.mxu0 %v3289
        %4235 = vmatpush.bf16.msra.mxu0 %v3281
        %4236 = vmatpush.bf16.msra.mxu0 %v3273
        %4237 = vmatpush.bf16.msra.mxu0 %v3265
        %4238 = vmatpush.bf16.msra.mxu0 %v3257
        %4239 = vmatmul.bf16.gmra.mxu0 %v1515
        %v4240 = vpop.f32.mrf.mxu0
        %v4241 = vadd.f32 %v4228, %v4240
        %v4242 = vpop.f32.mrf.mxu0
        %4243 = vdwg.mxu0
        %4244 = vmatpush.bf16.msra.mxu0 %v3377
        %4245 = vmatpush.bf16.msra.mxu0 %v3369
        %4246 = vmatpush.bf16.msra.mxu0 %v3361
        %4247 = vmatpush.bf16.msra.mxu0 %v3353
        %4248 = vmatpush.bf16.msra.mxu0 %v3345
        %4249 = vmatpush.bf16.msra.mxu0 %v3337
        %4250 = vmatpush.bf16.msra.mxu0 %v3329
        %4251 = vmatpush.bf16.msra.mxu0 %v3321
        %4252 = vmatmul.bf16.gmra.mxu0 %v1516
        %v4253 = vpop.f32.mrf.mxu0
        %v4254 = vadd.f32 %v4241, %v4253
        %v4255 = vpop.f32.mrf.mxu0
        %4256 = vdwg.mxu0
        %4257 = vmatpush.bf16.msra.mxu0 %v3441
        %4258 = vmatpush.bf16.msra.mxu0 %v3433
        %4259 = vmatpush.bf16.msra.mxu0 %v3425
        %4260 = vmatpush.bf16.msra.mxu0 %v3417
        %4261 = vmatpush.bf16.msra.mxu0 %v3409
        %4262 = vmatpush.bf16.msra.mxu0 %v3401
        %4263 = vmatpush.bf16.msra.mxu0 %v3393
        %4264 = vmatpush.bf16.msra.mxu0 %v3385
        %4265 = vmatmul.bf16.gmra.mxu0 %v1517
        %v4266 = vpop.f32.mrf.mxu0
        %v4267 = vadd.f32 %v4254, %v4266
        %v4268 = vpop.f32.mrf.mxu0
        %4269 = vdwg.mxu0
        %4270 = vmatpush.bf16.msra.mxu0 %v3505
        %4271 = vmatpush.bf16.msra.mxu0 %v3497
        %4272 = vmatpush.bf16.msra.mxu0 %v3489
        %4273 = vmatpush.bf16.msra.mxu0 %v3481
        %4274 = vmatpush.bf16.msra.mxu0 %v3473
        %4275 = vmatpush.bf16.msra.mxu0 %v3465
        %4276 = vmatpush.bf16.msra.mxu0 %v3457
        %4277 = vmatpush.bf16.msra.mxu0 %v3449
        %4278 = vmatmul.bf16.gmra.mxu0 %v1518
        %v4279 = vpop.f32.mrf.mxu0
        %v4280 = vadd.f32 %v4267, %v4279
        %v4281 = vpop.f32.mrf.mxu0
        %4282 = vdwg.mxu0
        %4283 = vmatpush.bf16.msra.mxu0 %v3569
        %4284 = vmatpush.bf16.msra.mxu0 %v3561
        %4285 = vmatpush.bf16.msra.mxu0 %v3553
        %4286 = vmatpush.bf16.msra.mxu0 %v3545
        %4287 = vmatpush.bf16.msra.mxu0 %v3537
        %4288 = vmatpush.bf16.msra.mxu0 %v3529
        %4289 = vmatpush.bf16.msra.mxu0 %v3521
        %4290 = vmatpush.bf16.msra.mxu0 %v3513
        %4291 = vmatmul.bf16.gmra.mxu0 %v1519
        %v4292 = vpop.f32.mrf.mxu0
        %v4293 = vadd.f32 %v4280, %v4292
        %v4294 = vpop.f32.mrf.mxu0
        %4295 = vdwg.mxu0
        %4296 = vmatpush.bf16.msra.mxu0 %v3122
        %4297 = vmatpush.bf16.msra.mxu0 %v3114
        %4298 = vmatpush.bf16.msra.mxu0 %v3106
        %4299 = vmatpush.bf16.msra.mxu0 %v3098
        %4300 = vmatpush.bf16.msra.mxu0 %v3090
        %4301 = vmatpush.bf16.msra.mxu0 %v3082
        %4302 = vmatpush.bf16.msra.mxu0 %v3074
        %4303 = vmatpush.bf16.msra.mxu0 %v3066
        %4304 = vmatmul.bf16.gmra.mxu0 %v1512
        %v4305 = vpop.f32.mrf.mxu0
        %v4306 = vadd.f32 %v1486, %v4305
        %v4307 = vpop.f32.mrf.mxu0
        %4308 = vdwg.mxu0
        %4309 = vmatpush.bf16.msra.mxu0 %v3186
        %4310 = vmatpush.bf16.msra.mxu0 %v3178
        %4311 = vmatpush.bf16.msra.mxu0 %v3170
        %4312 = vmatpush.bf16.msra.mxu0 %v3162
        %4313 = vmatpush.bf16.msra.mxu0 %v3154
        %4314 = vmatpush.bf16.msra.mxu0 %v3146
        %4315 = vmatpush.bf16.msra.mxu0 %v3138
        %4316 = vmatpush.bf16.msra.mxu0 %v3130
        %4317 = vmatmul.bf16.gmra.mxu0 %v1513
        %v4318 = vpop.f32.mrf.mxu0
        %v4319 = vadd.f32 %v4306, %v4318
        %v4320 = vpop.f32.mrf.mxu0
        %4321 = vdwg.mxu0
        %4322 = vmatpush.bf16.msra.mxu0 %v3250
        %4323 = vmatpush.bf16.msra.mxu0 %v3242
        %4324 = vmatpush.bf16.msra.mxu0 %v3234
        %4325 = vmatpush.bf16.msra.mxu0 %v3226
        %4326 = vmatpush.bf16.msra.mxu0 %v3218
        %4327 = vmatpush.bf16.msra.mxu0 %v3210
        %4328 = vmatpush.bf16.msra.mxu0 %v3202
        %4329 = vmatpush.bf16.msra.mxu0 %v3194
        %4330 = vmatmul.bf16.gmra.mxu0 %v1514
        %v4331 = vpop.f32.mrf.mxu0
        %v4332 = vadd.f32 %v4319, %v4331
        %v4333 = vpop.f32.mrf.mxu0
        %4334 = vdwg.mxu0
        %4335 = vmatpush.bf16.msra.mxu0 %v3314
        %4336 = vmatpush.bf16.msra.mxu0 %v3306
        %4337 = vmatpush.bf16.msra.mxu0 %v3298
        %4338 = vmatpush.bf16.msra.mxu0 %v3290
        %4339 = vmatpush.bf16.msra.mxu0 %v3282
        %4340 = vmatpush.bf16.msra.mxu0 %v3274
        %4341 = vmatpush.bf16.msra.mxu0 %v3266
        %4342 = vmatpush.bf16.msra.mxu0 %v3258
        %4343 = vmatmul.bf16.gmra.mxu0 %v1515
        %v4344 = vpop.f32.mrf.mxu0
        %v4345 = vadd.f32 %v4332, %v4344
        %v4346 = vpop.f32.mrf.mxu0
        %4347 = vdwg.mxu0
        %4348 = vmatpush.bf16.msra.mxu0 %v3378
        %4349 = vmatpush.bf16.msra.mxu0 %v3370
        %4350 = vmatpush.bf16.msra.mxu0 %v3362
        %4351 = vmatpush.bf16.msra.mxu0 %v3354
        %4352 = vmatpush.bf16.msra.mxu0 %v3346
        %4353 = vmatpush.bf16.msra.mxu0 %v3338
        %4354 = vmatpush.bf16.msra.mxu0 %v3330
        %4355 = vmatpush.bf16.msra.mxu0 %v3322
        %4356 = vmatmul.bf16.gmra.mxu0 %v1516
        %v4357 = vpop.f32.mrf.mxu0
        %v4358 = vadd.f32 %v4345, %v4357
        %v4359 = vpop.f32.mrf.mxu0
        %4360 = vdwg.mxu0
        %4361 = vmatpush.bf16.msra.mxu0 %v3442
        %4362 = vmatpush.bf16.msra.mxu0 %v3434
        %4363 = vmatpush.bf16.msra.mxu0 %v3426
        %4364 = vmatpush.bf16.msra.mxu0 %v3418
        %4365 = vmatpush.bf16.msra.mxu0 %v3410
        %4366 = vmatpush.bf16.msra.mxu0 %v3402
        %4367 = vmatpush.bf16.msra.mxu0 %v3394
        %4368 = vmatpush.bf16.msra.mxu0 %v3386
        %4369 = vmatmul.bf16.gmra.mxu0 %v1517
        %v4370 = vpop.f32.mrf.mxu0
        %v4371 = vadd.f32 %v4358, %v4370
        %v4372 = vpop.f32.mrf.mxu0
        %4373 = vdwg.mxu0
        %4374 = vmatpush.bf16.msra.mxu0 %v3506
        %4375 = vmatpush.bf16.msra.mxu0 %v3498
        %4376 = vmatpush.bf16.msra.mxu0 %v3490
        %4377 = vmatpush.bf16.msra.mxu0 %v3482
        %4378 = vmatpush.bf16.msra.mxu0 %v3474
        %4379 = vmatpush.bf16.msra.mxu0 %v3466
        %4380 = vmatpush.bf16.msra.mxu0 %v3458
        %4381 = vmatpush.bf16.msra.mxu0 %v3450
        %4382 = vmatmul.bf16.gmra.mxu0 %v1518
        %v4383 = vpop.f32.mrf.mxu0
        %v4384 = vadd.f32 %v4371, %v4383
        %v4385 = vpop.f32.mrf.mxu0
        %4386 = vdwg.mxu0
        %4387 = vmatpush.bf16.msra.mxu0 %v3570
        %4388 = vmatpush.bf16.msra.mxu0 %v3562
        %4389 = vmatpush.bf16.msra.mxu0 %v3554
        %4390 = vmatpush.bf16.msra.mxu0 %v3546
        %4391 = vmatpush.bf16.msra.mxu0 %v3538
        %4392 = vmatpush.bf16.msra.mxu0 %v3530
        %4393 = vmatpush.bf16.msra.mxu0 %v3522
        %4394 = vmatpush.bf16.msra.mxu0 %v3514
        %4395 = vmatmul.bf16.gmra.mxu0 %v1519
        %v4396 = vpop.f32.mrf.mxu0
        %v4397 = vadd.f32 %v4384, %v4396
        %v4398 = vpop.f32.mrf.mxu0
        %4399 = vdwg.mxu0
        %4400 = vmatpush.bf16.msra.mxu0 %v3123
        %4401 = vmatpush.bf16.msra.mxu0 %v3115
        %4402 = vmatpush.bf16.msra.mxu0 %v3107
        %4403 = vmatpush.bf16.msra.mxu0 %v3099
        %4404 = vmatpush.bf16.msra.mxu0 %v3091
        %4405 = vmatpush.bf16.msra.mxu0 %v3083
        %4406 = vmatpush.bf16.msra.mxu0 %v3075
        %4407 = vmatpush.bf16.msra.mxu0 %v3067
        %4408 = vmatmul.bf16.gmra.mxu0 %v1512
        %v4409 = vpop.f32.mrf.mxu0
        %v4410 = vadd.f32 %v1487, %v4409
        %v4411 = vpop.f32.mrf.mxu0
        %4412 = vdwg.mxu0
        %4413 = vmatpush.bf16.msra.mxu0 %v3187
        %4414 = vmatpush.bf16.msra.mxu0 %v3179
        %4415 = vmatpush.bf16.msra.mxu0 %v3171
        %4416 = vmatpush.bf16.msra.mxu0 %v3163
        %4417 = vmatpush.bf16.msra.mxu0 %v3155
        %4418 = vmatpush.bf16.msra.mxu0 %v3147
        %4419 = vmatpush.bf16.msra.mxu0 %v3139
        %4420 = vmatpush.bf16.msra.mxu0 %v3131
        %4421 = vmatmul.bf16.gmra.mxu0 %v1513
        %v4422 = vpop.f32.mrf.mxu0
        %v4423 = vadd.f32 %v4410, %v4422
        %v4424 = vpop.f32.mrf.mxu0
        %4425 = vdwg.mxu0
        %4426 = vmatpush.bf16.msra.mxu0 %v3251
        %4427 = vmatpush.bf16.msra.mxu0 %v3243
        %4428 = vmatpush.bf16.msra.mxu0 %v3235
        %4429 = vmatpush.bf16.msra.mxu0 %v3227
        %4430 = vmatpush.bf16.msra.mxu0 %v3219
        %4431 = vmatpush.bf16.msra.mxu0 %v3211
        %4432 = vmatpush.bf16.msra.mxu0 %v3203
        %4433 = vmatpush.bf16.msra.mxu0 %v3195
        %4434 = vmatmul.bf16.gmra.mxu0 %v1514
        %v4435 = vpop.f32.mrf.mxu0
        %v4436 = vadd.f32 %v4423, %v4435
        %v4437 = vpop.f32.mrf.mxu0
        %4438 = vdwg.mxu0
        %4439 = vmatpush.bf16.msra.mxu0 %v3315
        %4440 = vmatpush.bf16.msra.mxu0 %v3307
        %4441 = vmatpush.bf16.msra.mxu0 %v3299
        %4442 = vmatpush.bf16.msra.mxu0 %v3291
        %4443 = vmatpush.bf16.msra.mxu0 %v3283
        %4444 = vmatpush.bf16.msra.mxu0 %v3275
        %4445 = vmatpush.bf16.msra.mxu0 %v3267
        %4446 = vmatpush.bf16.msra.mxu0 %v3259
        %4447 = vmatmul.bf16.gmra.mxu0 %v1515
        %v4448 = vpop.f32.mrf.mxu0
        %v4449 = vadd.f32 %v4436, %v4448
        %v4450 = vpop.f32.mrf.mxu0
        %4451 = vdwg.mxu0
        %4452 = vmatpush.bf16.msra.mxu0 %v3379
        %4453 = vmatpush.bf16.msra.mxu0 %v3371
        %4454 = vmatpush.bf16.msra.mxu0 %v3363
        %4455 = vmatpush.bf16.msra.mxu0 %v3355
        %4456 = vmatpush.bf16.msra.mxu0 %v3347
        %4457 = vmatpush.bf16.msra.mxu0 %v3339
        %4458 = vmatpush.bf16.msra.mxu0 %v3331
        %4459 = vmatpush.bf16.msra.mxu0 %v3323
        %4460 = vmatmul.bf16.gmra.mxu0 %v1516
        %v4461 = vpop.f32.mrf.mxu0
        %v4462 = vadd.f32 %v4449, %v4461
        %v4463 = vpop.f32.mrf.mxu0
        %4464 = vdwg.mxu0
        %4465 = vmatpush.bf16.msra.mxu0 %v3443
        %4466 = vmatpush.bf16.msra.mxu0 %v3435
        %4467 = vmatpush.bf16.msra.mxu0 %v3427
        %4468 = vmatpush.bf16.msra.mxu0 %v3419
        %4469 = vmatpush.bf16.msra.mxu0 %v3411
        %4470 = vmatpush.bf16.msra.mxu0 %v3403
        %4471 = vmatpush.bf16.msra.mxu0 %v3395
        %4472 = vmatpush.bf16.msra.mxu0 %v3387
        %4473 = vmatmul.bf16.gmra.mxu0 %v1517
        %v4474 = vpop.f32.mrf.mxu0
        %v4475 = vadd.f32 %v4462, %v4474
        %v4476 = vpop.f32.mrf.mxu0
        %4477 = vdwg.mxu0
        %4478 = vmatpush.bf16.msra.mxu0 %v3507
        %4479 = vmatpush.bf16.msra.mxu0 %v3499
        %4480 = vmatpush.bf16.msra.mxu0 %v3491
        %4481 = vmatpush.bf16.msra.mxu0 %v3483
        %4482 = vmatpush.bf16.msra.mxu0 %v3475
        %4483 = vmatpush.bf16.msra.mxu0 %v3467
        %4484 = vmatpush.bf16.msra.mxu0 %v3459
        %4485 = vmatpush.bf16.msra.mxu0 %v3451
        %4486 = vmatmul.bf16.gmra.mxu0 %v1518
        %v4487 = vpop.f32.mrf.mxu0
        %v4488 = vadd.f32 %v4475, %v4487
        %v4489 = vpop.f32.mrf.mxu0
        %4490 = vdwg.mxu0
        %4491 = vmatpush.bf16.msra.mxu0 %v3571
        %4492 = vmatpush.bf16.msra.mxu0 %v3563
        %4493 = vmatpush.bf16.msra.mxu0 %v3555
        %4494 = vmatpush.bf16.msra.mxu0 %v3547
        %4495 = vmatpush.bf16.msra.mxu0 %v3539
        %4496 = vmatpush.bf16.msra.mxu0 %v3531
        %4497 = vmatpush.bf16.msra.mxu0 %v3523
        %4498 = vmatpush.bf16.msra.mxu0 %v3515
        %4499 = vmatmul.bf16.gmra.mxu0 %v1519
        %v4500 = vpop.f32.mrf.mxu0
        %v4501 = vadd.f32 %v4488, %v4500
        %v4502 = vpop.f32.mrf.mxu0
        %4503 = vdwg.mxu0
        %4504 = vmatpush.bf16.msra.mxu0 %v3124
        %4505 = vmatpush.bf16.msra.mxu0 %v3116
        %4506 = vmatpush.bf16.msra.mxu0 %v3108
        %4507 = vmatpush.bf16.msra.mxu0 %v3100
        %4508 = vmatpush.bf16.msra.mxu0 %v3092
        %4509 = vmatpush.bf16.msra.mxu0 %v3084
        %4510 = vmatpush.bf16.msra.mxu0 %v3076
        %4511 = vmatpush.bf16.msra.mxu0 %v3068
        %4512 = vmatmul.bf16.gmra.mxu0 %v1512
        %v4513 = vpop.f32.mrf.mxu0
        %v4514 = vadd.f32 %v1488, %v4513
        %v4515 = vpop.f32.mrf.mxu0
        %4516 = vdwg.mxu0
        %4517 = vmatpush.bf16.msra.mxu0 %v3188
        %4518 = vmatpush.bf16.msra.mxu0 %v3180
        %4519 = vmatpush.bf16.msra.mxu0 %v3172
        %4520 = vmatpush.bf16.msra.mxu0 %v3164
        %4521 = vmatpush.bf16.msra.mxu0 %v3156
        %4522 = vmatpush.bf16.msra.mxu0 %v3148
        %4523 = vmatpush.bf16.msra.mxu0 %v3140
        %4524 = vmatpush.bf16.msra.mxu0 %v3132
        %4525 = vmatmul.bf16.gmra.mxu0 %v1513
        %v4526 = vpop.f32.mrf.mxu0
        %v4527 = vadd.f32 %v4514, %v4526
        %v4528 = vpop.f32.mrf.mxu0
        %4529 = vdwg.mxu0
        %4530 = vmatpush.bf16.msra.mxu0 %v3252
        %4531 = vmatpush.bf16.msra.mxu0 %v3244
        %4532 = vmatpush.bf16.msra.mxu0 %v3236
        %4533 = vmatpush.bf16.msra.mxu0 %v3228
        %4534 = vmatpush.bf16.msra.mxu0 %v3220
        %4535 = vmatpush.bf16.msra.mxu0 %v3212
        %4536 = vmatpush.bf16.msra.mxu0 %v3204
        %4537 = vmatpush.bf16.msra.mxu0 %v3196
        %4538 = vmatmul.bf16.gmra.mxu0 %v1514
        %v4539 = vpop.f32.mrf.mxu0
        %v4540 = vadd.f32 %v4527, %v4539
        %v4541 = vpop.f32.mrf.mxu0
        %4542 = vdwg.mxu0
        %4543 = vmatpush.bf16.msra.mxu0 %v3316
        %4544 = vmatpush.bf16.msra.mxu0 %v3308
        %4545 = vmatpush.bf16.msra.mxu0 %v3300
        %4546 = vmatpush.bf16.msra.mxu0 %v3292
        %4547 = vmatpush.bf16.msra.mxu0 %v3284
        %4548 = vmatpush.bf16.msra.mxu0 %v3276
        %4549 = vmatpush.bf16.msra.mxu0 %v3268
        %4550 = vmatpush.bf16.msra.mxu0 %v3260
        %4551 = vmatmul.bf16.gmra.mxu0 %v1515
        %v4552 = vpop.f32.mrf.mxu0
        %v4553 = vadd.f32 %v4540, %v4552
        %v4554 = vpop.f32.mrf.mxu0
        %4555 = vdwg.mxu0
        %4556 = vmatpush.bf16.msra.mxu0 %v3380
        %4557 = vmatpush.bf16.msra.mxu0 %v3372
        %4558 = vmatpush.bf16.msra.mxu0 %v3364
        %4559 = vmatpush.bf16.msra.mxu0 %v3356
        %4560 = vmatpush.bf16.msra.mxu0 %v3348
        %4561 = vmatpush.bf16.msra.mxu0 %v3340
        %4562 = vmatpush.bf16.msra.mxu0 %v3332
        %4563 = vmatpush.bf16.msra.mxu0 %v3324
        %4564 = vmatmul.bf16.gmra.mxu0 %v1516
        %v4565 = vpop.f32.mrf.mxu0
        %v4566 = vadd.f32 %v4553, %v4565
        %v4567 = vpop.f32.mrf.mxu0
        %4568 = vdwg.mxu0
        %4569 = vmatpush.bf16.msra.mxu0 %v3444
        %4570 = vmatpush.bf16.msra.mxu0 %v3436
        %4571 = vmatpush.bf16.msra.mxu0 %v3428
        %4572 = vmatpush.bf16.msra.mxu0 %v3420
        %4573 = vmatpush.bf16.msra.mxu0 %v3412
        %4574 = vmatpush.bf16.msra.mxu0 %v3404
        %4575 = vmatpush.bf16.msra.mxu0 %v3396
        %4576 = vmatpush.bf16.msra.mxu0 %v3388
        %4577 = vmatmul.bf16.gmra.mxu0 %v1517
        %v4578 = vpop.f32.mrf.mxu0
        %v4579 = vadd.f32 %v4566, %v4578
        %v4580 = vpop.f32.mrf.mxu0
        %4581 = vdwg.mxu0
        %4582 = vmatpush.bf16.msra.mxu0 %v3508
        %4583 = vmatpush.bf16.msra.mxu0 %v3500
        %4584 = vmatpush.bf16.msra.mxu0 %v3492
        %4585 = vmatpush.bf16.msra.mxu0 %v3484
        %4586 = vmatpush.bf16.msra.mxu0 %v3476
        %4587 = vmatpush.bf16.msra.mxu0 %v3468
        %4588 = vmatpush.bf16.msra.mxu0 %v3460
        %4589 = vmatpush.bf16.msra.mxu0 %v3452
        %4590 = vmatmul.bf16.gmra.mxu0 %v1518
        %v4591 = vpop.f32.mrf.mxu0
        %v4592 = vadd.f32 %v4579, %v4591
        %v4593 = vpop.f32.mrf.mxu0
        %4594 = vdwg.mxu0
        %4595 = vmatpush.bf16.msra.mxu0 %v3572
        %4596 = vmatpush.bf16.msra.mxu0 %v3564
        %4597 = vmatpush.bf16.msra.mxu0 %v3556
        %4598 = vmatpush.bf16.msra.mxu0 %v3548
        %4599 = vmatpush.bf16.msra.mxu0 %v3540
        %4600 = vmatpush.bf16.msra.mxu0 %v3532
        %4601 = vmatpush.bf16.msra.mxu0 %v3524
        %4602 = vmatpush.bf16.msra.mxu0 %v3516
        %4603 = vmatmul.bf16.gmra.mxu0 %v1519
        %v4604 = vpop.f32.mrf.mxu0
        %v4605 = vadd.f32 %v4592, %v4604
        %v4606 = vpop.f32.mrf.mxu0
        %4607 = vdwg.mxu0
        %4608 = vmatpush.bf16.msra.mxu0 %v3125
        %4609 = vmatpush.bf16.msra.mxu0 %v3117
        %4610 = vmatpush.bf16.msra.mxu0 %v3109
        %4611 = vmatpush.bf16.msra.mxu0 %v3101
        %4612 = vmatpush.bf16.msra.mxu0 %v3093
        %4613 = vmatpush.bf16.msra.mxu0 %v3085
        %4614 = vmatpush.bf16.msra.mxu0 %v3077
        %4615 = vmatpush.bf16.msra.mxu0 %v3069
        %4616 = vmatmul.bf16.gmra.mxu0 %v1512
        %v4617 = vpop.f32.mrf.mxu0
        %v4618 = vadd.f32 %v1489, %v4617
        %v4619 = vpop.f32.mrf.mxu0
        %4620 = vdwg.mxu0
        %4621 = vmatpush.bf16.msra.mxu0 %v3189
        %4622 = vmatpush.bf16.msra.mxu0 %v3181
        %4623 = vmatpush.bf16.msra.mxu0 %v3173
        %4624 = vmatpush.bf16.msra.mxu0 %v3165
        %4625 = vmatpush.bf16.msra.mxu0 %v3157
        %4626 = vmatpush.bf16.msra.mxu0 %v3149
        %4627 = vmatpush.bf16.msra.mxu0 %v3141
        %4628 = vmatpush.bf16.msra.mxu0 %v3133
        %4629 = vmatmul.bf16.gmra.mxu0 %v1513
        %v4630 = vpop.f32.mrf.mxu0
        %v4631 = vadd.f32 %v4618, %v4630
        %v4632 = vpop.f32.mrf.mxu0
        %4633 = vdwg.mxu0
        %4634 = vmatpush.bf16.msra.mxu0 %v3253
        %4635 = vmatpush.bf16.msra.mxu0 %v3245
        %4636 = vmatpush.bf16.msra.mxu0 %v3237
        %4637 = vmatpush.bf16.msra.mxu0 %v3229
        %4638 = vmatpush.bf16.msra.mxu0 %v3221
        %4639 = vmatpush.bf16.msra.mxu0 %v3213
        %4640 = vmatpush.bf16.msra.mxu0 %v3205
        %4641 = vmatpush.bf16.msra.mxu0 %v3197
        %4642 = vmatmul.bf16.gmra.mxu0 %v1514
        %v4643 = vpop.f32.mrf.mxu0
        %v4644 = vadd.f32 %v4631, %v4643
        %v4645 = vpop.f32.mrf.mxu0
        %4646 = vdwg.mxu0
        %4647 = vmatpush.bf16.msra.mxu0 %v3317
        %4648 = vmatpush.bf16.msra.mxu0 %v3309
        %4649 = vmatpush.bf16.msra.mxu0 %v3301
        %4650 = vmatpush.bf16.msra.mxu0 %v3293
        %4651 = vmatpush.bf16.msra.mxu0 %v3285
        %4652 = vmatpush.bf16.msra.mxu0 %v3277
        %4653 = vmatpush.bf16.msra.mxu0 %v3269
        %4654 = vmatpush.bf16.msra.mxu0 %v3261
        %4655 = vmatmul.bf16.gmra.mxu0 %v1515
        %v4656 = vpop.f32.mrf.mxu0
        %v4657 = vadd.f32 %v4644, %v4656
        %v4658 = vpop.f32.mrf.mxu0
        %4659 = vdwg.mxu0
        %4660 = vmatpush.bf16.msra.mxu0 %v3381
        %4661 = vmatpush.bf16.msra.mxu0 %v3373
        %4662 = vmatpush.bf16.msra.mxu0 %v3365
        %4663 = vmatpush.bf16.msra.mxu0 %v3357
        %4664 = vmatpush.bf16.msra.mxu0 %v3349
        %4665 = vmatpush.bf16.msra.mxu0 %v3341
        %4666 = vmatpush.bf16.msra.mxu0 %v3333
        %4667 = vmatpush.bf16.msra.mxu0 %v3325
        %4668 = vmatmul.bf16.gmra.mxu0 %v1516
        %v4669 = vpop.f32.mrf.mxu0
        %v4670 = vadd.f32 %v4657, %v4669
        %v4671 = vpop.f32.mrf.mxu0
        %4672 = vdwg.mxu0
        %4673 = vmatpush.bf16.msra.mxu0 %v3445
        %4674 = vmatpush.bf16.msra.mxu0 %v3437
        %4675 = vmatpush.bf16.msra.mxu0 %v3429
        %4676 = vmatpush.bf16.msra.mxu0 %v3421
        %4677 = vmatpush.bf16.msra.mxu0 %v3413
        %4678 = vmatpush.bf16.msra.mxu0 %v3405
        %4679 = vmatpush.bf16.msra.mxu0 %v3397
        %4680 = vmatpush.bf16.msra.mxu0 %v3389
        %4681 = vmatmul.bf16.gmra.mxu0 %v1517
        %v4682 = vpop.f32.mrf.mxu0
        %v4683 = vadd.f32 %v4670, %v4682
        %v4684 = vpop.f32.mrf.mxu0
        %4685 = vdwg.mxu0
        %4686 = vmatpush.bf16.msra.mxu0 %v3509
        %4687 = vmatpush.bf16.msra.mxu0 %v3501
        %4688 = vmatpush.bf16.msra.mxu0 %v3493
        %4689 = vmatpush.bf16.msra.mxu0 %v3485
        %4690 = vmatpush.bf16.msra.mxu0 %v3477
        %4691 = vmatpush.bf16.msra.mxu0 %v3469
        %4692 = vmatpush.bf16.msra.mxu0 %v3461
        %4693 = vmatpush.bf16.msra.mxu0 %v3453
        %4694 = vmatmul.bf16.gmra.mxu0 %v1518
        %v4695 = vpop.f32.mrf.mxu0
        %v4696 = vadd.f32 %v4683, %v4695
        %v4697 = vpop.f32.mrf.mxu0
        %4698 = vdwg.mxu0
        %4699 = vmatpush.bf16.msra.mxu0 %v3573
        %4700 = vmatpush.bf16.msra.mxu0 %v3565
        %4701 = vmatpush.bf16.msra.mxu0 %v3557
        %4702 = vmatpush.bf16.msra.mxu0 %v3549
        %4703 = vmatpush.bf16.msra.mxu0 %v3541
        %4704 = vmatpush.bf16.msra.mxu0 %v3533
        %4705 = vmatpush.bf16.msra.mxu0 %v3525
        %4706 = vmatpush.bf16.msra.mxu0 %v3517
        %4707 = vmatmul.bf16.gmra.mxu0 %v1519
        %v4708 = vpop.f32.mrf.mxu0
        %v4709 = vadd.f32 %v4696, %v4708
        %v4710 = vpop.f32.mrf.mxu0
        %4711 = vdwg.mxu0
        %4712 = vmatpush.bf16.msra.mxu0 %v3126
        %4713 = vmatpush.bf16.msra.mxu0 %v3118
        %4714 = vmatpush.bf16.msra.mxu0 %v3110
        %4715 = vmatpush.bf16.msra.mxu0 %v3102
        %4716 = vmatpush.bf16.msra.mxu0 %v3094
        %4717 = vmatpush.bf16.msra.mxu0 %v3086
        %4718 = vmatpush.bf16.msra.mxu0 %v3078
        %4719 = vmatpush.bf16.msra.mxu0 %v3070
        %4720 = vmatmul.bf16.gmra.mxu0 %v1512
        %v4721 = vpop.f32.mrf.mxu0
        %v4722 = vadd.f32 %v1490, %v4721
        %v4723 = vpop.f32.mrf.mxu0
        %4724 = vdwg.mxu0
        %4725 = vmatpush.bf16.msra.mxu0 %v3190
        %4726 = vmatpush.bf16.msra.mxu0 %v3182
        %4727 = vmatpush.bf16.msra.mxu0 %v3174
        %4728 = vmatpush.bf16.msra.mxu0 %v3166
        %4729 = vmatpush.bf16.msra.mxu0 %v3158
        %4730 = vmatpush.bf16.msra.mxu0 %v3150
        %4731 = vmatpush.bf16.msra.mxu0 %v3142
        %4732 = vmatpush.bf16.msra.mxu0 %v3134
        %4733 = vmatmul.bf16.gmra.mxu0 %v1513
        %v4734 = vpop.f32.mrf.mxu0
        %v4735 = vadd.f32 %v4722, %v4734
        %v4736 = vpop.f32.mrf.mxu0
        %4737 = vdwg.mxu0
        %4738 = vmatpush.bf16.msra.mxu0 %v3254
        %4739 = vmatpush.bf16.msra.mxu0 %v3246
        %4740 = vmatpush.bf16.msra.mxu0 %v3238
        %4741 = vmatpush.bf16.msra.mxu0 %v3230
        %4742 = vmatpush.bf16.msra.mxu0 %v3222
        %4743 = vmatpush.bf16.msra.mxu0 %v3214
        %4744 = vmatpush.bf16.msra.mxu0 %v3206
        %4745 = vmatpush.bf16.msra.mxu0 %v3198
        %4746 = vmatmul.bf16.gmra.mxu0 %v1514
        %v4747 = vpop.f32.mrf.mxu0
        %v4748 = vadd.f32 %v4735, %v4747
        %v4749 = vpop.f32.mrf.mxu0
        %4750 = vdwg.mxu0
        %4751 = vmatpush.bf16.msra.mxu0 %v3318
        %4752 = vmatpush.bf16.msra.mxu0 %v3310
        %4753 = vmatpush.bf16.msra.mxu0 %v3302
        %4754 = vmatpush.bf16.msra.mxu0 %v3294
        %4755 = vmatpush.bf16.msra.mxu0 %v3286
        %4756 = vmatpush.bf16.msra.mxu0 %v3278
        %4757 = vmatpush.bf16.msra.mxu0 %v3270
        %4758 = vmatpush.bf16.msra.mxu0 %v3262
        %4759 = vmatmul.bf16.gmra.mxu0 %v1515
        %v4760 = vpop.f32.mrf.mxu0
        %v4761 = vadd.f32 %v4748, %v4760
        %v4762 = vpop.f32.mrf.mxu0
        %4763 = vdwg.mxu0
        %4764 = vmatpush.bf16.msra.mxu0 %v3382
        %4765 = vmatpush.bf16.msra.mxu0 %v3374
        %4766 = vmatpush.bf16.msra.mxu0 %v3366
        %4767 = vmatpush.bf16.msra.mxu0 %v3358
        %4768 = vmatpush.bf16.msra.mxu0 %v3350
        %4769 = vmatpush.bf16.msra.mxu0 %v3342
        %4770 = vmatpush.bf16.msra.mxu0 %v3334
        %4771 = vmatpush.bf16.msra.mxu0 %v3326
        %4772 = vmatmul.bf16.gmra.mxu0 %v1516
        %v4773 = vpop.f32.mrf.mxu0
        %v4774 = vadd.f32 %v4761, %v4773
        %v4775 = vpop.f32.mrf.mxu0
        %4776 = vdwg.mxu0
        %4777 = vmatpush.bf16.msra.mxu0 %v3446
        %4778 = vmatpush.bf16.msra.mxu0 %v3438
        %4779 = vmatpush.bf16.msra.mxu0 %v3430
        %4780 = vmatpush.bf16.msra.mxu0 %v3422
        %4781 = vmatpush.bf16.msra.mxu0 %v3414
        %4782 = vmatpush.bf16.msra.mxu0 %v3406
        %4783 = vmatpush.bf16.msra.mxu0 %v3398
        %4784 = vmatpush.bf16.msra.mxu0 %v3390
        %4785 = vmatmul.bf16.gmra.mxu0 %v1517
        %v4786 = vpop.f32.mrf.mxu0
        %v4787 = vadd.f32 %v4774, %v4786
        %v4788 = vpop.f32.mrf.mxu0
        %4789 = vdwg.mxu0
        %4790 = vmatpush.bf16.msra.mxu0 %v3510
        %4791 = vmatpush.bf16.msra.mxu0 %v3502
        %4792 = vmatpush.bf16.msra.mxu0 %v3494
        %4793 = vmatpush.bf16.msra.mxu0 %v3486
        %4794 = vmatpush.bf16.msra.mxu0 %v3478
        %4795 = vmatpush.bf16.msra.mxu0 %v3470
        %4796 = vmatpush.bf16.msra.mxu0 %v3462
        %4797 = vmatpush.bf16.msra.mxu0 %v3454
        %4798 = vmatmul.bf16.gmra.mxu0 %v1518
        %v4799 = vpop.f32.mrf.mxu0
        %v4800 = vadd.f32 %v4787, %v4799
        %v4801 = vpop.f32.mrf.mxu0
        %4802 = vdwg.mxu0
        %4803 = vmatpush.bf16.msra.mxu0 %v3574
        %4804 = vmatpush.bf16.msra.mxu0 %v3566
        %4805 = vmatpush.bf16.msra.mxu0 %v3558
        %4806 = vmatpush.bf16.msra.mxu0 %v3550
        %4807 = vmatpush.bf16.msra.mxu0 %v3542
        %4808 = vmatpush.bf16.msra.mxu0 %v3534
        %4809 = vmatpush.bf16.msra.mxu0 %v3526
        %4810 = vmatpush.bf16.msra.mxu0 %v3518
        %4811 = vmatmul.bf16.gmra.mxu0 %v1519
        %v4812 = vpop.f32.mrf.mxu0
        %v4813 = vadd.f32 %v4800, %v4812
        %v4814 = vpop.f32.mrf.mxu0
        %4815 = vdwg.mxu0
        %4816 = vmatpush.bf16.msra.mxu0 %v3127
        %4817 = vmatpush.bf16.msra.mxu0 %v3119
        %4818 = vmatpush.bf16.msra.mxu0 %v3111
        %4819 = vmatpush.bf16.msra.mxu0 %v3103
        %4820 = vmatpush.bf16.msra.mxu0 %v3095
        %4821 = vmatpush.bf16.msra.mxu0 %v3087
        %4822 = vmatpush.bf16.msra.mxu0 %v3079
        %4823 = vmatpush.bf16.msra.mxu0 %v3071
        %4824 = vmatmul.bf16.gmra.mxu0 %v1512
        %v4825 = vpop.f32.mrf.mxu0
        %v4826 = vadd.f32 %v1491, %v4825
        %v4827 = vpop.f32.mrf.mxu0
        %4828 = vdwg.mxu0
        %4829 = vmatpush.bf16.msra.mxu0 %v3191
        %4830 = vmatpush.bf16.msra.mxu0 %v3183
        %4831 = vmatpush.bf16.msra.mxu0 %v3175
        %4832 = vmatpush.bf16.msra.mxu0 %v3167
        %4833 = vmatpush.bf16.msra.mxu0 %v3159
        %4834 = vmatpush.bf16.msra.mxu0 %v3151
        %4835 = vmatpush.bf16.msra.mxu0 %v3143
        %4836 = vmatpush.bf16.msra.mxu0 %v3135
        %4837 = vmatmul.bf16.gmra.mxu0 %v1513
        %v4838 = vpop.f32.mrf.mxu0
        %v4839 = vadd.f32 %v4826, %v4838
        %v4840 = vpop.f32.mrf.mxu0
        %4841 = vdwg.mxu0
        %4842 = vmatpush.bf16.msra.mxu0 %v3255
        %4843 = vmatpush.bf16.msra.mxu0 %v3247
        %4844 = vmatpush.bf16.msra.mxu0 %v3239
        %4845 = vmatpush.bf16.msra.mxu0 %v3231
        %4846 = vmatpush.bf16.msra.mxu0 %v3223
        %4847 = vmatpush.bf16.msra.mxu0 %v3215
        %4848 = vmatpush.bf16.msra.mxu0 %v3207
        %4849 = vmatpush.bf16.msra.mxu0 %v3199
        %4850 = vmatmul.bf16.gmra.mxu0 %v1514
        %v4851 = vpop.f32.mrf.mxu0
        %v4852 = vadd.f32 %v4839, %v4851
        %v4853 = vpop.f32.mrf.mxu0
        %4854 = vdwg.mxu0
        %4855 = vmatpush.bf16.msra.mxu0 %v3319
        %4856 = vmatpush.bf16.msra.mxu0 %v3311
        %4857 = vmatpush.bf16.msra.mxu0 %v3303
        %4858 = vmatpush.bf16.msra.mxu0 %v3295
        %4859 = vmatpush.bf16.msra.mxu0 %v3287
        %4860 = vmatpush.bf16.msra.mxu0 %v3279
        %4861 = vmatpush.bf16.msra.mxu0 %v3271
        %4862 = vmatpush.bf16.msra.mxu0 %v3263
        %4863 = vmatmul.bf16.gmra.mxu0 %v1515
        %v4864 = vpop.f32.mrf.mxu0
        %v4865 = vadd.f32 %v4852, %v4864
        %v4866 = vpop.f32.mrf.mxu0
        %4867 = vdwg.mxu0
        %4868 = vmatpush.bf16.msra.mxu0 %v3383
        %4869 = vmatpush.bf16.msra.mxu0 %v3375
        %4870 = vmatpush.bf16.msra.mxu0 %v3367
        %4871 = vmatpush.bf16.msra.mxu0 %v3359
        %4872 = vmatpush.bf16.msra.mxu0 %v3351
        %4873 = vmatpush.bf16.msra.mxu0 %v3343
        %4874 = vmatpush.bf16.msra.mxu0 %v3335
        %4875 = vmatpush.bf16.msra.mxu0 %v3327
        %4876 = vmatmul.bf16.gmra.mxu0 %v1516
        %v4877 = vpop.f32.mrf.mxu0
        %v4878 = vadd.f32 %v4865, %v4877
        %v4879 = vpop.f32.mrf.mxu0
        %4880 = vdwg.mxu0
        %4881 = vmatpush.bf16.msra.mxu0 %v3447
        %4882 = vmatpush.bf16.msra.mxu0 %v3439
        %4883 = vmatpush.bf16.msra.mxu0 %v3431
        %4884 = vmatpush.bf16.msra.mxu0 %v3423
        %4885 = vmatpush.bf16.msra.mxu0 %v3415
        %4886 = vmatpush.bf16.msra.mxu0 %v3407
        %4887 = vmatpush.bf16.msra.mxu0 %v3399
        %4888 = vmatpush.bf16.msra.mxu0 %v3391
        %4889 = vmatmul.bf16.gmra.mxu0 %v1517
        %v4890 = vpop.f32.mrf.mxu0
        %v4891 = vadd.f32 %v4878, %v4890
        %v4892 = vpop.f32.mrf.mxu0
        %4893 = vdwg.mxu0
        %4894 = vmatpush.bf16.msra.mxu0 %v3511
        %4895 = vmatpush.bf16.msra.mxu0 %v3503
        %4896 = vmatpush.bf16.msra.mxu0 %v3495
        %4897 = vmatpush.bf16.msra.mxu0 %v3487
        %4898 = vmatpush.bf16.msra.mxu0 %v3479
        %4899 = vmatpush.bf16.msra.mxu0 %v3471
        %4900 = vmatpush.bf16.msra.mxu0 %v3463
        %4901 = vmatpush.bf16.msra.mxu0 %v3455
        %4902 = vmatmul.bf16.gmra.mxu0 %v1518
        %v4903 = vpop.f32.mrf.mxu0
        %v4904 = vadd.f32 %v4891, %v4903
        %v4905 = vpop.f32.mrf.mxu0
        %4906 = vdwg.mxu0
        %4907 = vmatpush.bf16.msra.mxu0 %v3575
        %4908 = vmatpush.bf16.msra.mxu0 %v3567
        %4909 = vmatpush.bf16.msra.mxu0 %v3559
        %4910 = vmatpush.bf16.msra.mxu0 %v3551
        %4911 = vmatpush.bf16.msra.mxu0 %v3543
        %4912 = vmatpush.bf16.msra.mxu0 %v3535
        %4913 = vmatpush.bf16.msra.mxu0 %v3527
        %4914 = vmatpush.bf16.msra.mxu0 %v3519
        %4915 = vmatmul.bf16.gmra.mxu0 %v1519
        %v4916 = vpop.f32.mrf.mxu0
        %v4917 = vadd.f32 %v4904, %v4916
        %v4918 = vpop.f32.mrf.mxu0
        %4919 = vdwg.mxu0
        %v4920 = vmax.f32 %v4189, 0.0
        %v4921 = vmax.f32 %v4293, 0.0
        %v4922 = vmax.f32 %v4397, 0.0
        %v4923 = vmax.f32 %v4501, 0.0
        %v4924 = vmax.f32 %v4605, 0.0
        %v4925 = vmax.f32 %v4709, 0.0
        %v4926 = vmax.f32 %v4813, 0.0
        %v4927 = vmax.f32 %v4917, 0.0
        %v4928 = vpack.c.bf16 %v4921, %v4920
        %v4929 = vpack.c.bf16 %v4923, %v4922
        %v4930 = vpack.c.bf16 %v4925, %v4924
        %v4931 = vpack.c.bf16 %v4927, %v4926
        %4932 = vst [vmem:[%s965] sm:$0xff] %v4928
        %4933 = vst [vmem:[%s965 + $0x8] sm:$0xff] %v4929
        %4934 = vst [vmem:[%s965 + $0x10] sm:$0xff] %v4930
        %4935 = vst [vmem:[%s965 + $0x18] sm:$0xff] %v4931
        %p4936 = scmp.eq.s32.totalorder %s32, 4
        // Predicated region
        $region77: #{tpu_custom_call.1} parent=47 // pred_check
          %p4937 = pneg %p4936
        $region78: #{tpu_custom_call.1} parent=47 // pred_check_branch
          %4939 = sbr.rel (%p4937) target = $region80
        $region79: #{tpu_custom_call.1} parent=47 // pred_region
          %v4940 = vld [vmem:[#allocation12] sm:$0xff]
          %v4942 = vperm.slane %v4940, 0
          %v4943 = vperm.slane %v4940, 1
          %v4944 = vperm.slane %v4940, 2
          %v4945 = vperm.slane %v4940, 3
          %v4946 = vperm.slane %v4940, 4
          %v4947 = vperm.slane %v4940, 5
          %v4948 = vperm.slane %v4940, 6
          %v4949 = vperm.slane %v4940, 7
          %v4958 = vmul.f32 %v4920, %v4942
          %v4959 = vmul.f32 %v4921, %v4943
          %v4960 = vmul.f32 %v4922, %v4944
          %v4961 = vmul.f32 %v4923, %v4945
          %v4962 = vmul.f32 %v4924, %v4946
          %v4963 = vmul.f32 %v4925, %v4947
          %v4964 = vmul.f32 %v4926, %v4948
          %v4965 = vmul.f32 %v4927, %v4949
          %v4966 = vadd.f32 %v4958, %v4959
          %v4967 = vadd.f32 %v4966, %v4960
          %v4968 = vadd.f32 %v4967, %v4961
          %v4969 = vadd.f32 %v4968, %v4962
          %v4970 = vadd.f32 %v4969, %v4963
          %v4971 = vadd.f32 %v4970, %v4964
          %v4972 = vadd.f32 %v4971, %v4965
          %4973 = vadd.xlane.f32.xlu0 %v4972
          %v4974 = vpop.xlane.xlu0 %4973
          %v4975 = vld [vmem:[#allocation3] sm:$0x1]
          %v4977 = vperm.slane %v4975, 0
          %v4979 = vadd.f32 %v4974, %v4977
          %vm4980 = vcmask 7168
          %4981 = vst.msk [vmem:[%s431] sm:$0xff] %vm4980, %v4979
        $region80: #{tpu_custom_call.1} parent=47 // pred_fallthru
          _
        %s4982 = sadd.s32 %s31, %s33
        %p4983 = scmp.lt.s32.totalorder %s4982, 0
        %s4984 = scalar_select %p4983, %s4982, 0
        %s4985 = smul.addr %s4984, 8
        %s4986 = scalar_lea.vmem %s7, %s4985
        // Predicated region
        $region81: #{tpu_custom_call.1} parent=47 // pred_check
          %p4987 = pneg %p229
        $region82: #{tpu_custom_call.1} parent=47 // pred_check_branch
          %4989 = sbr.rel (%p4987) target = $region84
        $region83: #{tpu_custom_call.1} parent=47 // pred_region
          %s4990 = sadd.s32 %s31, %s33
        $region84: #{tpu_custom_call.1} parent=47 // pred_fallthru
          _
        // Predicated region
        $region85: #{tpu_custom_call.1} parent=47 // pred_check
          %p4991 = pneg %p229
        $region86: #{tpu_custom_call.1} parent=47 // pred_check_branch
          %4993 = sbr.rel (%p4991) target = $region88
        $region87: #{tpu_custom_call.1} parent=47 // pred_region
          %s4994 = sadd.s32 %s31, %s33
          %p4995 = scmp.lt.s32.totalorder %s4994, 0
          %s4996 = scalar_select %p4995, %s4994, 0
          %s4997 = smul.addr %s4996, 8
          %s4998 = scalar_lea.vmem %s7, %s4997
        $region88: #{tpu_custom_call.1} parent=47 // pred_fallthru
          _
      $region48: #{tpu_custom_call.1} parent=5 // pred_fallthru
        _
      %p4999 = scmp.le.s32.totalorder 2, %s21
      // Predicated region
      $region89: #{tpu_custom_call.1} parent=5 // pred_check
        %p5000 = pneg %p4999
      $region90: #{tpu_custom_call.1} parent=5 // pred_check_branch
        %5002 = sbr.rel (%p5000) target = $region92
      $region91: #{tpu_custom_call.1} parent=5 // pred_region
        %s5003 = ssub.s32 %s21, 2
      $region92: #{tpu_custom_call.1} parent=5 // pred_fallthru
        _
    $region6: #{tpu_custom_call.1} parent=1 // loop_footer
      %s25 = sadd.s32 1, %s21
    $region7: #{tpu_custom_call.1} parent=1 // loop_footer_branch
      %20 = sbr.rel target = $region3
    $region8: #{tpu_custom_call.1} parent=1 // loop_exit
      _
    %5004 = vsyncpa [#allocation5], 1
    %s5005 = scalar_lea.sflag [#allocation5], 1
    %5006 = vsyncpa %s5005, 1
    %5007 = vsyncpa [#allocation7], 1
    %5008 = vsyncpa [#allocation10], 1
    %s5009 = scalar_lea.sflag [#allocation10], 1
    %5010 = vsyncpa %s5009, 1
    %5011 = vsyncpa [#allocation13], 1

</llo_original>
